<compile_context>
chip_gen: v6e
topology: v6e:2x2x1
jax: 0.10.0
libtpu: 0.0.40
codegen_flags: <defaults>
</compile_context>

<pallas_src>
import jax
import jax.numpy as jnp
from jax import lax
from jax.experimental import pallas as pl
from jax.experimental.pallas import tpu as pltpu

# ---- problem sizes (small, consistent with the module structure) ------------
BATCH = 2
CHANNELS = 4
SPATIAL = 16
VIEWS = 4            # multi-view backbone: z1.shape[0] == BATCH * VIEWS
D_BB = 128           # backbone.get_output_dim()
MID = 256            # ProjectionMLP mid_dim (2048 in the original, scaled down)
OUT = 256            # ProjectionMLP out_dim (2048 in the original, scaled down)
BN_EPS = 1e-5
IN_FLAT = CHANNELS * SPATIAL * SPATIAL


# ------------------------------ fused Pallas kernel ---------------------------
def _linear_bn(h, w_ref, b_ref, g_ref, bt_ref, *, relu):
    """Linear + BatchNorm1d (training-mode biased stats) [+ ReLU], full block."""
    y = jnp.dot(h, w_ref[...], preferred_element_type=jnp.float32) + b_ref[...]
    mean = jnp.mean(y, axis=0, keepdims=True)
    var = jnp.mean(jnp.square(y - mean), axis=0, keepdims=True)
    z = (y - mean) * lax.rsqrt(var + BN_EPS) * g_ref[...] + bt_ref[...]
    if relu:
        z = jnp.maximum(z, 0.0)
    return z


def _aurl_fused_kernel(x_ref, wbb_ref, bbb_ref,
                       w1_ref, b1_ref, g1_ref, bt1_ref,
                       w2_ref, b2_ref, g2_ref, bt2_ref,
                       w3_ref, b3_ref, g3_ref, bt3_ref,
                       o_ref, feat_ref):
    x = x_ref[...]                                        # (B, C*H*W)

    # Synthetic multi-view backbone: one 128-wide weight slice per view,
    # written straight into a (B*V, D_BB) VMEM scratch. Rows are ordered
    # view-major (row = v*B + i); this is only a permutation of the
    # reference's sample-major ordering and every downstream op (per-row MLP,
    # per-feature BN over all rows, per-sample mean over views) is invariant
    # to it as long as the epilogue groups rows consistently (it does).
    for v in range(VIEWS):
        wv = wbb_ref[:, v * D_BB:(v + 1) * D_BB]          # (IN_FLAT, D_BB), static
        bv = bbb_ref[:, v * D_BB:(v + 1) * D_BB]          # (1, D_BB)
        fv = jnp.dot(x, wv, preferred_element_type=jnp.float32) + bv
        feat_ref[v * BATCH:(v + 1) * BATCH, :] = fv       # (B, D_BB) row block

    feat = feat_ref[...]                                  # (B*V, D_BB)

    # ProjectionMLP (all full-N blocks, single MXU pass each).
    h = _linear_bn(feat, w1_ref, b1_ref, g1_ref, bt1_ref, relu=True)
    h = _linear_bn(h, w2_ref, b2_ref, g2_ref, bt2_ref, relu=True)
    z = _linear_bn(h, w3_ref, b3_ref, g3_ref, bt3_ref, relu=False)  # (B*V, OUT)

    # Epilogue: per-sample mean over the VIEWS rows (view-major layout).
    acc = z[0:BATCH, :]
    for v in range(1, VIEWS):
        acc = acc + z[v * BATCH:(v + 1) * BATCH, :]
    o_ref[...] = (acc * (1.0 / VIEWS)).astype(o_ref.dtype)


def aurl_forward(params, imgbatch):
    """Whole forward in a single grid-less pallas_call (everything resident in VMEM)."""
    n = imgbatch.shape[0]
    x_flat = imgbatch.reshape(n, -1)
    return pl.pallas_call(
        _aurl_fused_kernel,
        out_shape=jax.ShapeDtypeStruct((n, OUT), imgbatch.dtype),
        scratch_shapes=[pltpu.VMEM((n * VIEWS, D_BB), jnp.float32)],
        compiler_params=pltpu.CompilerParams(vmem_limit_bytes=16 * 1024 * 1024),
    )(x_flat,
      params["w_bb"], params["b_bb"],
      params["w1"], params["b1"], params["g1"], params["bt1"],
      params["w2"], params["b2"], params["g2"], params["bt2"],
      params["w3"], params["b3"], params["g3"], params["bt3"])


# ------------------------------ parameters ------------------------------------
def init_params(key):
    ks = iter(jax.random.split(key, 16))

    def linear(fan_in, fan_out):
        # PyTorch nn.Linear default init: U(-1/sqrt(fan_in), 1/sqrt(fan_in)),
        # weight stored (out, in); transposed to (in, out) for the kernel.
        bound = 1.0 / float(fan_in) ** 0.5
        w = jax.random.uniform(next(ks), (fan_out, fan_in), jnp.float32,
                               -bound, bound)
        b = jax.random.uniform(next(ks), (fan_out,), jnp.float32, -bound, bound)
        return w.T, b.reshape(1, fan_out)

    p = {}
    p["w_bb"], p["b_bb"] = linear(IN_FLAT, VIEWS * D_BB)   # synthetic backbone
    p["w1"], p["b1"] = linear(D_BB, MID)                   # ProjectionMLP.l1
    p["w2"], p["b2"] = linear(MID, MID)                    # ProjectionMLP.l2
    p["w3"], p["b3"] = linear(MID, OUT)                    # ProjectionMLP.l3
    for name, dim in (("1", MID), ("2", MID), ("3", OUT)):  # BN affine params
        p["g" + name] = jnp.ones((1, dim), jnp.float32)
        p["bt" + name] = jnp.zeros((1, dim), jnp.float32)
    return p


# ------------------------------ pure-JAX reference ----------------------------
def reference_forward(params, imgbatch):
    n = imgbatch.shape[0]
    xf = imgbatch.reshape(n, -1)
    feat = (xf @ params["w_bb"] + params["b_bb"]).reshape(n * VIEWS, D_BB)

    def bn(y, g, b):
        m = y.mean(0, keepdims=True)
        v = jnp.square(y - m).mean(0, keepdims=True)
        return (y - m) / jnp.sqrt(v + BN_EPS) * g + b

    h = jnp.maximum(bn(feat @ params["w1"] + params["b1"],
                       params["g1"], params["bt1"]), 0.0)
    h = jnp.maximum(bn(h @ params["w2"] + params["b2"],
                       params["g2"], params["bt2"]), 0.0)
    z = bn(h @ params["w3"] + params["b3"], params["g3"], params["bt3"])
    return z.reshape(n, -1, z.shape[-1]).mean(1)


if __name__ == "__main__":
    key = jax.random.PRNGKey(0)
    kp, kx = jax.random.split(key)
    params = init_params(kp)
    x = jax.random.normal(kx, (BATCH, CHANNELS, SPATIAL, SPATIAL), jnp.float32)

    out = jax.jit(aurl_forward)(params, x)
    out = jax.block_until_ready(out)
    assert out.shape == (BATCH, OUT), out.shape

    ref = reference_forward(params, x)
    assert jnp.allclose(out, ref, rtol=1e-4, atol=1e-4), \
        float(jnp.max(jnp.abs(out - ref)))

    print("KERNEL_OK")
</pallas_src>

<mosaic_0001>
module attributes {stable_mosaic.version = 11 : i64} {
  func.func @_aurl_fused_kernel(%arg0: memref<2x1024xf32, #tpu.memory_space<vmem>>, %arg1: memref<1024x512xf32, #tpu.memory_space<vmem>>, %arg2: memref<1x512xf32, #tpu.memory_space<vmem>>, %arg3: memref<128x256xf32, #tpu.memory_space<vmem>>, %arg4: memref<1x256xf32, #tpu.memory_space<vmem>>, %arg5: memref<1x256xf32, #tpu.memory_space<vmem>>, %arg6: memref<1x256xf32, #tpu.memory_space<vmem>>, %arg7: memref<256x256xf32, #tpu.memory_space<vmem>>, %arg8: memref<1x256xf32, #tpu.memory_space<vmem>>, %arg9: memref<1x256xf32, #tpu.memory_space<vmem>>, %arg10: memref<1x256xf32, #tpu.memory_space<vmem>>, %arg11: memref<256x256xf32, #tpu.memory_space<vmem>>, %arg12: memref<1x256xf32, #tpu.memory_space<vmem>>, %arg13: memref<1x256xf32, #tpu.memory_space<vmem>>, %arg14: memref<1x256xf32, #tpu.memory_space<vmem>>, %arg15: memref<2x256xf32, #tpu.memory_space<vmem>>, %arg16: memref<8x128xf32, #tpu.memory_space<vmem>>) attributes {dimension_semantics = [], scalar_prefetch = 0 : i64, scratch_operands = 1 : i64, tpu.core_type = #tpu.core_type<tc>} {
    %c0 = arith.constant 0 : index
    %c0_0 = arith.constant 0 : index
    %0 = vector.load %arg0[%c0, %c0_0] : memref<2x1024xf32, #tpu.memory_space<vmem>>, vector<2x1024xf32>
    %c0_1 = arith.constant 0 : index
    %c0_2 = arith.constant 0 : index
    %1 = vector.load %arg1[%c0_1, %c0_2] : memref<1024x512xf32, #tpu.memory_space<vmem>>, vector<1024x128xf32>
    %c0_3 = arith.constant 0 : index
    %c0_4 = arith.constant 0 : index
    %2 = vector.load %arg2[%c0_3, %c0_4] : memref<1x512xf32, #tpu.memory_space<vmem>>, vector<1x128xf32>
    %cst = arith.constant dense<0.000000e+00> : vector<2x128xf32>
    %3 = tpu.matmul %0, %1, %cst {dimension_numbers = #tpu.dot_dimension_numbers<[1], [0], [0], [1], [0, 0, 1, 1], [], []>} : vector<2x1024xf32>, vector<1024x128xf32>, vector<2x128xf32> -> vector<2x128xf32>
    %4 = vector.broadcast %2 : vector<1x128xf32> to vector<2x128xf32>
    %5 = arith.addf %3, %4 : vector<2x128xf32>
    %c0_5 = arith.constant 0 : index
    %c0_6 = arith.constant 0 : index
    %6 = vector.load %arg16[%c0_5, %c0_6] : memref<8x128xf32, #tpu.memory_space<vmem>>, vector<2x128xf32>
    tpu.vector_store %arg16[%c0_5, %c0_6], %5 {strides = array<i32>} : memref<8x128xf32, #tpu.memory_space<vmem>>, vector<2x128xf32>,
    %c0_7 = arith.constant 0 : index
    %c128 = arith.constant 128 : index
    %7 = vector.load %arg1[%c0_7, %c128] : memref<1024x512xf32, #tpu.memory_space<vmem>>, vector<1024x128xf32>
    %c0_8 = arith.constant 0 : index
    %c128_9 = arith.constant 128 : index
    %8 = vector.load %arg2[%c0_8, %c128_9] : memref<1x512xf32, #tpu.memory_space<vmem>>, vector<1x128xf32>
    %cst_10 = arith.constant dense<0.000000e+00> : vector<2x128xf32>
    %9 = tpu.matmul %0, %7, %cst_10 {dimension_numbers = #tpu.dot_dimension_numbers<[1], [0], [0], [1], [0, 0, 1, 1], [], []>} : vector<2x1024xf32>, vector<1024x128xf32>, vector<2x128xf32> -> vector<2x128xf32>
    %10 = vector.broadcast %8 : vector<1x128xf32> to vector<2x128xf32>
    %11 = arith.addf %9, %10 : vector<2x128xf32>
    %c2 = arith.constant 2 : index
    %c0_11 = arith.constant 0 : index
    %12 = vector.load %arg16[%c2, %c0_11] : memref<8x128xf32, #tpu.memory_space<vmem>>, vector<2x128xf32>
    tpu.vector_store %arg16[%c2, %c0_11], %11 {strides = array<i32>} : memref<8x128xf32, #tpu.memory_space<vmem>>, vector<2x128xf32>,
    %c0_12 = arith.constant 0 : index
    %c256 = arith.constant 256 : index
    %13 = vector.load %arg1[%c0_12, %c256] : memref<1024x512xf32, #tpu.memory_space<vmem>>, vector<1024x128xf32>
    %c0_13 = arith.constant 0 : index
    %c256_14 = arith.constant 256 : index
    %14 = vector.load %arg2[%c0_13, %c256_14] : memref<1x512xf32, #tpu.memory_space<vmem>>, vector<1x128xf32>
    %cst_15 = arith.constant dense<0.000000e+00> : vector<2x128xf32>
    %15 = tpu.matmul %0, %13, %cst_15 {dimension_numbers = #tpu.dot_dimension_numbers<[1], [0], [0], [1], [0, 0, 1, 1], [], []>} : vector<2x1024xf32>, vector<1024x128xf32>, vector<2x128xf32> -> vector<2x128xf32>
    %16 = vector.broadcast %14 : vector<1x128xf32> to vector<2x128xf32>
    %17 = arith.addf %15, %16 : vector<2x128xf32>
    %c4 = arith.constant 4 : index
    %c0_16 = arith.constant 0 : index
    %18 = vector.load %arg16[%c4, %c0_16] : memref<8x128xf32, #tpu.memory_space<vmem>>, vector<2x128xf32>
    tpu.vector_store %arg16[%c4, %c0_16], %17 {strides = array<i32>} : memref<8x128xf32, #tpu.memory_space<vmem>>, vector<2x128xf32>,
    %c0_17 = arith.constant 0 : index
    %c384 = arith.constant 384 : index
    %19 = vector.load %arg1[%c0_17, %c384] : memref<1024x512xf32, #tpu.memory_space<vmem>>, vector<1024x128xf32>
    %c0_18 = arith.constant 0 : index
    %c384_19 = arith.constant 384 : index
    %20 = vector.load %arg2[%c0_18, %c384_19] : memref<1x512xf32, #tpu.memory_space<vmem>>, vector<1x128xf32>
    %cst_20 = arith.constant dense<0.000000e+00> : vector<2x128xf32>
    %21 = tpu.matmul %0, %19, %cst_20 {dimension_numbers = #tpu.dot_dimension_numbers<[1], [0], [0], [1], [0, 0, 1, 1], [], []>} : vector<2x1024xf32>, vector<1024x128xf32>, vector<2x128xf32> -> vector<2x128xf32>
    %22 = vector.broadcast %20 : vector<1x128xf32> to vector<2x128xf32>
    %23 = arith.addf %21, %22 : vector<2x128xf32>
    %c6 = arith.constant 6 : index
    %c0_21 = arith.constant 0 : index
    %24 = vector.load %arg16[%c6, %c0_21] : memref<8x128xf32, #tpu.memory_space<vmem>>, vector<2x128xf32>
    tpu.vector_store %arg16[%c6, %c0_21], %23 {strides = array<i32>} : memref<8x128xf32, #tpu.memory_space<vmem>>, vector<2x128xf32>,
    %c0_22 = arith.constant 0 : index
    %c0_23 = arith.constant 0 : index
    %25 = vector.load %arg16[%c0_22, %c0_23] : memref<8x128xf32, #tpu.memory_space<vmem>>, vector<8x128xf32>
    %c0_24 = arith.constant 0 : index
    %c0_25 = arith.constant 0 : index
    %26 = vector.load %arg3[%c0_24, %c0_25] : memref<128x256xf32, #tpu.memory_space<vmem>>, vector<128x256xf32>
    %cst_26 = arith.constant dense<0.000000e+00> : vector<8x256xf32>
    %27 = tpu.matmul %25, %26, %cst_26 {dimension_numbers = #tpu.dot_dimension_numbers<[1], [0], [0], [1], [0, 0, 1, 1], [], []>} : vector<8x128xf32>, vector<128x256xf32>, vector<8x256xf32> -> vector<8x256xf32>
    %c0_27 = arith.constant 0 : index
    %c0_28 = arith.constant 0 : index
    %28 = vector.load %arg4[%c0_27, %c0_28] : memref<1x256xf32, #tpu.memory_space<vmem>>, vector<1x256xf32>
    %29 = vector.broadcast %28 : vector<1x256xf32> to vector<8x256xf32>
    %30 = arith.addf %27, %29 : vector<8x256xf32>
    %cst_29 = arith.constant dense<0.000000e+00> : vector<256xf32>
    %31 = vector.multi_reduction <add>, %30, %cst_29 [0] : vector<8x256xf32> to vector<256xf32>
    %32 = vector.shape_cast %31 : vector<256xf32> to vector<1x256xf32>
    %cst_30 = arith.constant 8.000000e+00 : f32
    %33 = vector.broadcast %cst_30 : f32 to vector<1x256xf32>
    %34 = arith.divf %32, %33 : vector<1x256xf32>
    %35 = vector.broadcast %34 : vector<1x256xf32> to vector<8x256xf32>
    %36 = arith.subf %30, %35 : vector<8x256xf32>
    %37 = arith.mulf %36, %36 : vector<8x256xf32>
    %cst_31 = arith.constant dense<0.000000e+00> : vector<256xf32>
    %38 = vector.multi_reduction <add>, %37, %cst_31 [0] : vector<8x256xf32> to vector<256xf32>
    %39 = vector.shape_cast %38 : vector<256xf32> to vector<1x256xf32>
    %cst_32 = arith.constant 8.000000e+00 : f32
    %40 = vector.broadcast %cst_32 : f32 to vector<1x256xf32>
    %41 = arith.divf %39, %40 : vector<1x256xf32>
    %42 = vector.broadcast %34 : vector<1x256xf32> to vector<8x256xf32>
    %43 = arith.subf %30, %42 : vector<8x256xf32>
    %cst_33 = arith.constant 9.99999974E-6 : f32
    %44 = vector.broadcast %cst_33 : f32 to vector<1x256xf32>
    %45 = arith.addf %41, %44 : vector<1x256xf32>
    %46 = math.rsqrt %45 : vector<1x256xf32>
    %47 = vector.broadcast %46 : vector<1x256xf32> to vector<8x256xf32>
    %48 = arith.mulf %43, %47 : vector<8x256xf32>
    %c0_34 = arith.constant 0 : index
    %c0_35 = arith.constant 0 : index
    %49 = vector.load %arg5[%c0_34, %c0_35] : memref<1x256xf32, #tpu.memory_space<vmem>>, vector<1x256xf32>
    %50 = vector.broadcast %49 : vector<1x256xf32> to vector<8x256xf32>
    %51 = arith.mulf %48, %50 : vector<8x256xf32>
    %c0_36 = arith.constant 0 : index
    %c0_37 = arith.constant 0 : index
    %52 = vector.load %arg6[%c0_36, %c0_37] : memref<1x256xf32, #tpu.memory_space<vmem>>, vector<1x256xf32>
    %53 = vector.broadcast %52 : vector<1x256xf32> to vector<8x256xf32>
    %54 = arith.addf %51, %53 : vector<8x256xf32>
    %cst_38 = arith.constant 0.000000e+00 : f32
    %55 = vector.broadcast %cst_38 : f32 to vector<8x256xf32>
    %56 = arith.maximumf %54, %55 : vector<8x256xf32>
    %c0_39 = arith.constant 0 : index
    %c0_40 = arith.constant 0 : index
    %57 = vector.load %arg7[%c0_39, %c0_40] : memref<256x256xf32, #tpu.memory_space<vmem>>, vector<256x256xf32>
    %cst_41 = arith.constant dense<0.000000e+00> : vector<8x256xf32>
    %58 = tpu.matmul %56, %57, %cst_41 {dimension_numbers = #tpu.dot_dimension_numbers<[1], [0], [0], [1], [0, 0, 1, 1], [], []>} : vector<8x256xf32>, vector<256x256xf32>, vector<8x256xf32> -> vector<8x256xf32>
    %c0_42 = arith.constant 0 : index
    %c0_43 = arith.constant 0 : index
    %59 = vector.load %arg8[%c0_42, %c0_43] : memref<1x256xf32, #tpu.memory_space<vmem>>, vector<1x256xf32>
    %60 = vector.broadcast %59 : vector<1x256xf32> to vector<8x256xf32>
    %61 = arith.addf %58, %60 : vector<8x256xf32>
    %cst_44 = arith.constant dense<0.000000e+00> : vector<256xf32>
    %62 = vector.multi_reduction <add>, %61, %cst_44 [0] : vector<8x256xf32> to vector<256xf32>
    %63 = vector.shape_cast %62 : vector<256xf32> to vector<1x256xf32>
    %cst_45 = arith.constant 8.000000e+00 : f32
    %64 = vector.broadcast %cst_45 : f32 to vector<1x256xf32>
    %65 = arith.divf %63, %64 : vector<1x256xf32>
    %66 = vector.broadcast %65 : vector<1x256xf32> to vector<8x256xf32>
    %67 = arith.subf %61, %66 : vector<8x256xf32>
    %68 = arith.mulf %67, %67 : vector<8x256xf32>
    %cst_46 = arith.constant dense<0.000000e+00> : vector<256xf32>
    %69 = vector.multi_reduction <add>, %68, %cst_46 [0] : vector<8x256xf32> to vector<256xf32>
    %70 = vector.shape_cast %69 : vector<256xf32> to vector<1x256xf32>
    %cst_47 = arith.constant 8.000000e+00 : f32
    %71 = vector.broadcast %cst_47 : f32 to vector<1x256xf32>
    %72 = arith.divf %70, %71 : vector<1x256xf32>
    %73 = vector.broadcast %65 : vector<1x256xf32> to vector<8x256xf32>
    %74 = arith.subf %61, %73 : vector<8x256xf32>
    %cst_48 = arith.constant 9.99999974E-6 : f32
    %75 = vector.broadcast %cst_48 : f32 to vector<1x256xf32>
    %76 = arith.addf %72, %75 : vector<1x256xf32>
    %77 = math.rsqrt %76 : vector<1x256xf32>
    %78 = vector.broadcast %77 : vector<1x256xf32> to vector<8x256xf32>
    %79 = arith.mulf %74, %78 : vector<8x256xf32>
    %c0_49 = arith.constant 0 : index
    %c0_50 = arith.constant 0 : index
    %80 = vector.load %arg9[%c0_49, %c0_50] : memref<1x256xf32, #tpu.memory_space<vmem>>, vector<1x256xf32>
    %81 = vector.broadcast %80 : vector<1x256xf32> to vector<8x256xf32>
    %82 = arith.mulf %79, %81 : vector<8x256xf32>
    %c0_51 = arith.constant 0 : index
    %c0_52 = arith.constant 0 : index
    %83 = vector.load %arg10[%c0_51, %c0_52] : memref<1x256xf32, #tpu.memory_space<vmem>>, vector<1x256xf32>
    %84 = vector.broadcast %83 : vector<1x256xf32> to vector<8x256xf32>
    %85 = arith.addf %82, %84 : vector<8x256xf32>
    %cst_53 = arith.constant 0.000000e+00 : f32
    %86 = vector.broadcast %cst_53 : f32 to vector<8x256xf32>
    %87 = arith.maximumf %85, %86 : vector<8x256xf32>
    %c0_54 = arith.constant 0 : index
    %c0_55 = arith.constant 0 : index
    %88 = vector.load %arg11[%c0_54, %c0_55] : memref<256x256xf32, #tpu.memory_space<vmem>>, vector<256x256xf32>
    %cst_56 = arith.constant dense<0.000000e+00> : vector<8x256xf32>
    %89 = tpu.matmul %87, %88, %cst_56 {dimension_numbers = #tpu.dot_dimension_numbers<[1], [0], [0], [1], [0, 0, 1, 1], [], []>} : vector<8x256xf32>, vector<256x256xf32>, vector<8x256xf32> -> vector<8x256xf32>
    %c0_57 = arith.constant 0 : index
    %c0_58 = arith.constant 0 : index
    %90 = vector.load %arg12[%c0_57, %c0_58] : memref<1x256xf32, #tpu.memory_space<vmem>>, vector<1x256xf32>
    %91 = vector.broadcast %90 : vector<1x256xf32> to vector<8x256xf32>
    %92 = arith.addf %89, %91 : vector<8x256xf32>
    %cst_59 = arith.constant dense<0.000000e+00> : vector<256xf32>
    %93 = vector.multi_reduction <add>, %92, %cst_59 [0] : vector<8x256xf32> to vector<256xf32>
    %94 = vector.shape_cast %93 : vector<256xf32> to vector<1x256xf32>
    %cst_60 = arith.constant 8.000000e+00 : f32
    %95 = vector.broadcast %cst_60 : f32 to vector<1x256xf32>
    %96 = arith.divf %94, %95 : vector<1x256xf32>
    %97 = vector.broadcast %96 : vector<1x256xf32> to vector<8x256xf32>
    %98 = arith.subf %92, %97 : vector<8x256xf32>
    %99 = arith.mulf %98, %98 : vector<8x256xf32>
    %cst_61 = arith.constant dense<0.000000e+00> : vector<256xf32>
    %100 = vector.multi_reduction <add>, %99, %cst_61 [0] : vector<8x256xf32> to vector<256xf32>
    %101 = vector.shape_cast %100 : vector<256xf32> to vector<1x256xf32>
    %cst_62 = arith.constant 8.000000e+00 : f32
    %102 = vector.broadcast %cst_62 : f32 to vector<1x256xf32>
    %103 = arith.divf %101, %102 : vector<1x256xf32>
    %104 = vector.broadcast %96 : vector<1x256xf32> to vector<8x256xf32>
    %105 = arith.subf %92, %104 : vector<8x256xf32>
    %cst_63 = arith.constant 9.99999974E-6 : f32
    %106 = vector.broadcast %cst_63 : f32 to vector<1x256xf32>
    %107 = arith.addf %103, %106 : vector<1x256xf32>
    %108 = math.rsqrt %107 : vector<1x256xf32>
    %109 = vector.broadcast %108 : vector<1x256xf32> to vector<8x256xf32>
    %110 = arith.mulf %105, %109 : vector<8x256xf32>
    %c0_64 = arith.constant 0 : index
    %c0_65 = arith.constant 0 : index
    %111 = vector.load %arg13[%c0_64, %c0_65] : memref<1x256xf32, #tpu.memory_space<vmem>>, vector<1x256xf32>
    %112 = vector.broadcast %111 : vector<1x256xf32> to vector<8x256xf32>
    %113 = arith.mulf %110, %112 : vector<8x256xf32>
    %c0_66 = arith.constant 0 : index
    %c0_67 = arith.constant 0 : index
    %114 = vector.load %arg14[%c0_66, %c0_67] : memref<1x256xf32, #tpu.memory_space<vmem>>, vector<1x256xf32>
    %115 = vector.broadcast %114 : vector<1x256xf32> to vector<8x256xf32>
    %116 = arith.addf %113, %115 : vector<8x256xf32>
    %117 = vector.extract_strided_slice %116 {offsets = [0, 0], sizes = [2, 256], strides = [1, 1]} : vector<8x256xf32> to vector<2x256xf32>
    %118 = vector.extract_strided_slice %116 {offsets = [2, 0], sizes = [2, 256], strides = [1, 1]} : vector<8x256xf32> to vector<2x256xf32>
    %119 = arith.addf %117, %118 : vector<2x256xf32>
    %120 = vector.extract_strided_slice %116 {offsets = [4, 0], sizes = [2, 256], strides = [1, 1]} : vector<8x256xf32> to vector<2x256xf32>
    %121 = arith.addf %119, %120 : vector<2x256xf32>
    %122 = vector.extract_strided_slice %116 {offsets = [6, 0], sizes = [2, 256], strides = [1, 1]} : vector<8x256xf32> to vector<2x256xf32>
    %123 = arith.addf %121, %122 : vector<2x256xf32>
    %cst_68 = arith.constant 2.500000e-01 : f32
    %124 = vector.broadcast %cst_68 : f32 to vector<2x256xf32>
    %125 = arith.mulf %123, %124 : vector<2x256xf32>
    %c0_69 = arith.constant 0 : index
    %c0_70 = arith.constant 0 : index
    %126 = vector.load %arg15[%c0_69, %c0_70] : memref<2x256xf32, #tpu.memory_space<vmem>>, vector<2x256xf32>
    tpu.vector_store %arg15[%c0_69, %c0_70], %125 {strides = array<i32>} : memref<2x256xf32, #tpu.memory_space<vmem>>, vector<2x256xf32>,
    return
  }
}

</mosaic_0001>

<llo_original>
// kernel: aurl_forward.1
$region0: #{aurl_forward.1}
  #allocation0 [shape = 'u32[]', space=smem, size = 0x4, offset = 0x4, fixed_abs, tag = 'smem constant byte address 0x4 - core index']
  #allocation1 [shape = 'u32[144,128]{1,0:T(1,128)}', space=vmem, size = 0x12000, scoped, tag = 'internal scratch']
  #allocation2 [shape = 'f32[8,128]{1,0:T(8,128)}', space=vmem, size = 0x1000, scoped, tag = 'scratch operand']
  %s0 = inlined_call_operand.vmem [shape: f32[2,1024], index: 0, kind: input, shape index: {}]
  %s1 = inlined_call_operand.hbm [shape: f32[1024,512], index: 1, kind: input, shape index: {}]
  %s2 = inlined_call_operand.hbm [shape: f32[1,512], index: 2, kind: input, shape index: {}]
  %s3 = inlined_call_operand.hbm [shape: f32[128,256], index: 3, kind: input, shape index: {}]
  %s4 = inlined_call_operand.hbm [shape: f32[1,256], index: 4, kind: input, shape index: {}]
  %s5 = inlined_call_operand.hbm [shape: f32[1,256], index: 5, kind: input, shape index: {}]
  %s6 = inlined_call_operand.hbm [shape: f32[1,256], index: 6, kind: input, shape index: {}]
  %s7 = inlined_call_operand.hbm [shape: f32[256,256], index: 7, kind: input, shape index: {}]
  %s8 = inlined_call_operand.hbm [shape: f32[1,256], index: 8, kind: input, shape index: {}]
  %s9 = inlined_call_operand.hbm [shape: f32[1,256], index: 9, kind: input, shape index: {}]
  %s10 = inlined_call_operand.hbm [shape: f32[1,256], index: 10, kind: input, shape index: {}]
  %s11 = inlined_call_operand.hbm [shape: f32[256,256], index: 11, kind: input, shape index: {}]
  %s12 = inlined_call_operand.hbm [shape: f32[1,256], index: 12, kind: input, shape index: {}]
  %s13 = inlined_call_operand.hbm [shape: f32[1,256], index: 13, kind: input, shape index: {}]
  %s14 = inlined_call_operand.hbm [shape: f32[1,256], index: 14, kind: input, shape index: {}]
  %s15 = inlined_call_operand.hbm [shape: f32[2,256], index: 15, kind: output, shape index: {}]
  %s16 = sld [smem:[#allocation0]]
  $region126: #{aurl_forward.1} parent=0
    _
  %s18 = ssub.s32 1, %s16
  %s19 = scalar_select 0, %s18, %s16
  $region1: #{aurl_forward.1} parent=0
    #allocation3 [shape = 'u8[2097152]{0}', space=vmem, size = 0x200000, scoped, tag = 'input window, operand 1, single buffered']
    #allocation4 [shape = 's32[1]{0}', space=sflag, size = 0x4, scoped, tag = 'scoped memory for aurl_forward.1']
    #allocation5 [shape = 's32[1]{0}', space=sflag, size = 0x4, scoped, tag = 'scoped memory for aurl_forward.1']
    #allocation6 [shape = 'u8[2048]{0}', space=vmem, size = 0x800, scoped, tag = 'input window, operand 2, single buffered']
    #allocation7 [shape = 's32[1]{0}', space=sflag, size = 0x4, scoped, tag = 'scoped memory for aurl_forward.1']
    #allocation8 [shape = 'u8[131072]{0}', space=vmem, size = 0x20000, scoped, tag = 'input window, operand 3, single buffered']
    #allocation9 [shape = 'u8[1024]{0}', space=vmem, size = 0x400, scoped, tag = 'input window, operand 4, single buffered']
    #allocation10 [shape = 's32[1]{0}', space=sflag, size = 0x4, scoped, tag = 'scoped memory for aurl_forward.1']
    #allocation11 [shape = 'u8[1024]{0}', space=vmem, size = 0x400, scoped, tag = 'input window, operand 5, single buffered']
    #allocation12 [shape = 'u8[1024]{0}', space=vmem, size = 0x400, scoped, tag = 'input window, operand 6, single buffered']
    #allocation13 [shape = 's32[1]{0}', space=sflag, size = 0x4, scoped, tag = 'scoped memory for aurl_forward.1']
    #allocation14 [shape = 'u8[262144]{0}', space=vmem, size = 0x40000, scoped, tag = 'input window, operand 7, single buffered']
    #allocation15 [shape = 'u8[1024]{0}', space=vmem, size = 0x400, scoped, tag = 'input window, operand 8, single buffered']
    #allocation16 [shape = 's32[1]{0}', space=sflag, size = 0x4, scoped, tag = 'scoped memory for aurl_forward.1']
    #allocation17 [shape = 'u8[1024]{0}', space=vmem, size = 0x400, scoped, tag = 'input window, operand 9, single buffered']
    #allocation18 [shape = 'u8[1024]{0}', space=vmem, size = 0x400, scoped, tag = 'input window, operand 10, single buffered']
    #allocation19 [shape = 's32[1]{0}', space=sflag, size = 0x4, scoped, tag = 'scoped memory for aurl_forward.1']
    #allocation20 [shape = 'u8[262144]{0}', space=vmem, size = 0x40000, scoped, tag = 'input window, operand 11, single buffered']
    #allocation21 [shape = 'u8[1024]{0}', space=vmem, size = 0x400, scoped, tag = 'input window, operand 12, single buffered']
    #allocation22 [shape = 's32[1]{0}', space=sflag, size = 0x4, scoped, tag = 'scoped memory for aurl_forward.1']
    #allocation23 [shape = 'u8[1024]{0}', space=vmem, size = 0x400, scoped, tag = 'input window, operand 13, single buffered']
    #allocation24 [shape = 'u8[1024]{0}', space=vmem, size = 0x400, scoped, tag = 'input window, operand 14, single buffered']
    #allocation25 [shape = 's32[1]{0}', space=sflag, size = 0x4, scoped, tag = 'scoped memory for aurl_forward.1']
    #allocation26 [shape = 'u8[2048]{0}', space=vmem, size = 0x800, scoped, tag = 'output window, operand 0, single buffered']
    %20 = vsyncpa [#allocation4], 0
    %21 = vsyncpa [#allocation7], 0
    %22 = vsyncpa [#allocation10], 0
    %23 = vsyncpa [#allocation13], 0
    %24 = vsyncpa [#allocation16], 0
    %25 = vsyncpa [#allocation19], 0
    %26 = vsyncpa [#allocation22], 0
    %27 = vsyncpa [#allocation25], 0
    %28 = vsyncpa [#allocation5], 0
    // Predicated region
    $region2: #{aurl_forward.1} parent=1 // pred_check
      _
    $region3: #{aurl_forward.1} parent=1 // pred_check_branch
      %30 = sbr.rel (0) target = $region5
    $region4: #{aurl_forward.1} parent=1 // pred_region
      _
    $region5: #{aurl_forward.1} parent=1 // pred_fallthru
      _
    // Predicated region
    $region6: #{aurl_forward.1} parent=1 // pred_check
      _
    $region7: #{aurl_forward.1} parent=1 // pred_check_branch
      %32 = sbr.rel (0) target = $region9
    $region8: #{aurl_forward.1} parent=1 // pred_region
      %s34 = ssub.s32 65536, 65536
      %35 = vsyncadd [#allocation4], %s34
      %s36 = sshll.u32 [#allocation3], 4
      %s37 = int_to_ptr.vmem [resolvable:$true] %s36
      %42 = dma.hbm_to_vmem [thread:$0]  %s1, 65536, %s37, [#allocation4], 512, 512, 32
    $region9: #{aurl_forward.1} parent=1 // pred_fallthru
      _
    // Predicated region
    $region10: #{aurl_forward.1} parent=1 // pred_check
      _
    $region11: #{aurl_forward.1} parent=1 // pred_check_branch
      %44 = sbr.rel (0) target = $region13
    $region12: #{aurl_forward.1} parent=1 // pred_region
      %s46 = ssub.s32 64, 64
      %47 = vsyncadd [#allocation7], %s46
      %s49 = sshll.u32 [#allocation6], 4
      %s50 = int_to_ptr.vmem [resolvable:$true] %s49
      %52 = dma.hbm_to_vmem [thread:$0]  %s2, 64, %s50, [#allocation7]
    $region13: #{aurl_forward.1} parent=1 // pred_fallthru
      _
    // Predicated region
    $region14: #{aurl_forward.1} parent=1 // pred_check
      _
    $region15: #{aurl_forward.1} parent=1 // pred_check_branch
      %54 = sbr.rel (0) target = $region17
    $region16: #{aurl_forward.1} parent=1 // pred_region
      %s56 = ssub.s32 4096, 4096
      %57 = vsyncadd [#allocation7], %s56
      %s58 = sshll.u32 [#allocation8], 4
      %s59 = int_to_ptr.vmem [resolvable:$true] %s58
      %64 = dma.hbm_to_vmem [thread:$0]  %s3, 4096, %s59, [#allocation7], 256, 256, 16
    $region17: #{aurl_forward.1} parent=1 // pred_fallthru
      _
    // Predicated region
    $region18: #{aurl_forward.1} parent=1 // pred_check
      _
    $region19: #{aurl_forward.1} parent=1 // pred_check_branch
      %66 = sbr.rel (0) target = $region21
    $region20: #{aurl_forward.1} parent=1 // pred_region
      %s68 = ssub.s32 32, 32
      %69 = vsyncadd [#allocation10], %s68
      %s71 = sshll.u32 [#allocation9], 4
      %s72 = int_to_ptr.vmem [resolvable:$true] %s71
      %74 = dma.hbm_to_vmem [thread:$0]  %s4, 32, %s72, [#allocation10]
    $region21: #{aurl_forward.1} parent=1 // pred_fallthru
      _
    // Predicated region
    $region22: #{aurl_forward.1} parent=1 // pred_check
      _
    $region23: #{aurl_forward.1} parent=1 // pred_check_branch
      %76 = sbr.rel (0) target = $region25
    $region24: #{aurl_forward.1} parent=1 // pred_region
      %s78 = ssub.s32 32, 32
      %79 = vsyncadd [#allocation10], %s78
      %s81 = sshll.u32 [#allocation11], 4
      %s82 = int_to_ptr.vmem [resolvable:$true] %s81
      %84 = dma.hbm_to_vmem [thread:$0]  %s5, 32, %s82, [#allocation10]
    $region25: #{aurl_forward.1} parent=1 // pred_fallthru
      _
    // Predicated region
    $region26: #{aurl_forward.1} parent=1 // pred_check
      _
    $region27: #{aurl_forward.1} parent=1 // pred_check_branch
      %86 = sbr.rel (0) target = $region29
    $region28: #{aurl_forward.1} parent=1 // pred_region
      %s88 = ssub.s32 32, 32
      %89 = vsyncadd [#allocation13], %s88
      %s91 = sshll.u32 [#allocation12], 4
      %s92 = int_to_ptr.vmem [resolvable:$true] %s91
      %94 = dma.hbm_to_vmem [thread:$0]  %s6, 32, %s92, [#allocation13]
    $region29: #{aurl_forward.1} parent=1 // pred_fallthru
      _
    // Predicated region
    $region30: #{aurl_forward.1} parent=1 // pred_check
      _
    $region31: #{aurl_forward.1} parent=1 // pred_check_branch
      %96 = sbr.rel (0) target = $region33
    $region32: #{aurl_forward.1} parent=1 // pred_region
      %s98 = ssub.s32 8192, 8192
      %99 = vsyncadd [#allocation13], %s98
      %s100 = sshll.u32 [#allocation14], 4
      %s101 = int_to_ptr.vmem [resolvable:$true] %s100
      %106 = dma.hbm_to_vmem [thread:$0]  %s7, 8192, %s101, [#allocation13], 256, 256, 16
    $region33: #{aurl_forward.1} parent=1 // pred_fallthru
      _
    // Predicated region
    $region34: #{aurl_forward.1} parent=1 // pred_check
      _
    $region35: #{aurl_forward.1} parent=1 // pred_check_branch
      %108 = sbr.rel (0) target = $region37
    $region36: #{aurl_forward.1} parent=1 // pred_region
      %s110 = ssub.s32 32, 32
      %111 = vsyncadd [#allocation16], %s110
      %s113 = sshll.u32 [#allocation15], 4
      %s114 = int_to_ptr.vmem [resolvable:$true] %s113
      %116 = dma.hbm_to_vmem [thread:$0]  %s8, 32, %s114, [#allocation16]
    $region37: #{aurl_forward.1} parent=1 // pred_fallthru
      _
    // Predicated region
    $region38: #{aurl_forward.1} parent=1 // pred_check
      _
    $region39: #{aurl_forward.1} parent=1 // pred_check_branch
      %118 = sbr.rel (0) target = $region41
    $region40: #{aurl_forward.1} parent=1 // pred_region
      %s120 = ssub.s32 32, 32
      %121 = vsyncadd [#allocation16], %s120
      %s123 = sshll.u32 [#allocation17], 4
      %s124 = int_to_ptr.vmem [resolvable:$true] %s123
      %126 = dma.hbm_to_vmem [thread:$0]  %s9, 32, %s124, [#allocation16]
    $region41: #{aurl_forward.1} parent=1 // pred_fallthru
      _
    // Predicated region
    $region42: #{aurl_forward.1} parent=1 // pred_check
      _
    $region43: #{aurl_forward.1} parent=1 // pred_check_branch
      %128 = sbr.rel (0) target = $region45
    $region44: #{aurl_forward.1} parent=1 // pred_region
      %s130 = ssub.s32 32, 32
      %131 = vsyncadd [#allocation19], %s130
      %s133 = sshll.u32 [#allocation18], 4
      %s134 = int_to_ptr.vmem [resolvable:$true] %s133
      %136 = dma.hbm_to_vmem [thread:$0]  %s10, 32, %s134, [#allocation19]
    $region45: #{aurl_forward.1} parent=1 // pred_fallthru
      _
    // Predicated region
    $region46: #{aurl_forward.1} parent=1 // pred_check
      _
    $region47: #{aurl_forward.1} parent=1 // pred_check_branch
      %138 = sbr.rel (0) target = $region49
    $region48: #{aurl_forward.1} parent=1 // pred_region
      %s140 = ssub.s32 8192, 8192
      %141 = vsyncadd [#allocation19], %s140
      %s142 = sshll.u32 [#allocation20], 4
      %s143 = int_to_ptr.vmem [resolvable:$true] %s142
      %148 = dma.hbm_to_vmem [thread:$0]  %s11, 8192, %s143, [#allocation19], 256, 256, 16
    $region49: #{aurl_forward.1} parent=1 // pred_fallthru
      _
    // Predicated region
    $region50: #{aurl_forward.1} parent=1 // pred_check
      _
    $region51: #{aurl_forward.1} parent=1 // pred_check_branch
      %150 = sbr.rel (0) target = $region53
    $region52: #{aurl_forward.1} parent=1 // pred_region
      %s152 = ssub.s32 32, 32
      %153 = vsyncadd [#allocation22], %s152
      %s155 = sshll.u32 [#allocation21], 4
      %s156 = int_to_ptr.vmem [resolvable:$true] %s155
      %158 = dma.hbm_to_vmem [thread:$0]  %s12, 32, %s156, [#allocation22]
    $region53: #{aurl_forward.1} parent=1 // pred_fallthru
      _
    // Predicated region
    $region54: #{aurl_forward.1} parent=1 // pred_check
      _
    $region55: #{aurl_forward.1} parent=1 // pred_check_branch
      %160 = sbr.rel (0) target = $region57
    $region56: #{aurl_forward.1} parent=1 // pred_region
      %s162 = ssub.s32 32, 32
      %163 = vsyncadd [#allocation22], %s162
      %s165 = sshll.u32 [#allocation23], 4
      %s166 = int_to_ptr.vmem [resolvable:$true] %s165
      %168 = dma.hbm_to_vmem [thread:$0]  %s13, 32, %s166, [#allocation22]
    $region57: #{aurl_forward.1} parent=1 // pred_fallthru
      _
    // Predicated region
    $region58: #{aurl_forward.1} parent=1 // pred_check
      _
    $region59: #{aurl_forward.1} parent=1 // pred_check_branch
      %170 = sbr.rel (0) target = $region61
    $region60: #{aurl_forward.1} parent=1 // pred_region
      %s172 = ssub.s32 32, 32
      %173 = vsyncadd [#allocation25], %s172
      %s175 = sshll.u32 [#allocation24], 4
      %s176 = int_to_ptr.vmem [resolvable:$true] %s175
      %178 = dma.hbm_to_vmem [thread:$0]  %s14, 32, %s176, [#allocation25]
    $region61: #{aurl_forward.1} parent=1 // pred_fallthru
      _
    // Predicated region
    $region62: #{aurl_forward.1} parent=1 // pred_check
      _
    $region63: #{aurl_forward.1} parent=1 // pred_check_branch
      %180 = sbr.rel (0) target = $region65
    $region64: #{aurl_forward.1} parent=1 // pred_region
      %181 = dma.done [#allocation4], 65536
    $region65: #{aurl_forward.1} parent=1 // pred_fallthru
      _
    // Predicated region
    $region66: #{aurl_forward.1} parent=1 // pred_check
      _
    $region67: #{aurl_forward.1} parent=1 // pred_check_branch
      %183 = sbr.rel (0) target = $region69
    $region68: #{aurl_forward.1} parent=1 // pred_region
      %184 = dma.done [#allocation7], 64
    $region69: #{aurl_forward.1} parent=1 // pred_fallthru
      _
    // Predicated region
    $region70: #{aurl_forward.1} parent=1 // pred_check
      _
    $region71: #{aurl_forward.1} parent=1 // pred_check_branch
      %186 = sbr.rel (0) target = $region73
    $region72: #{aurl_forward.1} parent=1 // pred_region
      %187 = dma.done [#allocation7], 4096
    $region73: #{aurl_forward.1} parent=1 // pred_fallthru
      _
    // Predicated region
    $region74: #{aurl_forward.1} parent=1 // pred_check
      _
    $region75: #{aurl_forward.1} parent=1 // pred_check_branch
      %189 = sbr.rel (0) target = $region77
    $region76: #{aurl_forward.1} parent=1 // pred_region
      %190 = dma.done [#allocation10], 32
    $region77: #{aurl_forward.1} parent=1 // pred_fallthru
      _
    // Predicated region
    $region78: #{aurl_forward.1} parent=1 // pred_check
      _
    $region79: #{aurl_forward.1} parent=1 // pred_check_branch
      %192 = sbr.rel (0) target = $region81
    $region80: #{aurl_forward.1} parent=1 // pred_region
      %193 = dma.done [#allocation10], 32
    $region81: #{aurl_forward.1} parent=1 // pred_fallthru
      _
    // Predicated region
    $region82: #{aurl_forward.1} parent=1 // pred_check
      _
    $region83: #{aurl_forward.1} parent=1 // pred_check_branch
      %195 = sbr.rel (0) target = $region85
    $region84: #{aurl_forward.1} parent=1 // pred_region
      %196 = dma.done [#allocation13], 32
    $region85: #{aurl_forward.1} parent=1 // pred_fallthru
      _
    // Predicated region
    $region86: #{aurl_forward.1} parent=1 // pred_check
      _
    $region87: #{aurl_forward.1} parent=1 // pred_check_branch
      %198 = sbr.rel (0) target = $region89
    $region88: #{aurl_forward.1} parent=1 // pred_region
      %199 = dma.done [#allocation13], 8192
    $region89: #{aurl_forward.1} parent=1 // pred_fallthru
      _
    // Predicated region
    $region90: #{aurl_forward.1} parent=1 // pred_check
      _
    $region91: #{aurl_forward.1} parent=1 // pred_check_branch
      %201 = sbr.rel (0) target = $region93
    $region92: #{aurl_forward.1} parent=1 // pred_region
      %202 = dma.done [#allocation16], 32
    $region93: #{aurl_forward.1} parent=1 // pred_fallthru
      _
    // Predicated region
    $region94: #{aurl_forward.1} parent=1 // pred_check
      _
    $region95: #{aurl_forward.1} parent=1 // pred_check_branch
      %204 = sbr.rel (0) target = $region97
    $region96: #{aurl_forward.1} parent=1 // pred_region
      %205 = dma.done [#allocation16], 32
    $region97: #{aurl_forward.1} parent=1 // pred_fallthru
      _
    // Predicated region
    $region98: #{aurl_forward.1} parent=1 // pred_check
      _
    $region99: #{aurl_forward.1} parent=1 // pred_check_branch
      %207 = sbr.rel (0) target = $region101
    $region100: #{aurl_forward.1} parent=1 // pred_region
      %208 = dma.done [#allocation19], 32
    $region101: #{aurl_forward.1} parent=1 // pred_fallthru
      _
    // Predicated region
    $region102: #{aurl_forward.1} parent=1 // pred_check
      _
    $region103: #{aurl_forward.1} parent=1 // pred_check_branch
      %210 = sbr.rel (0) target = $region105
    $region104: #{aurl_forward.1} parent=1 // pred_region
      %211 = dma.done [#allocation19], 8192
    $region105: #{aurl_forward.1} parent=1 // pred_fallthru
      _
    // Predicated region
    $region106: #{aurl_forward.1} parent=1 // pred_check
      _
    $region107: #{aurl_forward.1} parent=1 // pred_check_branch
      %213 = sbr.rel (0) target = $region109
    $region108: #{aurl_forward.1} parent=1 // pred_region
      %214 = dma.done [#allocation22], 32
    $region109: #{aurl_forward.1} parent=1 // pred_fallthru
      _
    // Predicated region
    $region110: #{aurl_forward.1} parent=1 // pred_check
      _
    $region111: #{aurl_forward.1} parent=1 // pred_check_branch
      %216 = sbr.rel (0) target = $region113
    $region112: #{aurl_forward.1} parent=1 // pred_region
      %217 = dma.done [#allocation22], 32
    $region113: #{aurl_forward.1} parent=1 // pred_fallthru
      _
    // Predicated region
    $region114: #{aurl_forward.1} parent=1 // pred_check
      _
    $region115: #{aurl_forward.1} parent=1 // pred_check_branch
      %219 = sbr.rel (0) target = $region117
    $region116: #{aurl_forward.1} parent=1 // pred_region
      %220 = dma.done [#allocation25], 32
    $region117: #{aurl_forward.1} parent=1 // pred_fallthru
      _
    %v221 = vld [vmem:[%s0] sm:$0xff]
    %v222 = vld [vmem:[%s0 + $0x8] sm:$0xff]
    %v223 = vld [vmem:[#allocation3] sm:$0xff]
    %v224 = vld [vmem:[#allocation3 + $0x20] sm:$0xff]
    %v225 = vld [vmem:[#allocation3 + $0x40] sm:$0xff]
    %v226 = vld [vmem:[#allocation3 + $0x60] sm:$0xff]
    %v227 = vld [vmem:[#allocation3 + $0x80] sm:$0xff]
    %v228 = vld [vmem:[#allocation3 + $0xa0] sm:$0xff]
    %v229 = vld [vmem:[#allocation3 + $0xc0] sm:$0xff]
    %v230 = vld [vmem:[#allocation3 + $0xe0] sm:$0xff]
    %v231 = vld [vmem:[#allocation3 + $0x100] sm:$0xff]
    %v232 = vld [vmem:[#allocation3 + $0x120] sm:$0xff]
    %v233 = vld [vmem:[#allocation3 + $0x140] sm:$0xff]
    %v234 = vld [vmem:[#allocation3 + $0x160] sm:$0xff]
    %v235 = vld [vmem:[#allocation3 + $0x180] sm:$0xff]
    %v236 = vld [vmem:[#allocation3 + $0x1a0] sm:$0xff]
    %v237 = vld [vmem:[#allocation3 + $0x1c0] sm:$0xff]
    %v238 = vld [vmem:[#allocation3 + $0x1e0] sm:$0xff]
    %v239 = vld [vmem:[#allocation3 + $0x200] sm:$0xff]
    %v240 = vld [vmem:[#allocation3 + $0x220] sm:$0xff]
    %v241 = vld [vmem:[#allocation3 + $0x240] sm:$0xff]
    %v242 = vld [vmem:[#allocation3 + $0x260] sm:$0xff]
    %v243 = vld [vmem:[#allocation3 + $0x280] sm:$0xff]
    %v244 = vld [vmem:[#allocation3 + $0x2a0] sm:$0xff]
    %v245 = vld [vmem:[#allocation3 + $0x2c0] sm:$0xff]
    %v246 = vld [vmem:[#allocation3 + $0x2e0] sm:$0xff]
    %v247 = vld [vmem:[#allocation3 + $0x300] sm:$0xff]
    %v248 = vld [vmem:[#allocation3 + $0x320] sm:$0xff]
    %v249 = vld [vmem:[#allocation3 + $0x340] sm:$0xff]
    %v250 = vld [vmem:[#allocation3 + $0x360] sm:$0xff]
    %v251 = vld [vmem:[#allocation3 + $0x380] sm:$0xff]
    %v252 = vld [vmem:[#allocation3 + $0x3a0] sm:$0xff]
    %v253 = vld [vmem:[#allocation3 + $0x3c0] sm:$0xff]
    %v254 = vld [vmem:[#allocation3 + $0x3e0] sm:$0xff]
    %v255 = vld [vmem:[#allocation3 + $0x400] sm:$0xff]
    %v256 = vld [vmem:[#allocation3 + $0x420] sm:$0xff]
    %v257 = vld [vmem:[#allocation3 + $0x440] sm:$0xff]
    %v258 = vld [vmem:[#allocation3 + $0x460] sm:$0xff]
    %v259 = vld [vmem:[#allocation3 + $0x480] sm:$0xff]
    %v260 = vld [vmem:[#allocation3 + $0x4a0] sm:$0xff]
    %v261 = vld [vmem:[#allocation3 + $0x4c0] sm:$0xff]
    %v262 = vld [vmem:[#allocation3 + $0x4e0] sm:$0xff]
    %v263 = vld [vmem:[#allocation3 + $0x500] sm:$0xff]
    %v264 = vld [vmem:[#allocation3 + $0x520] sm:$0xff]
    %v265 = vld [vmem:[#allocation3 + $0x540] sm:$0xff]
    %v266 = vld [vmem:[#allocation3 + $0x560] sm:$0xff]
    %v267 = vld [vmem:[#allocation3 + $0x580] sm:$0xff]
    %v268 = vld [vmem:[#allocation3 + $0x5a0] sm:$0xff]
    %v269 = vld [vmem:[#allocation3 + $0x5c0] sm:$0xff]
    %v270 = vld [vmem:[#allocation3 + $0x5e0] sm:$0xff]
    %v271 = vld [vmem:[#allocation3 + $0x600] sm:$0xff]
    %v272 = vld [vmem:[#allocation3 + $0x620] sm:$0xff]
    %v273 = vld [vmem:[#allocation3 + $0x640] sm:$0xff]
    %v274 = vld [vmem:[#allocation3 + $0x660] sm:$0xff]
    %v275 = vld [vmem:[#allocation3 + $0x680] sm:$0xff]
    %v276 = vld [vmem:[#allocation3 + $0x6a0] sm:$0xff]
    %v277 = vld [vmem:[#allocation3 + $0x6c0] sm:$0xff]
    %v278 = vld [vmem:[#allocation3 + $0x6e0] sm:$0xff]
    %v279 = vld [vmem:[#allocation3 + $0x700] sm:$0xff]
    %v280 = vld [vmem:[#allocation3 + $0x720] sm:$0xff]
    %v281 = vld [vmem:[#allocation3 + $0x740] sm:$0xff]
    %v282 = vld [vmem:[#allocation3 + $0x760] sm:$0xff]
    %v283 = vld [vmem:[#allocation3 + $0x780] sm:$0xff]
    %v284 = vld [vmem:[#allocation3 + $0x7a0] sm:$0xff]
    %v285 = vld [vmem:[#allocation3 + $0x7c0] sm:$0xff]
    %v286 = vld [vmem:[#allocation3 + $0x7e0] sm:$0xff]
    %v287 = vld [vmem:[#allocation3 + $0x800] sm:$0xff]
    %v288 = vld [vmem:[#allocation3 + $0x820] sm:$0xff]
    %v289 = vld [vmem:[#allocation3 + $0x840] sm:$0xff]
    %v290 = vld [vmem:[#allocation3 + $0x860] sm:$0xff]
    %v291 = vld [vmem:[#allocation3 + $0x880] sm:$0xff]
    %v292 = vld [vmem:[#allocation3 + $0x8a0] sm:$0xff]
    %v293 = vld [vmem:[#allocation3 + $0x8c0] sm:$0xff]
    %v294 = vld [vmem:[#allocation3 + $0x8e0] sm:$0xff]
    %v295 = vld [vmem:[#allocation3 + $0x900] sm:$0xff]
    %v296 = vld [vmem:[#allocation3 + $0x920] sm:$0xff]
    %v297 = vld [vmem:[#allocation3 + $0x940] sm:$0xff]
    %v298 = vld [vmem:[#allocation3 + $0x960] sm:$0xff]
    %v299 = vld [vmem:[#allocation3 + $0x980] sm:$0xff]
    %v300 = vld [vmem:[#allocation3 + $0x9a0] sm:$0xff]
    %v301 = vld [vmem:[#allocation3 + $0x9c0] sm:$0xff]
    %v302 = vld [vmem:[#allocation3 + $0x9e0] sm:$0xff]
    %v303 = vld [vmem:[#allocation3 + $0xa00] sm:$0xff]
    %v304 = vld [vmem:[#allocation3 + $0xa20] sm:$0xff]
    %v305 = vld [vmem:[#allocation3 + $0xa40] sm:$0xff]
    %v306 = vld [vmem:[#allocation3 + $0xa60] sm:$0xff]
    %v307 = vld [vmem:[#allocation3 + $0xa80] sm:$0xff]
    %v308 = vld [vmem:[#allocation3 + $0xaa0] sm:$0xff]
    %v309 = vld [vmem:[#allocation3 + $0xac0] sm:$0xff]
    %v310 = vld [vmem:[#allocation3 + $0xae0] sm:$0xff]
    %v311 = vld [vmem:[#allocation3 + $0xb00] sm:$0xff]
    %v312 = vld [vmem:[#allocation3 + $0xb20] sm:$0xff]
    %v313 = vld [vmem:[#allocation3 + $0xb40] sm:$0xff]
    %v314 = vld [vmem:[#allocation3 + $0xb60] sm:$0xff]
    %v315 = vld [vmem:[#allocation3 + $0xb80] sm:$0xff]
    %v316 = vld [vmem:[#allocation3 + $0xba0] sm:$0xff]
    %v317 = vld [vmem:[#allocation3 + $0xbc0] sm:$0xff]
    %v318 = vld [vmem:[#allocation3 + $0xbe0] sm:$0xff]
    %v319 = vld [vmem:[#allocation3 + $0xc00] sm:$0xff]
    %v320 = vld [vmem:[#allocation3 + $0xc20] sm:$0xff]
    %v321 = vld [vmem:[#allocation3 + $0xc40] sm:$0xff]
    %v322 = vld [vmem:[#allocation3 + $0xc60] sm:$0xff]
    %v323 = vld [vmem:[#allocation3 + $0xc80] sm:$0xff]
    %v324 = vld [vmem:[#allocation3 + $0xca0] sm:$0xff]
    %v325 = vld [vmem:[#allocation3 + $0xcc0] sm:$0xff]
    %v326 = vld [vmem:[#allocation3 + $0xce0] sm:$0xff]
    %v327 = vld [vmem:[#allocation3 + $0xd00] sm:$0xff]
    %v328 = vld [vmem:[#allocation3 + $0xd20] sm:$0xff]
    %v329 = vld [vmem:[#allocation3 + $0xd40] sm:$0xff]
    %v330 = vld [vmem:[#allocation3 + $0xd60] sm:$0xff]
    %v331 = vld [vmem:[#allocation3 + $0xd80] sm:$0xff]
    %v332 = vld [vmem:[#allocation3 + $0xda0] sm:$0xff]
    %v333 = vld [vmem:[#allocation3 + $0xdc0] sm:$0xff]
    %v334 = vld [vmem:[#allocation3 + $0xde0] sm:$0xff]
    %v335 = vld [vmem:[#allocation3 + $0xe00] sm:$0xff]
    %v336 = vld [vmem:[#allocation3 + $0xe20] sm:$0xff]
    %v337 = vld [vmem:[#allocation3 + $0xe40] sm:$0xff]
    %v338 = vld [vmem:[#allocation3 + $0xe60] sm:$0xff]
    %v339 = vld [vmem:[#allocation3 + $0xe80] sm:$0xff]
    %v340 = vld [vmem:[#allocation3 + $0xea0] sm:$0xff]
    %v341 = vld [vmem:[#allocation3 + $0xec0] sm:$0xff]
    %v342 = vld [vmem:[#allocation3 + $0xee0] sm:$0xff]
    %v343 = vld [vmem:[#allocation3 + $0xf00] sm:$0xff]
    %v344 = vld [vmem:[#allocation3 + $0xf20] sm:$0xff]
    %v345 = vld [vmem:[#allocation3 + $0xf40] sm:$0xff]
    %v346 = vld [vmem:[#allocation3 + $0xf60] sm:$0xff]
    %v347 = vld [vmem:[#allocation3 + $0xf80] sm:$0xff]
    %v348 = vld [vmem:[#allocation3 + $0xfa0] sm:$0xff]
    %v349 = vld [vmem:[#allocation3 + $0xfc0] sm:$0xff]
    %v350 = vld [vmem:[#allocation3 + $0xfe0] sm:$0xff]
    %v351 = vld [vmem:[#allocation6] sm:$0x1]
    %v353 = vlaneseq
    %v354 = vshrl.u32 %v353, 7
    %v355 = vsub.s32 0, %v354
    %v356 = vrot.slane %v351, %v355
    %v360 = vcombine.high %v221, %v221
    %v362 = vunpack.c.l.s4 1983009808
    %v363 = vunpack.c.0.s8 %v362
    %v364 = vlaneseq
    %v365 = vshrl.u32 %v364, 7
    %v366 = vsub.s32 %v363, %v365
    %v367 = vrot.slane %v221, %v366
    %v369 = vunpack.c.l.s4 1983009808
    %v370 = vunpack.c.0.s8 %v369
    %v371 = vlaneseq
    %v372 = vshrl.u32 %v371, 7
    %v373 = vsub.s32 %v370, %v372
    %v374 = vrot.slane %v360, %v373
    %v375 = vcombine.high %v367, %v367
    %v376 = vcombine.high %v374, %v374
    %v377 = vcombine.high %v222, %v222
    %v379 = vunpack.c.l.s4 1983009808
    %v380 = vunpack.c.0.s8 %v379
    %v381 = vlaneseq
    %v382 = vshrl.u32 %v381, 7
    %v383 = vsub.s32 %v380, %v382
    %v384 = vrot.slane %v222, %v383
    %v386 = vunpack.c.l.s4 1983009808
    %v387 = vunpack.c.0.s8 %v386
    %v388 = vlaneseq
    %v389 = vshrl.u32 %v388, 7
    %v390 = vsub.s32 %v387, %v389
    %v391 = vrot.slane %v377, %v390
    %v392 = vcombine.high %v384, %v384
    %v393 = vcombine.high %v391, %v391
    %402 = vmatprep.subr.mxu0 0.0
    %403 = vmatpush1.msra.mxu0 %v238
    %404 = vmatprep.subr.mxu0 0.0
    %405 = vmatpush1.msra.mxu0 %v237
    %406 = vmatprep.subr.mxu0 0.0
    %407 = vmatpush1.msra.mxu0 %v236
    %408 = vmatprep.subr.mxu0 0.0
    %409 = vmatpush1.msra.mxu0 %v235
    %410 = vmatprep.subr.mxu0 0.0
    %411 = vmatpush1.msra.mxu0 %v234
    %412 = vmatprep.subr.mxu0 0.0
    %413 = vmatpush1.msra.mxu0 %v233
    %414 = vmatprep.subr.mxu0 0.0
    %415 = vmatpush1.msra.mxu0 %v232
    %416 = vmatprep.subr.mxu0 0.0
    %417 = vmatpush1.msra.mxu0 %v231
    %418 = vmatprep.subr.mxu0 0.0
    %419 = vmatpush1.msra.mxu0 %v230
    %420 = vmatprep.subr.mxu0 0.0
    %421 = vmatpush1.msra.mxu0 %v229
    %422 = vmatprep.subr.mxu0 0.0
    %423 = vmatpush1.msra.mxu0 %v228
    %424 = vmatprep.subr.mxu0 0.0
    %425 = vmatpush1.msra.mxu0 %v227
    %426 = vmatprep.subr.mxu0 0.0
    %427 = vmatpush1.msra.mxu0 %v226
    %428 = vmatprep.subr.mxu0 0.0
    %429 = vmatpush1.msra.mxu0 %v225
    %430 = vmatprep.subr.mxu0 0.0
    %431 = vmatpush1.msra.mxu0 %v224
    %432 = vmatprep.subr.mxu0 0.0
    %433 = vmatpush1.msra.mxu0 %v223
    %434 = vmatprep.subr.mxu0 0.0
    %435 = vmatpush2.msra.mxu0 %v254
    %436 = vmatprep.subr.mxu0 0.0
    %437 = vmatpush2.msra.mxu0 %v253
    %438 = vmatprep.subr.mxu0 0.0
    %439 = vmatpush2.msra.mxu0 %v252
    %440 = vmatprep.subr.mxu0 0.0
    %441 = vmatpush2.msra.mxu0 %v251
    %442 = vmatprep.subr.mxu0 0.0
    %443 = vmatpush2.msra.mxu0 %v250
    %444 = vmatprep.subr.mxu0 0.0
    %445 = vmatpush2.msra.mxu0 %v249
    %446 = vmatprep.subr.mxu0 0.0
    %447 = vmatpush2.msra.mxu0 %v248
    %448 = vmatprep.subr.mxu0 0.0
    %449 = vmatpush2.msra.mxu0 %v247
    %450 = vmatprep.subr.mxu0 0.0
    %451 = vmatpush2.msra.mxu0 %v246
    %452 = vmatprep.subr.mxu0 0.0
    %453 = vmatpush2.msra.mxu0 %v245
    %454 = vmatprep.subr.mxu0 0.0
    %455 = vmatpush2.msra.mxu0 %v244
    %456 = vmatprep.subr.mxu0 0.0
    %457 = vmatpush2.msra.mxu0 %v243
    %458 = vmatprep.subr.mxu0 0.0
    %459 = vmatpush2.msra.mxu0 %v242
    %460 = vmatprep.subr.mxu0 0.0
    %461 = vmatpush2.msra.mxu0 %v241
    %462 = vmatprep.subr.mxu0 0.0
    %463 = vmatpush2.msra.mxu0 %v240
    %464 = vmatprep.subr.mxu0 0.0
    %465 = vmatpush2.msra.mxu0 %v239
    %466 = vmatprep.mubr.f32.mxu0 %v375
    %467 = vmatmul.mubr.f32.gmra.mxu0 %v367
    %v468 = vpop.f32.mrf.mxu0
    %v469 = vadd.f32 %v356, %v468
    %v470 = vpop.f32.mrf.mxu0
    %471 = vdwg.mxu0
    %472 = vmatprep.subr.mxu0 0.0
    %473 = vmatpush1.msra.mxu0 %v270
    %474 = vmatprep.subr.mxu0 0.0
    %475 = vmatpush1.msra.mxu0 %v269
    %476 = vmatprep.subr.mxu0 0.0
    %477 = vmatpush1.msra.mxu0 %v268
    %478 = vmatprep.subr.mxu0 0.0
    %479 = vmatpush1.msra.mxu0 %v267
    %480 = vmatprep.subr.mxu0 0.0
    %481 = vmatpush1.msra.mxu0 %v266
    %482 = vmatprep.subr.mxu0 0.0
    %483 = vmatpush1.msra.mxu0 %v265
    %484 = vmatprep.subr.mxu0 0.0
    %485 = vmatpush1.msra.mxu0 %v264
    %486 = vmatprep.subr.mxu0 0.0
    %487 = vmatpush1.msra.mxu0 %v263
    %488 = vmatprep.subr.mxu0 0.0
    %489 = vmatpush1.msra.mxu0 %v262
    %490 = vmatprep.subr.mxu0 0.0
    %491 = vmatpush1.msra.mxu0 %v261
    %492 = vmatprep.subr.mxu0 0.0
    %493 = vmatpush1.msra.mxu0 %v260
    %494 = vmatprep.subr.mxu0 0.0
    %495 = vmatpush1.msra.mxu0 %v259
    %496 = vmatprep.subr.mxu0 0.0
    %497 = vmatpush1.msra.mxu0 %v258
    %498 = vmatprep.subr.mxu0 0.0
    %499 = vmatpush1.msra.mxu0 %v257
    %500 = vmatprep.subr.mxu0 0.0
    %501 = vmatpush1.msra.mxu0 %v256
    %502 = vmatprep.subr.mxu0 0.0
    %503 = vmatpush1.msra.mxu0 %v255
    %504 = vmatprep.subr.mxu0 0.0
    %505 = vmatpush2.msra.mxu0 %v286
    %506 = vmatprep.subr.mxu0 0.0
    %507 = vmatpush2.msra.mxu0 %v285
    %508 = vmatprep.subr.mxu0 0.0
    %509 = vmatpush2.msra.mxu0 %v284
    %510 = vmatprep.subr.mxu0 0.0
    %511 = vmatpush2.msra.mxu0 %v283
    %512 = vmatprep.subr.mxu0 0.0
    %513 = vmatpush2.msra.mxu0 %v282
    %514 = vmatprep.subr.mxu0 0.0
    %515 = vmatpush2.msra.mxu0 %v281
    %516 = vmatprep.subr.mxu0 0.0
    %517 = vmatpush2.msra.mxu0 %v280
    %518 = vmatprep.subr.mxu0 0.0
    %519 = vmatpush2.msra.mxu0 %v279
    %520 = vmatprep.subr.mxu0 0.0
    %521 = vmatpush2.msra.mxu0 %v278
    %522 = vmatprep.subr.mxu0 0.0
    %523 = vmatpush2.msra.mxu0 %v277
    %524 = vmatprep.subr.mxu0 0.0
    %525 = vmatpush2.msra.mxu0 %v276
    %526 = vmatprep.subr.mxu0 0.0
    %527 = vmatpush2.msra.mxu0 %v275
    %528 = vmatprep.subr.mxu0 0.0
    %529 = vmatpush2.msra.mxu0 %v274
    %530 = vmatprep.subr.mxu0 0.0
    %531 = vmatpush2.msra.mxu0 %v273
    %532 = vmatprep.subr.mxu0 0.0
    %533 = vmatpush2.msra.mxu0 %v272
    %534 = vmatprep.subr.mxu0 0.0
    %535 = vmatpush2.msra.mxu0 %v271
    %536 = vmatprep.mubr.f32.mxu0 %v376
    %537 = vmatmul.mubr.f32.gmra.mxu0 %v374
    %v538 = vpop.f32.mrf.mxu0
    %v539 = vadd.f32 %v469, %v538
    %v540 = vpop.f32.mrf.mxu0
    %541 = vdwg.mxu0
    %542 = vmatprep.subr.mxu0 0.0
    %543 = vmatpush1.msra.mxu0 %v302
    %544 = vmatprep.subr.mxu0 0.0
    %545 = vmatpush1.msra.mxu0 %v301
    %546 = vmatprep.subr.mxu0 0.0
    %547 = vmatpush1.msra.mxu0 %v300
    %548 = vmatprep.subr.mxu0 0.0
    %549 = vmatpush1.msra.mxu0 %v299
    %550 = vmatprep.subr.mxu0 0.0
    %551 = vmatpush1.msra.mxu0 %v298
    %552 = vmatprep.subr.mxu0 0.0
    %553 = vmatpush1.msra.mxu0 %v297
    %554 = vmatprep.subr.mxu0 0.0
    %555 = vmatpush1.msra.mxu0 %v296
    %556 = vmatprep.subr.mxu0 0.0
    %557 = vmatpush1.msra.mxu0 %v295
    %558 = vmatprep.subr.mxu0 0.0
    %559 = vmatpush1.msra.mxu0 %v294
    %560 = vmatprep.subr.mxu0 0.0
    %561 = vmatpush1.msra.mxu0 %v293
    %562 = vmatprep.subr.mxu0 0.0
    %563 = vmatpush1.msra.mxu0 %v292
    %564 = vmatprep.subr.mxu0 0.0
    %565 = vmatpush1.msra.mxu0 %v291
    %566 = vmatprep.subr.mxu0 0.0
    %567 = vmatpush1.msra.mxu0 %v290
    %568 = vmatprep.subr.mxu0 0.0
    %569 = vmatpush1.msra.mxu0 %v289
    %570 = vmatprep.subr.mxu0 0.0
    %571 = vmatpush1.msra.mxu0 %v288
    %572 = vmatprep.subr.mxu0 0.0
    %573 = vmatpush1.msra.mxu0 %v287
    %574 = vmatprep.subr.mxu0 0.0
    %575 = vmatpush2.msra.mxu0 %v318
    %576 = vmatprep.subr.mxu0 0.0
    %577 = vmatpush2.msra.mxu0 %v317
    %578 = vmatprep.subr.mxu0 0.0
    %579 = vmatpush2.msra.mxu0 %v316
    %580 = vmatprep.subr.mxu0 0.0
    %581 = vmatpush2.msra.mxu0 %v315
    %582 = vmatprep.subr.mxu0 0.0
    %583 = vmatpush2.msra.mxu0 %v314
    %584 = vmatprep.subr.mxu0 0.0
    %585 = vmatpush2.msra.mxu0 %v313
    %586 = vmatprep.subr.mxu0 0.0
    %587 = vmatpush2.msra.mxu0 %v312
    %588 = vmatprep.subr.mxu0 0.0
    %589 = vmatpush2.msra.mxu0 %v311
    %590 = vmatprep.subr.mxu0 0.0
    %591 = vmatpush2.msra.mxu0 %v310
    %592 = vmatprep.subr.mxu0 0.0
    %593 = vmatpush2.msra.mxu0 %v309
    %594 = vmatprep.subr.mxu0 0.0
    %595 = vmatpush2.msra.mxu0 %v308
    %596 = vmatprep.subr.mxu0 0.0
    %597 = vmatpush2.msra.mxu0 %v307
    %598 = vmatprep.subr.mxu0 0.0
    %599 = vmatpush2.msra.mxu0 %v306
    %600 = vmatprep.subr.mxu0 0.0
    %601 = vmatpush2.msra.mxu0 %v305
    %602 = vmatprep.subr.mxu0 0.0
    %603 = vmatpush2.msra.mxu0 %v304
    %604 = vmatprep.subr.mxu0 0.0
    %605 = vmatpush2.msra.mxu0 %v303
    %606 = vmatprep.mubr.f32.mxu0 %v392
    %607 = vmatmul.mubr.f32.gmra.mxu0 %v384
    %v608 = vpop.f32.mrf.mxu0
    %v609 = vadd.f32 %v539, %v608
    %v610 = vpop.f32.mrf.mxu0
    %611 = vdwg.mxu0
    %612 = vmatprep.subr.mxu0 0.0
    %613 = vmatpush1.msra.mxu0 %v334
    %614 = vmatprep.subr.mxu0 0.0
    %615 = vmatpush1.msra.mxu0 %v333
    %616 = vmatprep.subr.mxu0 0.0
    %617 = vmatpush1.msra.mxu0 %v332
    %618 = vmatprep.subr.mxu0 0.0
    %619 = vmatpush1.msra.mxu0 %v331
    %620 = vmatprep.subr.mxu0 0.0
    %621 = vmatpush1.msra.mxu0 %v330
    %622 = vmatprep.subr.mxu0 0.0
    %623 = vmatpush1.msra.mxu0 %v329
    %624 = vmatprep.subr.mxu0 0.0
    %625 = vmatpush1.msra.mxu0 %v328
    %626 = vmatprep.subr.mxu0 0.0
    %627 = vmatpush1.msra.mxu0 %v327
    %628 = vmatprep.subr.mxu0 0.0
    %629 = vmatpush1.msra.mxu0 %v326
    %630 = vmatprep.subr.mxu0 0.0
    %631 = vmatpush1.msra.mxu0 %v325
    %632 = vmatprep.subr.mxu0 0.0
    %633 = vmatpush1.msra.mxu0 %v324
    %634 = vmatprep.subr.mxu0 0.0
    %635 = vmatpush1.msra.mxu0 %v323
    %636 = vmatprep.subr.mxu0 0.0
    %637 = vmatpush1.msra.mxu0 %v322
    %638 = vmatprep.subr.mxu0 0.0
    %639 = vmatpush1.msra.mxu0 %v321
    %640 = vmatprep.subr.mxu0 0.0
    %641 = vmatpush1.msra.mxu0 %v320
    %642 = vmatprep.subr.mxu0 0.0
    %643 = vmatpush1.msra.mxu0 %v319
    %644 = vmatprep.subr.mxu0 0.0
    %645 = vmatpush2.msra.mxu0 %v350
    %646 = vmatprep.subr.mxu0 0.0
    %647 = vmatpush2.msra.mxu0 %v349
    %648 = vmatprep.subr.mxu0 0.0
    %649 = vmatpush2.msra.mxu0 %v348
    %650 = vmatprep.subr.mxu0 0.0
    %651 = vmatpush2.msra.mxu0 %v347
    %652 = vmatprep.subr.mxu0 0.0
    %653 = vmatpush2.msra.mxu0 %v346
    %654 = vmatprep.subr.mxu0 0.0
    %655 = vmatpush2.msra.mxu0 %v345
    %656 = vmatprep.subr.mxu0 0.0
    %657 = vmatpush2.msra.mxu0 %v344
    %658 = vmatprep.subr.mxu0 0.0
    %659 = vmatpush2.msra.mxu0 %v343
    %660 = vmatprep.subr.mxu0 0.0
    %661 = vmatpush2.msra.mxu0 %v342
    %662 = vmatprep.subr.mxu0 0.0
    %663 = vmatpush2.msra.mxu0 %v341
    %664 = vmatprep.subr.mxu0 0.0
    %665 = vmatpush2.msra.mxu0 %v340
    %666 = vmatprep.subr.mxu0 0.0
    %667 = vmatpush2.msra.mxu0 %v339
    %668 = vmatprep.subr.mxu0 0.0
    %669 = vmatpush2.msra.mxu0 %v338
    %670 = vmatprep.subr.mxu0 0.0
    %671 = vmatpush2.msra.mxu0 %v337
    %672 = vmatprep.subr.mxu0 0.0
    %673 = vmatpush2.msra.mxu0 %v336
    %674 = vmatprep.subr.mxu0 0.0
    %675 = vmatpush2.msra.mxu0 %v335
    %676 = vmatprep.mubr.f32.mxu0 %v393
    %677 = vmatmul.mubr.f32.gmra.mxu0 %v391
    %v678 = vpop.f32.mrf.mxu0
    %v679 = vadd.f32 %v609, %v678
    %v680 = vpop.f32.mrf.mxu0
    %681 = vdwg.mxu0
    %682 = vst [vmem:[#allocation2] sm:$0x3] %v679
    %v683 = vld [vmem:[#allocation3 + $0x8] sm:$0xff]
    %v684 = vld [vmem:[#allocation3 + $0x28] sm:$0xff]
    %v685 = vld [vmem:[#allocation3 + $0x48] sm:$0xff]
    %v686 = vld [vmem:[#allocation3 + $0x68] sm:$0xff]
    %v687 = vld [vmem:[#allocation3 + $0x88] sm:$0xff]
    %v688 = vld [vmem:[#allocation3 + $0xa8] sm:$0xff]
    %v689 = vld [vmem:[#allocation3 + $0xc8] sm:$0xff]
    %v690 = vld [vmem:[#allocation3 + $0xe8] sm:$0xff]
    %v691 = vld [vmem:[#allocation3 + $0x108] sm:$0xff]
    %v692 = vld [vmem:[#allocation3 + $0x128] sm:$0xff]
    %v693 = vld [vmem:[#allocation3 + $0x148] sm:$0xff]
    %v694 = vld [vmem:[#allocation3 + $0x168] sm:$0xff]
    %v695 = vld [vmem:[#allocation3 + $0x188] sm:$0xff]
    %v696 = vld [vmem:[#allocation3 + $0x1a8] sm:$0xff]
    %v697 = vld [vmem:[#allocation3 + $0x1c8] sm:$0xff]
    %v698 = vld [vmem:[#allocation3 + $0x1e8] sm:$0xff]
    %v699 = vld [vmem:[#allocation3 + $0x208] sm:$0xff]
    %v700 = vld [vmem:[#allocation3 + $0x228] sm:$0xff]
    %v701 = vld [vmem:[#allocation3 + $0x248] sm:$0xff]
    %v702 = vld [vmem:[#allocation3 + $0x268] sm:$0xff]
    %v703 = vld [vmem:[#allocation3 + $0x288] sm:$0xff]
    %v704 = vld [vmem:[#allocation3 + $0x2a8] sm:$0xff]
    %v705 = vld [vmem:[#allocation3 + $0x2c8] sm:$0xff]
    %v706 = vld [vmem:[#allocation3 + $0x2e8] sm:$0xff]
    %v707 = vld [vmem:[#allocation3 + $0x308] sm:$0xff]
    %v708 = vld [vmem:[#allocation3 + $0x328] sm:$0xff]
    %v709 = vld [vmem:[#allocation3 + $0x348] sm:$0xff]
    %v710 = vld [vmem:[#allocation3 + $0x368] sm:$0xff]
    %v711 = vld [vmem:[#allocation3 + $0x388] sm:$0xff]
    %v712 = vld [vmem:[#allocation3 + $0x3a8] sm:$0xff]
    %v713 = vld [vmem:[#allocation3 + $0x3c8] sm:$0xff]
    %v714 = vld [vmem:[#allocation3 + $0x3e8] sm:$0xff]
    %v715 = vld [vmem:[#allocation3 + $0x408] sm:$0xff]
    %v716 = vld [vmem:[#allocation3 + $0x428] sm:$0xff]
    %v717 = vld [vmem:[#allocation3 + $0x448] sm:$0xff]
    %v718 = vld [vmem:[#allocation3 + $0x468] sm:$0xff]
    %v719 = vld [vmem:[#allocation3 + $0x488] sm:$0xff]
    %v720 = vld [vmem:[#allocation3 + $0x4a8] sm:$0xff]
    %v721 = vld [vmem:[#allocation3 + $0x4c8] sm:$0xff]
    %v722 = vld [vmem:[#allocation3 + $0x4e8] sm:$0xff]
    %v723 = vld [vmem:[#allocation3 + $0x508] sm:$0xff]
    %v724 = vld [vmem:[#allocation3 + $0x528] sm:$0xff]
    %v725 = vld [vmem:[#allocation3 + $0x548] sm:$0xff]
    %v726 = vld [vmem:[#allocation3 + $0x568] sm:$0xff]
    %v727 = vld [vmem:[#allocation3 + $0x588] sm:$0xff]
    %v728 = vld [vmem:[#allocation3 + $0x5a8] sm:$0xff]
    %v729 = vld [vmem:[#allocation3 + $0x5c8] sm:$0xff]
    %v730 = vld [vmem:[#allocation3 + $0x5e8] sm:$0xff]
    %v731 = vld [vmem:[#allocation3 + $0x608] sm:$0xff]
    %v732 = vld [vmem:[#allocation3 + $0x628] sm:$0xff]
    %v733 = vld [vmem:[#allocation3 + $0x648] sm:$0xff]
    %v734 = vld [vmem:[#allocation3 + $0x668] sm:$0xff]
    %v735 = vld [vmem:[#allocation3 + $0x688] sm:$0xff]
    %v736 = vld [vmem:[#allocation3 + $0x6a8] sm:$0xff]
    %v737 = vld [vmem:[#allocation3 + $0x6c8] sm:$0xff]
    %v738 = vld [vmem:[#allocation3 + $0x6e8] sm:$0xff]
    %v739 = vld [vmem:[#allocation3 + $0x708] sm:$0xff]
    %v740 = vld [vmem:[#allocation3 + $0x728] sm:$0xff]
    %v741 = vld [vmem:[#allocation3 + $0x748] sm:$0xff]
    %v742 = vld [vmem:[#allocation3 + $0x768] sm:$0xff]
    %v743 = vld [vmem:[#allocation3 + $0x788] sm:$0xff]
    %v744 = vld [vmem:[#allocation3 + $0x7a8] sm:$0xff]
    %v745 = vld [vmem:[#allocation3 + $0x7c8] sm:$0xff]
    %v746 = vld [vmem:[#allocation3 + $0x7e8] sm:$0xff]
    %v747 = vld [vmem:[#allocation3 + $0x808] sm:$0xff]
    %v748 = vld [vmem:[#allocation3 + $0x828] sm:$0xff]
    %v749 = vld [vmem:[#allocation3 + $0x848] sm:$0xff]
    %v750 = vld [vmem:[#allocation3 + $0x868] sm:$0xff]
    %v751 = vld [vmem:[#allocation3 + $0x888] sm:$0xff]
    %v752 = vld [vmem:[#allocation3 + $0x8a8] sm:$0xff]
    %v753 = vld [vmem:[#allocation3 + $0x8c8] sm:$0xff]
    %v754 = vld [vmem:[#allocation3 + $0x8e8] sm:$0xff]
    %v755 = vld [vmem:[#allocation3 + $0x908] sm:$0xff]
    %v756 = vld [vmem:[#allocation3 + $0x928] sm:$0xff]
    %v757 = vld [vmem:[#allocation3 + $0x948] sm:$0xff]
    %v758 = vld [vmem:[#allocation3 + $0x968] sm:$0xff]
    %v759 = vld [vmem:[#allocation3 + $0x988] sm:$0xff]
    %v760 = vld [vmem:[#allocation3 + $0x9a8] sm:$0xff]
    %v761 = vld [vmem:[#allocation3 + $0x9c8] sm:$0xff]
    %v762 = vld [vmem:[#allocation3 + $0x9e8] sm:$0xff]
    %v763 = vld [vmem:[#allocation3 + $0xa08] sm:$0xff]
    %v764 = vld [vmem:[#allocation3 + $0xa28] sm:$0xff]
    %v765 = vld [vmem:[#allocation3 + $0xa48] sm:$0xff]
    %v766 = vld [vmem:[#allocation3 + $0xa68] sm:$0xff]
    %v767 = vld [vmem:[#allocation3 + $0xa88] sm:$0xff]
    %v768 = vld [vmem:[#allocation3 + $0xaa8] sm:$0xff]
    %v769 = vld [vmem:[#allocation3 + $0xac8] sm:$0xff]
    %v770 = vld [vmem:[#allocation3 + $0xae8] sm:$0xff]
    %v771 = vld [vmem:[#allocation3 + $0xb08] sm:$0xff]
    %v772 = vld [vmem:[#allocation3 + $0xb28] sm:$0xff]
    %v773 = vld [vmem:[#allocation3 + $0xb48] sm:$0xff]
    %v774 = vld [vmem:[#allocation3 + $0xb68] sm:$0xff]
    %v775 = vld [vmem:[#allocation3 + $0xb88] sm:$0xff]
    %v776 = vld [vmem:[#allocation3 + $0xba8] sm:$0xff]
    %v777 = vld [vmem:[#allocation3 + $0xbc8] sm:$0xff]
    %v778 = vld [vmem:[#allocation3 + $0xbe8] sm:$0xff]
    %v779 = vld [vmem:[#allocation3 + $0xc08] sm:$0xff]
    %v780 = vld [vmem:[#allocation3 + $0xc28] sm:$0xff]
    %v781 = vld [vmem:[#allocation3 + $0xc48] sm:$0xff]
    %v782 = vld [vmem:[#allocation3 + $0xc68] sm:$0xff]
    %v783 = vld [vmem:[#allocation3 + $0xc88] sm:$0xff]
    %v784 = vld [vmem:[#allocation3 + $0xca8] sm:$0xff]
    %v785 = vld [vmem:[#allocation3 + $0xcc8] sm:$0xff]
    %v786 = vld [vmem:[#allocation3 + $0xce8] sm:$0xff]
    %v787 = vld [vmem:[#allocation3 + $0xd08] sm:$0xff]
    %v788 = vld [vmem:[#allocation3 + $0xd28] sm:$0xff]
    %v789 = vld [vmem:[#allocation3 + $0xd48] sm:$0xff]
    %v790 = vld [vmem:[#allocation3 + $0xd68] sm:$0xff]
    %v791 = vld [vmem:[#allocation3 + $0xd88] sm:$0xff]
    %v792 = vld [vmem:[#allocation3 + $0xda8] sm:$0xff]
    %v793 = vld [vmem:[#allocation3 + $0xdc8] sm:$0xff]
    %v794 = vld [vmem:[#allocation3 + $0xde8] sm:$0xff]
    %v795 = vld [vmem:[#allocation3 + $0xe08] sm:$0xff]
    %v796 = vld [vmem:[#allocation3 + $0xe28] sm:$0xff]
    %v797 = vld [vmem:[#allocation3 + $0xe48] sm:$0xff]
    %v798 = vld [vmem:[#allocation3 + $0xe68] sm:$0xff]
    %v799 = vld [vmem:[#allocation3 + $0xe88] sm:$0xff]
    %v800 = vld [vmem:[#allocation3 + $0xea8] sm:$0xff]
    %v801 = vld [vmem:[#allocation3 + $0xec8] sm:$0xff]
    %v802 = vld [vmem:[#allocation3 + $0xee8] sm:$0xff]
    %v803 = vld [vmem:[#allocation3 + $0xf08] sm:$0xff]
    %v804 = vld [vmem:[#allocation3 + $0xf28] sm:$0xff]
    %v805 = vld [vmem:[#allocation3 + $0xf48] sm:$0xff]
    %v806 = vld [vmem:[#allocation3 + $0xf68] sm:$0xff]
    %v807 = vld [vmem:[#allocation3 + $0xf88] sm:$0xff]
    %v808 = vld [vmem:[#allocation3 + $0xfa8] sm:$0xff]
    %v809 = vld [vmem:[#allocation3 + $0xfc8] sm:$0xff]
    %v810 = vld [vmem:[#allocation3 + $0xfe8] sm:$0xff]
    %v811 = vld [vmem:[#allocation6 + $0x1] sm:$0x1]
    %v813 = vlaneseq
    %v814 = vshrl.u32 %v813, 7
    %v815 = vsub.s32 0, %v814
    %v816 = vrot.slane %v811, %v815
    %818 = vmatprep.subr.mxu0 0.0
    %819 = vmatpush1.msra.mxu0 %v698
    %820 = vmatprep.subr.mxu0 0.0
    %821 = vmatpush1.msra.mxu0 %v697
    %822 = vmatprep.subr.mxu0 0.0
    %823 = vmatpush1.msra.mxu0 %v696
    %824 = vmatprep.subr.mxu0 0.0
    %825 = vmatpush1.msra.mxu0 %v695
    %826 = vmatprep.subr.mxu0 0.0
    %827 = vmatpush1.msra.mxu0 %v694
    %828 = vmatprep.subr.mxu0 0.0
    %829 = vmatpush1.msra.mxu0 %v693
    %830 = vmatprep.subr.mxu0 0.0
    %831 = vmatpush1.msra.mxu0 %v692
    %832 = vmatprep.subr.mxu0 0.0
    %833 = vmatpush1.msra.mxu0 %v691
    %834 = vmatprep.subr.mxu0 0.0
    %835 = vmatpush1.msra.mxu0 %v690
    %836 = vmatprep.subr.mxu0 0.0
    %837 = vmatpush1.msra.mxu0 %v689
    %838 = vmatprep.subr.mxu0 0.0
    %839 = vmatpush1.msra.mxu0 %v688
    %840 = vmatprep.subr.mxu0 0.0
    %841 = vmatpush1.msra.mxu0 %v687
    %842 = vmatprep.subr.mxu0 0.0
    %843 = vmatpush1.msra.mxu0 %v686
    %844 = vmatprep.subr.mxu0 0.0
    %845 = vmatpush1.msra.mxu0 %v685
    %846 = vmatprep.subr.mxu0 0.0
    %847 = vmatpush1.msra.mxu0 %v684
    %848 = vmatprep.subr.mxu0 0.0
    %849 = vmatpush1.msra.mxu0 %v683
    %850 = vmatprep.subr.mxu0 0.0
    %851 = vmatpush2.msra.mxu0 %v714
    %852 = vmatprep.subr.mxu0 0.0
    %853 = vmatpush2.msra.mxu0 %v713
    %854 = vmatprep.subr.mxu0 0.0
    %855 = vmatpush2.msra.mxu0 %v712
    %856 = vmatprep.subr.mxu0 0.0
    %857 = vmatpush2.msra.mxu0 %v711
    %858 = vmatprep.subr.mxu0 0.0
    %859 = vmatpush2.msra.mxu0 %v710
    %860 = vmatprep.subr.mxu0 0.0
    %861 = vmatpush2.msra.mxu0 %v709
    %862 = vmatprep.subr.mxu0 0.0
    %863 = vmatpush2.msra.mxu0 %v708
    %864 = vmatprep.subr.mxu0 0.0
    %865 = vmatpush2.msra.mxu0 %v707
    %866 = vmatprep.subr.mxu0 0.0
    %867 = vmatpush2.msra.mxu0 %v706
    %868 = vmatprep.subr.mxu0 0.0
    %869 = vmatpush2.msra.mxu0 %v705
    %870 = vmatprep.subr.mxu0 0.0
    %871 = vmatpush2.msra.mxu0 %v704
    %872 = vmatprep.subr.mxu0 0.0
    %873 = vmatpush2.msra.mxu0 %v703
    %874 = vmatprep.subr.mxu0 0.0
    %875 = vmatpush2.msra.mxu0 %v702
    %876 = vmatprep.subr.mxu0 0.0
    %877 = vmatpush2.msra.mxu0 %v701
    %878 = vmatprep.subr.mxu0 0.0
    %879 = vmatpush2.msra.mxu0 %v700
    %880 = vmatprep.subr.mxu0 0.0
    %881 = vmatpush2.msra.mxu0 %v699
    %882 = vmatprep.mubr.f32.mxu0 %v375
    %883 = vmatmul.mubr.f32.gmra.mxu0 %v367
    %v884 = vpop.f32.mrf.mxu0
    %v885 = vadd.f32 %v816, %v884
    %v886 = vpop.f32.mrf.mxu0
    %887 = vdwg.mxu0
    %888 = vmatprep.subr.mxu0 0.0
    %889 = vmatpush1.msra.mxu0 %v730
    %890 = vmatprep.subr.mxu0 0.0
    %891 = vmatpush1.msra.mxu0 %v729
    %892 = vmatprep.subr.mxu0 0.0
    %893 = vmatpush1.msra.mxu0 %v728
    %894 = vmatprep.subr.mxu0 0.0
    %895 = vmatpush1.msra.mxu0 %v727
    %896 = vmatprep.subr.mxu0 0.0
    %897 = vmatpush1.msra.mxu0 %v726
    %898 = vmatprep.subr.mxu0 0.0
    %899 = vmatpush1.msra.mxu0 %v725
    %900 = vmatprep.subr.mxu0 0.0
    %901 = vmatpush1.msra.mxu0 %v724
    %902 = vmatprep.subr.mxu0 0.0
    %903 = vmatpush1.msra.mxu0 %v723
    %904 = vmatprep.subr.mxu0 0.0
    %905 = vmatpush1.msra.mxu0 %v722
    %906 = vmatprep.subr.mxu0 0.0
    %907 = vmatpush1.msra.mxu0 %v721
    %908 = vmatprep.subr.mxu0 0.0
    %909 = vmatpush1.msra.mxu0 %v720
    %910 = vmatprep.subr.mxu0 0.0
    %911 = vmatpush1.msra.mxu0 %v719
    %912 = vmatprep.subr.mxu0 0.0
    %913 = vmatpush1.msra.mxu0 %v718
    %914 = vmatprep.subr.mxu0 0.0
    %915 = vmatpush1.msra.mxu0 %v717
    %916 = vmatprep.subr.mxu0 0.0
    %917 = vmatpush1.msra.mxu0 %v716
    %918 = vmatprep.subr.mxu0 0.0
    %919 = vmatpush1.msra.mxu0 %v715
    %920 = vmatprep.subr.mxu0 0.0
    %921 = vmatpush2.msra.mxu0 %v746
    %922 = vmatprep.subr.mxu0 0.0
    %923 = vmatpush2.msra.mxu0 %v745
    %924 = vmatprep.subr.mxu0 0.0
    %925 = vmatpush2.msra.mxu0 %v744
    %926 = vmatprep.subr.mxu0 0.0
    %927 = vmatpush2.msra.mxu0 %v743
    %928 = vmatprep.subr.mxu0 0.0
    %929 = vmatpush2.msra.mxu0 %v742
    %930 = vmatprep.subr.mxu0 0.0
    %931 = vmatpush2.msra.mxu0 %v741
    %932 = vmatprep.subr.mxu0 0.0
    %933 = vmatpush2.msra.mxu0 %v740
    %934 = vmatprep.subr.mxu0 0.0
    %935 = vmatpush2.msra.mxu0 %v739
    %936 = vmatprep.subr.mxu0 0.0
    %937 = vmatpush2.msra.mxu0 %v738
    %938 = vmatprep.subr.mxu0 0.0
    %939 = vmatpush2.msra.mxu0 %v737
    %940 = vmatprep.subr.mxu0 0.0
    %941 = vmatpush2.msra.mxu0 %v736
    %942 = vmatprep.subr.mxu0 0.0
    %943 = vmatpush2.msra.mxu0 %v735
    %944 = vmatprep.subr.mxu0 0.0
    %945 = vmatpush2.msra.mxu0 %v734
    %946 = vmatprep.subr.mxu0 0.0
    %947 = vmatpush2.msra.mxu0 %v733
    %948 = vmatprep.subr.mxu0 0.0
    %949 = vmatpush2.msra.mxu0 %v732
    %950 = vmatprep.subr.mxu0 0.0
    %951 = vmatpush2.msra.mxu0 %v731
    %952 = vmatprep.mubr.f32.mxu0 %v376
    %953 = vmatmul.mubr.f32.gmra.mxu0 %v374
    %v954 = vpop.f32.mrf.mxu0
    %v955 = vadd.f32 %v885, %v954
    %v956 = vpop.f32.mrf.mxu0
    %957 = vdwg.mxu0
    %958 = vmatprep.subr.mxu0 0.0
    %959 = vmatpush1.msra.mxu0 %v762
    %960 = vmatprep.subr.mxu0 0.0
    %961 = vmatpush1.msra.mxu0 %v761
    %962 = vmatprep.subr.mxu0 0.0
    %963 = vmatpush1.msra.mxu0 %v760
    %964 = vmatprep.subr.mxu0 0.0
    %965 = vmatpush1.msra.mxu0 %v759
    %966 = vmatprep.subr.mxu0 0.0
    %967 = vmatpush1.msra.mxu0 %v758
    %968 = vmatprep.subr.mxu0 0.0
    %969 = vmatpush1.msra.mxu0 %v757
    %970 = vmatprep.subr.mxu0 0.0
    %971 = vmatpush1.msra.mxu0 %v756
    %972 = vmatprep.subr.mxu0 0.0
    %973 = vmatpush1.msra.mxu0 %v755
    %974 = vmatprep.subr.mxu0 0.0
    %975 = vmatpush1.msra.mxu0 %v754
    %976 = vmatprep.subr.mxu0 0.0
    %977 = vmatpush1.msra.mxu0 %v753
    %978 = vmatprep.subr.mxu0 0.0
    %979 = vmatpush1.msra.mxu0 %v752
    %980 = vmatprep.subr.mxu0 0.0
    %981 = vmatpush1.msra.mxu0 %v751
    %982 = vmatprep.subr.mxu0 0.0
    %983 = vmatpush1.msra.mxu0 %v750
    %984 = vmatprep.subr.mxu0 0.0
    %985 = vmatpush1.msra.mxu0 %v749
    %986 = vmatprep.subr.mxu0 0.0
    %987 = vmatpush1.msra.mxu0 %v748
    %988 = vmatprep.subr.mxu0 0.0
    %989 = vmatpush1.msra.mxu0 %v747
    %990 = vmatprep.subr.mxu0 0.0
    %991 = vmatpush2.msra.mxu0 %v778
    %992 = vmatprep.subr.mxu0 0.0
    %993 = vmatpush2.msra.mxu0 %v777
    %994 = vmatprep.subr.mxu0 0.0
    %995 = vmatpush2.msra.mxu0 %v776
    %996 = vmatprep.subr.mxu0 0.0
    %997 = vmatpush2.msra.mxu0 %v775
    %998 = vmatprep.subr.mxu0 0.0
    %999 = vmatpush2.msra.mxu0 %v774
    %1000 = vmatprep.subr.mxu0 0.0
    %1001 = vmatpush2.msra.mxu0 %v773
    %1002 = vmatprep.subr.mxu0 0.0
    %1003 = vmatpush2.msra.mxu0 %v772
    %1004 = vmatprep.subr.mxu0 0.0
    %1005 = vmatpush2.msra.mxu0 %v771
    %1006 = vmatprep.subr.mxu0 0.0
    %1007 = vmatpush2.msra.mxu0 %v770
    %1008 = vmatprep.subr.mxu0 0.0
    %1009 = vmatpush2.msra.mxu0 %v769
    %1010 = vmatprep.subr.mxu0 0.0
    %1011 = vmatpush2.msra.mxu0 %v768
    %1012 = vmatprep.subr.mxu0 0.0
    %1013 = vmatpush2.msra.mxu0 %v767
    %1014 = vmatprep.subr.mxu0 0.0
    %1015 = vmatpush2.msra.mxu0 %v766
    %1016 = vmatprep.subr.mxu0 0.0
    %1017 = vmatpush2.msra.mxu0 %v765
    %1018 = vmatprep.subr.mxu0 0.0
    %1019 = vmatpush2.msra.mxu0 %v764
    %1020 = vmatprep.subr.mxu0 0.0
    %1021 = vmatpush2.msra.mxu0 %v763
    %1022 = vmatprep.mubr.f32.mxu0 %v392
    %1023 = vmatmul.mubr.f32.gmra.mxu0 %v384
    %v1024 = vpop.f32.mrf.mxu0
    %v1025 = vadd.f32 %v955, %v1024
    %v1026 = vpop.f32.mrf.mxu0
    %1027 = vdwg.mxu0
    %1028 = vmatprep.subr.mxu0 0.0
    %1029 = vmatpush1.msra.mxu0 %v794
    %1030 = vmatprep.subr.mxu0 0.0
    %1031 = vmatpush1.msra.mxu0 %v793
    %1032 = vmatprep.subr.mxu0 0.0
    %1033 = vmatpush1.msra.mxu0 %v792
    %1034 = vmatprep.subr.mxu0 0.0
    %1035 = vmatpush1.msra.mxu0 %v791
    %1036 = vmatprep.subr.mxu0 0.0
    %1037 = vmatpush1.msra.mxu0 %v790
    %1038 = vmatprep.subr.mxu0 0.0
    %1039 = vmatpush1.msra.mxu0 %v789
    %1040 = vmatprep.subr.mxu0 0.0
    %1041 = vmatpush1.msra.mxu0 %v788
    %1042 = vmatprep.subr.mxu0 0.0
    %1043 = vmatpush1.msra.mxu0 %v787
    %1044 = vmatprep.subr.mxu0 0.0
    %1045 = vmatpush1.msra.mxu0 %v786
    %1046 = vmatprep.subr.mxu0 0.0
    %1047 = vmatpush1.msra.mxu0 %v785
    %1048 = vmatprep.subr.mxu0 0.0
    %1049 = vmatpush1.msra.mxu0 %v784
    %1050 = vmatprep.subr.mxu0 0.0
    %1051 = vmatpush1.msra.mxu0 %v783
    %1052 = vmatprep.subr.mxu0 0.0
    %1053 = vmatpush1.msra.mxu0 %v782
    %1054 = vmatprep.subr.mxu0 0.0
    %1055 = vmatpush1.msra.mxu0 %v781
    %1056 = vmatprep.subr.mxu0 0.0
    %1057 = vmatpush1.msra.mxu0 %v780
    %1058 = vmatprep.subr.mxu0 0.0
    %1059 = vmatpush1.msra.mxu0 %v779
    %1060 = vmatprep.subr.mxu0 0.0
    %1061 = vmatpush2.msra.mxu0 %v810
    %1062 = vmatprep.subr.mxu0 0.0
    %1063 = vmatpush2.msra.mxu0 %v809
    %1064 = vmatprep.subr.mxu0 0.0
    %1065 = vmatpush2.msra.mxu0 %v808
    %1066 = vmatprep.subr.mxu0 0.0
    %1067 = vmatpush2.msra.mxu0 %v807
    %1068 = vmatprep.subr.mxu0 0.0
    %1069 = vmatpush2.msra.mxu0 %v806
    %1070 = vmatprep.subr.mxu0 0.0
    %1071 = vmatpush2.msra.mxu0 %v805
    %1072 = vmatprep.subr.mxu0 0.0
    %1073 = vmatpush2.msra.mxu0 %v804
    %1074 = vmatprep.subr.mxu0 0.0
    %1075 = vmatpush2.msra.mxu0 %v803
    %1076 = vmatprep.subr.mxu0 0.0
    %1077 = vmatpush2.msra.mxu0 %v802
    %1078 = vmatprep.subr.mxu0 0.0
    %1079 = vmatpush2.msra.mxu0 %v801
    %1080 = vmatprep.subr.mxu0 0.0
    %1081 = vmatpush2.msra.mxu0 %v800
    %1082 = vmatprep.subr.mxu0 0.0
    %1083 = vmatpush2.msra.mxu0 %v799
    %1084 = vmatprep.subr.mxu0 0.0
    %1085 = vmatpush2.msra.mxu0 %v798
    %1086 = vmatprep.subr.mxu0 0.0
    %1087 = vmatpush2.msra.mxu0 %v797
    %1088 = vmatprep.subr.mxu0 0.0
    %1089 = vmatpush2.msra.mxu0 %v796
    %1090 = vmatprep.subr.mxu0 0.0
    %1091 = vmatpush2.msra.mxu0 %v795
    %1092 = vmatprep.mubr.f32.mxu0 %v393
    %1093 = vmatmul.mubr.f32.gmra.mxu0 %v391
    %v1094 = vpop.f32.mrf.mxu0
    %v1095 = vadd.f32 %v1025, %v1094
    %v1096 = vpop.f32.mrf.mxu0
    %1097 = vdwg.mxu0
    %1098 = vst [vmem:[#allocation2 + $0x2] sm:$0x3] %v1095
    %v1099 = vld [vmem:[#allocation3 + $0x10] sm:$0xff]
    %v1100 = vld [vmem:[#allocation3 + $0x30] sm:$0xff]
    %v1101 = vld [vmem:[#allocation3 + $0x50] sm:$0xff]
    %v1102 = vld [vmem:[#allocation3 + $0x70] sm:$0xff]
    %v1103 = vld [vmem:[#allocation3 + $0x90] sm:$0xff]
    %v1104 = vld [vmem:[#allocation3 + $0xb0] sm:$0xff]
    %v1105 = vld [vmem:[#allocation3 + $0xd0] sm:$0xff]
    %v1106 = vld [vmem:[#allocation3 + $0xf0] sm:$0xff]
    %v1107 = vld [vmem:[#allocation3 + $0x110] sm:$0xff]
    %v1108 = vld [vmem:[#allocation3 + $0x130] sm:$0xff]
    %v1109 = vld [vmem:[#allocation3 + $0x150] sm:$0xff]
    %v1110 = vld [vmem:[#allocation3 + $0x170] sm:$0xff]
    %v1111 = vld [vmem:[#allocation3 + $0x190] sm:$0xff]
    %v1112 = vld [vmem:[#allocation3 + $0x1b0] sm:$0xff]
    %v1113 = vld [vmem:[#allocation3 + $0x1d0] sm:$0xff]
    %v1114 = vld [vmem:[#allocation3 + $0x1f0] sm:$0xff]
    %v1115 = vld [vmem:[#allocation3 + $0x210] sm:$0xff]
    %v1116 = vld [vmem:[#allocation3 + $0x230] sm:$0xff]
    %v1117 = vld [vmem:[#allocation3 + $0x250] sm:$0xff]
    %v1118 = vld [vmem:[#allocation3 + $0x270] sm:$0xff]
    %v1119 = vld [vmem:[#allocation3 + $0x290] sm:$0xff]
    %v1120 = vld [vmem:[#allocation3 + $0x2b0] sm:$0xff]
    %v1121 = vld [vmem:[#allocation3 + $0x2d0] sm:$0xff]
    %v1122 = vld [vmem:[#allocation3 + $0x2f0] sm:$0xff]
    %v1123 = vld [vmem:[#allocation3 + $0x310] sm:$0xff]
    %v1124 = vld [vmem:[#allocation3 + $0x330] sm:$0xff]
    %v1125 = vld [vmem:[#allocation3 + $0x350] sm:$0xff]
    %v1126 = vld [vmem:[#allocation3 + $0x370] sm:$0xff]
    %v1127 = vld [vmem:[#allocation3 + $0x390] sm:$0xff]
    %v1128 = vld [vmem:[#allocation3 + $0x3b0] sm:$0xff]
    %v1129 = vld [vmem:[#allocation3 + $0x3d0] sm:$0xff]
    %v1130 = vld [vmem:[#allocation3 + $0x3f0] sm:$0xff]
    %v1131 = vld [vmem:[#allocation3 + $0x410] sm:$0xff]
    %v1132 = vld [vmem:[#allocation3 + $0x430] sm:$0xff]
    %v1133 = vld [vmem:[#allocation3 + $0x450] sm:$0xff]
    %v1134 = vld [vmem:[#allocation3 + $0x470] sm:$0xff]
    %v1135 = vld [vmem:[#allocation3 + $0x490] sm:$0xff]
    %v1136 = vld [vmem:[#allocation3 + $0x4b0] sm:$0xff]
    %v1137 = vld [vmem:[#allocation3 + $0x4d0] sm:$0xff]
    %v1138 = vld [vmem:[#allocation3 + $0x4f0] sm:$0xff]
    %v1139 = vld [vmem:[#allocation3 + $0x510] sm:$0xff]
    %v1140 = vld [vmem:[#allocation3 + $0x530] sm:$0xff]
    %v1141 = vld [vmem:[#allocation3 + $0x550] sm:$0xff]
    %v1142 = vld [vmem:[#allocation3 + $0x570] sm:$0xff]
    %v1143 = vld [vmem:[#allocation3 + $0x590] sm:$0xff]
    %v1144 = vld [vmem:[#allocation3 + $0x5b0] sm:$0xff]
    %v1145 = vld [vmem:[#allocation3 + $0x5d0] sm:$0xff]
    %v1146 = vld [vmem:[#allocation3 + $0x5f0] sm:$0xff]
    %v1147 = vld [vmem:[#allocation3 + $0x610] sm:$0xff]
    %v1148 = vld [vmem:[#allocation3 + $0x630] sm:$0xff]
    %v1149 = vld [vmem:[#allocation3 + $0x650] sm:$0xff]
    %v1150 = vld [vmem:[#allocation3 + $0x670] sm:$0xff]
    %v1151 = vld [vmem:[#allocation3 + $0x690] sm:$0xff]
    %v1152 = vld [vmem:[#allocation3 + $0x6b0] sm:$0xff]
    %v1153 = vld [vmem:[#allocation3 + $0x6d0] sm:$0xff]
    %v1154 = vld [vmem:[#allocation3 + $0x6f0] sm:$0xff]
    %v1155 = vld [vmem:[#allocation3 + $0x710] sm:$0xff]
    %v1156 = vld [vmem:[#allocation3 + $0x730] sm:$0xff]
    %v1157 = vld [vmem:[#allocation3 + $0x750] sm:$0xff]
    %v1158 = vld [vmem:[#allocation3 + $0x770] sm:$0xff]
    %v1159 = vld [vmem:[#allocation3 + $0x790] sm:$0xff]
    %v1160 = vld [vmem:[#allocation3 + $0x7b0] sm:$0xff]
    %v1161 = vld [vmem:[#allocation3 + $0x7d0] sm:$0xff]
    %v1162 = vld [vmem:[#allocation3 + $0x7f0] sm:$0xff]
    %v1163 = vld [vmem:[#allocation3 + $0x810] sm:$0xff]
    %v1164 = vld [vmem:[#allocation3 + $0x830] sm:$0xff]
    %v1165 = vld [vmem:[#allocation3 + $0x850] sm:$0xff]
    %v1166 = vld [vmem:[#allocation3 + $0x870] sm:$0xff]
    %v1167 = vld [vmem:[#allocation3 + $0x890] sm:$0xff]
    %v1168 = vld [vmem:[#allocation3 + $0x8b0] sm:$0xff]
    %v1169 = vld [vmem:[#allocation3 + $0x8d0] sm:$0xff]
    %v1170 = vld [vmem:[#allocation3 + $0x8f0] sm:$0xff]
    %v1171 = vld [vmem:[#allocation3 + $0x910] sm:$0xff]
    %v1172 = vld [vmem:[#allocation3 + $0x930] sm:$0xff]
    %v1173 = vld [vmem:[#allocation3 + $0x950] sm:$0xff]
    %v1174 = vld [vmem:[#allocation3 + $0x970] sm:$0xff]
    %v1175 = vld [vmem:[#allocation3 + $0x990] sm:$0xff]
    %v1176 = vld [vmem:[#allocation3 + $0x9b0] sm:$0xff]
    %v1177 = vld [vmem:[#allocation3 + $0x9d0] sm:$0xff]
    %v1178 = vld [vmem:[#allocation3 + $0x9f0] sm:$0xff]
    %v1179 = vld [vmem:[#allocation3 + $0xa10] sm:$0xff]
    %v1180 = vld [vmem:[#allocation3 + $0xa30] sm:$0xff]
    %v1181 = vld [vmem:[#allocation3 + $0xa50] sm:$0xff]
    %v1182 = vld [vmem:[#allocation3 + $0xa70] sm:$0xff]
    %v1183 = vld [vmem:[#allocation3 + $0xa90] sm:$0xff]
    %v1184 = vld [vmem:[#allocation3 + $0xab0] sm:$0xff]
    %v1185 = vld [vmem:[#allocation3 + $0xad0] sm:$0xff]
    %v1186 = vld [vmem:[#allocation3 + $0xaf0] sm:$0xff]
    %v1187 = vld [vmem:[#allocation3 + $0xb10] sm:$0xff]
    %v1188 = vld [vmem:[#allocation3 + $0xb30] sm:$0xff]
    %v1189 = vld [vmem:[#allocation3 + $0xb50] sm:$0xff]
    %v1190 = vld [vmem:[#allocation3 + $0xb70] sm:$0xff]
    %v1191 = vld [vmem:[#allocation3 + $0xb90] sm:$0xff]
    %v1192 = vld [vmem:[#allocation3 + $0xbb0] sm:$0xff]
    %v1193 = vld [vmem:[#allocation3 + $0xbd0] sm:$0xff]
    %v1194 = vld [vmem:[#allocation3 + $0xbf0] sm:$0xff]
    %v1195 = vld [vmem:[#allocation3 + $0xc10] sm:$0xff]
    %v1196 = vld [vmem:[#allocation3 + $0xc30] sm:$0xff]
    %v1197 = vld [vmem:[#allocation3 + $0xc50] sm:$0xff]
    %v1198 = vld [vmem:[#allocation3 + $0xc70] sm:$0xff]
    %v1199 = vld [vmem:[#allocation3 + $0xc90] sm:$0xff]
    %v1200 = vld [vmem:[#allocation3 + $0xcb0] sm:$0xff]
    %v1201 = vld [vmem:[#allocation3 + $0xcd0] sm:$0xff]
    %v1202 = vld [vmem:[#allocation3 + $0xcf0] sm:$0xff]
    %v1203 = vld [vmem:[#allocation3 + $0xd10] sm:$0xff]
    %v1204 = vld [vmem:[#allocation3 + $0xd30] sm:$0xff]
    %v1205 = vld [vmem:[#allocation3 + $0xd50] sm:$0xff]
    %v1206 = vld [vmem:[#allocation3 + $0xd70] sm:$0xff]
    %v1207 = vld [vmem:[#allocation3 + $0xd90] sm:$0xff]
    %v1208 = vld [vmem:[#allocation3 + $0xdb0] sm:$0xff]
    %v1209 = vld [vmem:[#allocation3 + $0xdd0] sm:$0xff]
    %v1210 = vld [vmem:[#allocation3 + $0xdf0] sm:$0xff]
    %v1211 = vld [vmem:[#allocation3 + $0xe10] sm:$0xff]
    %v1212 = vld [vmem:[#allocation3 + $0xe30] sm:$0xff]
    %v1213 = vld [vmem:[#allocation3 + $0xe50] sm:$0xff]
    %v1214 = vld [vmem:[#allocation3 + $0xe70] sm:$0xff]
    %v1215 = vld [vmem:[#allocation3 + $0xe90] sm:$0xff]
    %v1216 = vld [vmem:[#allocation3 + $0xeb0] sm:$0xff]
    %v1217 = vld [vmem:[#allocation3 + $0xed0] sm:$0xff]
    %v1218 = vld [vmem:[#allocation3 + $0xef0] sm:$0xff]
    %v1219 = vld [vmem:[#allocation3 + $0xf10] sm:$0xff]
    %v1220 = vld [vmem:[#allocation3 + $0xf30] sm:$0xff]
    %v1221 = vld [vmem:[#allocation3 + $0xf50] sm:$0xff]
    %v1222 = vld [vmem:[#allocation3 + $0xf70] sm:$0xff]
    %v1223 = vld [vmem:[#allocation3 + $0xf90] sm:$0xff]
    %v1224 = vld [vmem:[#allocation3 + $0xfb0] sm:$0xff]
    %v1225 = vld [vmem:[#allocation3 + $0xfd0] sm:$0xff]
    %v1226 = vld [vmem:[#allocation3 + $0xff0] sm:$0xff]
    %v1227 = vld [vmem:[#allocation6 + $0x2] sm:$0x1]
    %v1229 = vlaneseq
    %v1230 = vshrl.u32 %v1229, 7
    %v1231 = vsub.s32 0, %v1230
    %v1232 = vrot.slane %v1227, %v1231
    %1234 = vmatprep.subr.mxu0 0.0
    %1235 = vmatpush1.msra.mxu0 %v1114
    %1236 = vmatprep.subr.mxu0 0.0
    %1237 = vmatpush1.msra.mxu0 %v1113
    %1238 = vmatprep.subr.mxu0 0.0
    %1239 = vmatpush1.msra.mxu0 %v1112
    %1240 = vmatprep.subr.mxu0 0.0
    %1241 = vmatpush1.msra.mxu0 %v1111
    %1242 = vmatprep.subr.mxu0 0.0
    %1243 = vmatpush1.msra.mxu0 %v1110
    %1244 = vmatprep.subr.mxu0 0.0
    %1245 = vmatpush1.msra.mxu0 %v1109
    %1246 = vmatprep.subr.mxu0 0.0
    %1247 = vmatpush1.msra.mxu0 %v1108
    %1248 = vmatprep.subr.mxu0 0.0
    %1249 = vmatpush1.msra.mxu0 %v1107
    %1250 = vmatprep.subr.mxu0 0.0
    %1251 = vmatpush1.msra.mxu0 %v1106
    %1252 = vmatprep.subr.mxu0 0.0
    %1253 = vmatpush1.msra.mxu0 %v1105
    %1254 = vmatprep.subr.mxu0 0.0
    %1255 = vmatpush1.msra.mxu0 %v1104
    %1256 = vmatprep.subr.mxu0 0.0
    %1257 = vmatpush1.msra.mxu0 %v1103
    %1258 = vmatprep.subr.mxu0 0.0
    %1259 = vmatpush1.msra.mxu0 %v1102
    %1260 = vmatprep.subr.mxu0 0.0
    %1261 = vmatpush1.msra.mxu0 %v1101
    %1262 = vmatprep.subr.mxu0 0.0
    %1263 = vmatpush1.msra.mxu0 %v1100
    %1264 = vmatprep.subr.mxu0 0.0
    %1265 = vmatpush1.msra.mxu0 %v1099
    %1266 = vmatprep.subr.mxu0 0.0
    %1267 = vmatpush2.msra.mxu0 %v1130
    %1268 = vmatprep.subr.mxu0 0.0
    %1269 = vmatpush2.msra.mxu0 %v1129
    %1270 = vmatprep.subr.mxu0 0.0
    %1271 = vmatpush2.msra.mxu0 %v1128
    %1272 = vmatprep.subr.mxu0 0.0
    %1273 = vmatpush2.msra.mxu0 %v1127
    %1274 = vmatprep.subr.mxu0 0.0
    %1275 = vmatpush2.msra.mxu0 %v1126
    %1276 = vmatprep.subr.mxu0 0.0
    %1277 = vmatpush2.msra.mxu0 %v1125
    %1278 = vmatprep.subr.mxu0 0.0
    %1279 = vmatpush2.msra.mxu0 %v1124
    %1280 = vmatprep.subr.mxu0 0.0
    %1281 = vmatpush2.msra.mxu0 %v1123
    %1282 = vmatprep.subr.mxu0 0.0
    %1283 = vmatpush2.msra.mxu0 %v1122
    %1284 = vmatprep.subr.mxu0 0.0
    %1285 = vmatpush2.msra.mxu0 %v1121
    %1286 = vmatprep.subr.mxu0 0.0
    %1287 = vmatpush2.msra.mxu0 %v1120
    %1288 = vmatprep.subr.mxu0 0.0
    %1289 = vmatpush2.msra.mxu0 %v1119
    %1290 = vmatprep.subr.mxu0 0.0
    %1291 = vmatpush2.msra.mxu0 %v1118
    %1292 = vmatprep.subr.mxu0 0.0
    %1293 = vmatpush2.msra.mxu0 %v1117
    %1294 = vmatprep.subr.mxu0 0.0
    %1295 = vmatpush2.msra.mxu0 %v1116
    %1296 = vmatprep.subr.mxu0 0.0
    %1297 = vmatpush2.msra.mxu0 %v1115
    %1298 = vmatprep.mubr.f32.mxu0 %v375
    %1299 = vmatmul.mubr.f32.gmra.mxu0 %v367
    %v1300 = vpop.f32.mrf.mxu0
    %v1301 = vadd.f32 %v1232, %v1300
    %v1302 = vpop.f32.mrf.mxu0
    %1303 = vdwg.mxu0
    %1304 = vmatprep.subr.mxu0 0.0
    %1305 = vmatpush1.msra.mxu0 %v1146
    %1306 = vmatprep.subr.mxu0 0.0
    %1307 = vmatpush1.msra.mxu0 %v1145
    %1308 = vmatprep.subr.mxu0 0.0
    %1309 = vmatpush1.msra.mxu0 %v1144
    %1310 = vmatprep.subr.mxu0 0.0
    %1311 = vmatpush1.msra.mxu0 %v1143
    %1312 = vmatprep.subr.mxu0 0.0
    %1313 = vmatpush1.msra.mxu0 %v1142
    %1314 = vmatprep.subr.mxu0 0.0
    %1315 = vmatpush1.msra.mxu0 %v1141
    %1316 = vmatprep.subr.mxu0 0.0
    %1317 = vmatpush1.msra.mxu0 %v1140
    %1318 = vmatprep.subr.mxu0 0.0
    %1319 = vmatpush1.msra.mxu0 %v1139
    %1320 = vmatprep.subr.mxu0 0.0
    %1321 = vmatpush1.msra.mxu0 %v1138
    %1322 = vmatprep.subr.mxu0 0.0
    %1323 = vmatpush1.msra.mxu0 %v1137
    %1324 = vmatprep.subr.mxu0 0.0
    %1325 = vmatpush1.msra.mxu0 %v1136
    %1326 = vmatprep.subr.mxu0 0.0
    %1327 = vmatpush1.msra.mxu0 %v1135
    %1328 = vmatprep.subr.mxu0 0.0
    %1329 = vmatpush1.msra.mxu0 %v1134
    %1330 = vmatprep.subr.mxu0 0.0
    %1331 = vmatpush1.msra.mxu0 %v1133
    %1332 = vmatprep.subr.mxu0 0.0
    %1333 = vmatpush1.msra.mxu0 %v1132
    %1334 = vmatprep.subr.mxu0 0.0
    %1335 = vmatpush1.msra.mxu0 %v1131
    %1336 = vmatprep.subr.mxu0 0.0
    %1337 = vmatpush2.msra.mxu0 %v1162
    %1338 = vmatprep.subr.mxu0 0.0
    %1339 = vmatpush2.msra.mxu0 %v1161
    %1340 = vmatprep.subr.mxu0 0.0
    %1341 = vmatpush2.msra.mxu0 %v1160
    %1342 = vmatprep.subr.mxu0 0.0
    %1343 = vmatpush2.msra.mxu0 %v1159
    %1344 = vmatprep.subr.mxu0 0.0
    %1345 = vmatpush2.msra.mxu0 %v1158
    %1346 = vmatprep.subr.mxu0 0.0
    %1347 = vmatpush2.msra.mxu0 %v1157
    %1348 = vmatprep.subr.mxu0 0.0
    %1349 = vmatpush2.msra.mxu0 %v1156
    %1350 = vmatprep.subr.mxu0 0.0
    %1351 = vmatpush2.msra.mxu0 %v1155
    %1352 = vmatprep.subr.mxu0 0.0
    %1353 = vmatpush2.msra.mxu0 %v1154
    %1354 = vmatprep.subr.mxu0 0.0
    %1355 = vmatpush2.msra.mxu0 %v1153
    %1356 = vmatprep.subr.mxu0 0.0
    %1357 = vmatpush2.msra.mxu0 %v1152
    %1358 = vmatprep.subr.mxu0 0.0
    %1359 = vmatpush2.msra.mxu0 %v1151
    %1360 = vmatprep.subr.mxu0 0.0
    %1361 = vmatpush2.msra.mxu0 %v1150
    %1362 = vmatprep.subr.mxu0 0.0
    %1363 = vmatpush2.msra.mxu0 %v1149
    %1364 = vmatprep.subr.mxu0 0.0
    %1365 = vmatpush2.msra.mxu0 %v1148
    %1366 = vmatprep.subr.mxu0 0.0
    %1367 = vmatpush2.msra.mxu0 %v1147
    %1368 = vmatprep.mubr.f32.mxu0 %v376
    %1369 = vmatmul.mubr.f32.gmra.mxu0 %v374
    %v1370 = vpop.f32.mrf.mxu0
    %v1371 = vadd.f32 %v1301, %v1370
    %v1372 = vpop.f32.mrf.mxu0
    %1373 = vdwg.mxu0
    %1374 = vmatprep.subr.mxu0 0.0
    %1375 = vmatpush1.msra.mxu0 %v1178
    %1376 = vmatprep.subr.mxu0 0.0
    %1377 = vmatpush1.msra.mxu0 %v1177
    %1378 = vmatprep.subr.mxu0 0.0
    %1379 = vmatpush1.msra.mxu0 %v1176
    %1380 = vmatprep.subr.mxu0 0.0
    %1381 = vmatpush1.msra.mxu0 %v1175
    %1382 = vmatprep.subr.mxu0 0.0
    %1383 = vmatpush1.msra.mxu0 %v1174
    %1384 = vmatprep.subr.mxu0 0.0
    %1385 = vmatpush1.msra.mxu0 %v1173
    %1386 = vmatprep.subr.mxu0 0.0
    %1387 = vmatpush1.msra.mxu0 %v1172
    %1388 = vmatprep.subr.mxu0 0.0
    %1389 = vmatpush1.msra.mxu0 %v1171
    %1390 = vmatprep.subr.mxu0 0.0
    %1391 = vmatpush1.msra.mxu0 %v1170
    %1392 = vmatprep.subr.mxu0 0.0
    %1393 = vmatpush1.msra.mxu0 %v1169
    %1394 = vmatprep.subr.mxu0 0.0
    %1395 = vmatpush1.msra.mxu0 %v1168
    %1396 = vmatprep.subr.mxu0 0.0
    %1397 = vmatpush1.msra.mxu0 %v1167
    %1398 = vmatprep.subr.mxu0 0.0
    %1399 = vmatpush1.msra.mxu0 %v1166
    %1400 = vmatprep.subr.mxu0 0.0
    %1401 = vmatpush1.msra.mxu0 %v1165
    %1402 = vmatprep.subr.mxu0 0.0
    %1403 = vmatpush1.msra.mxu0 %v1164
    %1404 = vmatprep.subr.mxu0 0.0
    %1405 = vmatpush1.msra.mxu0 %v1163
    %1406 = vmatprep.subr.mxu0 0.0
    %1407 = vmatpush2.msra.mxu0 %v1194
    %1408 = vmatprep.subr.mxu0 0.0
    %1409 = vmatpush2.msra.mxu0 %v1193
    %1410 = vmatprep.subr.mxu0 0.0
    %1411 = vmatpush2.msra.mxu0 %v1192
    %1412 = vmatprep.subr.mxu0 0.0
    %1413 = vmatpush2.msra.mxu0 %v1191
    %1414 = vmatprep.subr.mxu0 0.0
    %1415 = vmatpush2.msra.mxu0 %v1190
    %1416 = vmatprep.subr.mxu0 0.0
    %1417 = vmatpush2.msra.mxu0 %v1189
    %1418 = vmatprep.subr.mxu0 0.0
    %1419 = vmatpush2.msra.mxu0 %v1188
    %1420 = vmatprep.subr.mxu0 0.0
    %1421 = vmatpush2.msra.mxu0 %v1187
    %1422 = vmatprep.subr.mxu0 0.0
    %1423 = vmatpush2.msra.mxu0 %v1186
    %1424 = vmatprep.subr.mxu0 0.0
    %1425 = vmatpush2.msra.mxu0 %v1185
    %1426 = vmatprep.subr.mxu0 0.0
    %1427 = vmatpush2.msra.mxu0 %v1184
    %1428 = vmatprep.subr.mxu0 0.0
    %1429 = vmatpush2.msra.mxu0 %v1183
    %1430 = vmatprep.subr.mxu0 0.0
    %1431 = vmatpush2.msra.mxu0 %v1182
    %1432 = vmatprep.subr.mxu0 0.0
    %1433 = vmatpush2.msra.mxu0 %v1181
    %1434 = vmatprep.subr.mxu0 0.0
    %1435 = vmatpush2.msra.mxu0 %v1180
    %1436 = vmatprep.subr.mxu0 0.0
    %1437 = vmatpush2.msra.mxu0 %v1179
    %1438 = vmatprep.mubr.f32.mxu0 %v392
    %1439 = vmatmul.mubr.f32.gmra.mxu0 %v384
    %v1440 = vpop.f32.mrf.mxu0
    %v1441 = vadd.f32 %v1371, %v1440
    %v1442 = vpop.f32.mrf.mxu0
    %1443 = vdwg.mxu0
    %1444 = vmatprep.subr.mxu0 0.0
    %1445 = vmatpush1.msra.mxu0 %v1210
    %1446 = vmatprep.subr.mxu0 0.0
    %1447 = vmatpush1.msra.mxu0 %v1209
    %1448 = vmatprep.subr.mxu0 0.0
    %1449 = vmatpush1.msra.mxu0 %v1208
    %1450 = vmatprep.subr.mxu0 0.0
    %1451 = vmatpush1.msra.mxu0 %v1207
    %1452 = vmatprep.subr.mxu0 0.0
    %1453 = vmatpush1.msra.mxu0 %v1206
    %1454 = vmatprep.subr.mxu0 0.0
    %1455 = vmatpush1.msra.mxu0 %v1205
    %1456 = vmatprep.subr.mxu0 0.0
    %1457 = vmatpush1.msra.mxu0 %v1204
    %1458 = vmatprep.subr.mxu0 0.0
    %1459 = vmatpush1.msra.mxu0 %v1203
    %1460 = vmatprep.subr.mxu0 0.0
    %1461 = vmatpush1.msra.mxu0 %v1202
    %1462 = vmatprep.subr.mxu0 0.0
    %1463 = vmatpush1.msra.mxu0 %v1201
    %1464 = vmatprep.subr.mxu0 0.0
    %1465 = vmatpush1.msra.mxu0 %v1200
    %1466 = vmatprep.subr.mxu0 0.0
    %1467 = vmatpush1.msra.mxu0 %v1199
    %1468 = vmatprep.subr.mxu0 0.0
    %1469 = vmatpush1.msra.mxu0 %v1198
    %1470 = vmatprep.subr.mxu0 0.0
    %1471 = vmatpush1.msra.mxu0 %v1197
    %1472 = vmatprep.subr.mxu0 0.0
    %1473 = vmatpush1.msra.mxu0 %v1196
    %1474 = vmatprep.subr.mxu0 0.0
    %1475 = vmatpush1.msra.mxu0 %v1195
    %1476 = vmatprep.subr.mxu0 0.0
    %1477 = vmatpush2.msra.mxu0 %v1226
    %1478 = vmatprep.subr.mxu0 0.0
    %1479 = vmatpush2.msra.mxu0 %v1225
    %1480 = vmatprep.subr.mxu0 0.0
    %1481 = vmatpush2.msra.mxu0 %v1224
    %1482 = vmatprep.subr.mxu0 0.0
    %1483 = vmatpush2.msra.mxu0 %v1223
    %1484 = vmatprep.subr.mxu0 0.0
    %1485 = vmatpush2.msra.mxu0 %v1222
    %1486 = vmatprep.subr.mxu0 0.0
    %1487 = vmatpush2.msra.mxu0 %v1221
    %1488 = vmatprep.subr.mxu0 0.0
    %1489 = vmatpush2.msra.mxu0 %v1220
    %1490 = vmatprep.subr.mxu0 0.0
    %1491 = vmatpush2.msra.mxu0 %v1219
    %1492 = vmatprep.subr.mxu0 0.0
    %1493 = vmatpush2.msra.mxu0 %v1218
    %1494 = vmatprep.subr.mxu0 0.0
    %1495 = vmatpush2.msra.mxu0 %v1217
    %1496 = vmatprep.subr.mxu0 0.0
    %1497 = vmatpush2.msra.mxu0 %v1216
    %1498 = vmatprep.subr.mxu0 0.0
    %1499 = vmatpush2.msra.mxu0 %v1215
    %1500 = vmatprep.subr.mxu0 0.0
    %1501 = vmatpush2.msra.mxu0 %v1214
    %1502 = vmatprep.subr.mxu0 0.0
    %1503 = vmatpush2.msra.mxu0 %v1213
    %1504 = vmatprep.subr.mxu0 0.0
    %1505 = vmatpush2.msra.mxu0 %v1212
    %1506 = vmatprep.subr.mxu0 0.0
    %1507 = vmatpush2.msra.mxu0 %v1211
    %1508 = vmatprep.mubr.f32.mxu0 %v393
    %1509 = vmatmul.mubr.f32.gmra.mxu0 %v391
    %v1510 = vpop.f32.mrf.mxu0
    %v1511 = vadd.f32 %v1441, %v1510
    %v1512 = vpop.f32.mrf.mxu0
    %1513 = vdwg.mxu0
    %1514 = vst [vmem:[#allocation2 + $0x4] sm:$0x3] %v1511
    %v1515 = vld [vmem:[#allocation3 + $0x18] sm:$0xff]
    %v1516 = vld [vmem:[#allocation3 + $0x38] sm:$0xff]
    %v1517 = vld [vmem:[#allocation3 + $0x58] sm:$0xff]
    %v1518 = vld [vmem:[#allocation3 + $0x78] sm:$0xff]
    %v1519 = vld [vmem:[#allocation3 + $0x98] sm:$0xff]
    %v1520 = vld [vmem:[#allocation3 + $0xb8] sm:$0xff]
    %v1521 = vld [vmem:[#allocation3 + $0xd8] sm:$0xff]
    %v1522 = vld [vmem:[#allocation3 + $0xf8] sm:$0xff]
    %v1523 = vld [vmem:[#allocation3 + $0x118] sm:$0xff]
    %v1524 = vld [vmem:[#allocation3 + $0x138] sm:$0xff]
    %v1525 = vld [vmem:[#allocation3 + $0x158] sm:$0xff]
    %v1526 = vld [vmem:[#allocation3 + $0x178] sm:$0xff]
    %v1527 = vld [vmem:[#allocation3 + $0x198] sm:$0xff]
    %v1528 = vld [vmem:[#allocation3 + $0x1b8] sm:$0xff]
    %v1529 = vld [vmem:[#allocation3 + $0x1d8] sm:$0xff]
    %v1530 = vld [vmem:[#allocation3 + $0x1f8] sm:$0xff]
    %v1531 = vld [vmem:[#allocation3 + $0x218] sm:$0xff]
    %v1532 = vld [vmem:[#allocation3 + $0x238] sm:$0xff]
    %v1533 = vld [vmem:[#allocation3 + $0x258] sm:$0xff]
    %v1534 = vld [vmem:[#allocation3 + $0x278] sm:$0xff]
    %v1535 = vld [vmem:[#allocation3 + $0x298] sm:$0xff]
    %v1536 = vld [vmem:[#allocation3 + $0x2b8] sm:$0xff]
    %v1537 = vld [vmem:[#allocation3 + $0x2d8] sm:$0xff]
    %v1538 = vld [vmem:[#allocation3 + $0x2f8] sm:$0xff]
    %v1539 = vld [vmem:[#allocation3 + $0x318] sm:$0xff]
    %v1540 = vld [vmem:[#allocation3 + $0x338] sm:$0xff]
    %v1541 = vld [vmem:[#allocation3 + $0x358] sm:$0xff]
    %v1542 = vld [vmem:[#allocation3 + $0x378] sm:$0xff]
    %v1543 = vld [vmem:[#allocation3 + $0x398] sm:$0xff]
    %v1544 = vld [vmem:[#allocation3 + $0x3b8] sm:$0xff]
    %v1545 = vld [vmem:[#allocation3 + $0x3d8] sm:$0xff]
    %v1546 = vld [vmem:[#allocation3 + $0x3f8] sm:$0xff]
    %v1547 = vld [vmem:[#allocation3 + $0x418] sm:$0xff]
    %v1548 = vld [vmem:[#allocation3 + $0x438] sm:$0xff]
    %v1549 = vld [vmem:[#allocation3 + $0x458] sm:$0xff]
    %v1550 = vld [vmem:[#allocation3 + $0x478] sm:$0xff]
    %v1551 = vld [vmem:[#allocation3 + $0x498] sm:$0xff]
    %v1552 = vld [vmem:[#allocation3 + $0x4b8] sm:$0xff]
    %v1553 = vld [vmem:[#allocation3 + $0x4d8] sm:$0xff]
    %v1554 = vld [vmem:[#allocation3 + $0x4f8] sm:$0xff]
    %v1555 = vld [vmem:[#allocation3 + $0x518] sm:$0xff]
    %v1556 = vld [vmem:[#allocation3 + $0x538] sm:$0xff]
    %v1557 = vld [vmem:[#allocation3 + $0x558] sm:$0xff]
    %v1558 = vld [vmem:[#allocation3 + $0x578] sm:$0xff]
    %v1559 = vld [vmem:[#allocation3 + $0x598] sm:$0xff]
    %v1560 = vld [vmem:[#allocation3 + $0x5b8] sm:$0xff]
    %v1561 = vld [vmem:[#allocation3 + $0x5d8] sm:$0xff]
    %v1562 = vld [vmem:[#allocation3 + $0x5f8] sm:$0xff]
    %v1563 = vld [vmem:[#allocation3 + $0x618] sm:$0xff]
    %v1564 = vld [vmem:[#allocation3 + $0x638] sm:$0xff]
    %v1565 = vld [vmem:[#allocation3 + $0x658] sm:$0xff]
    %v1566 = vld [vmem:[#allocation3 + $0x678] sm:$0xff]
    %v1567 = vld [vmem:[#allocation3 + $0x698] sm:$0xff]
    %v1568 = vld [vmem:[#allocation3 + $0x6b8] sm:$0xff]
    %v1569 = vld [vmem:[#allocation3 + $0x6d8] sm:$0xff]
    %v1570 = vld [vmem:[#allocation3 + $0x6f8] sm:$0xff]
    %v1571 = vld [vmem:[#allocation3 + $0x718] sm:$0xff]
    %v1572 = vld [vmem:[#allocation3 + $0x738] sm:$0xff]
    %v1573 = vld [vmem:[#allocation3 + $0x758] sm:$0xff]
    %v1574 = vld [vmem:[#allocation3 + $0x778] sm:$0xff]
    %v1575 = vld [vmem:[#allocation3 + $0x798] sm:$0xff]
    %v1576 = vld [vmem:[#allocation3 + $0x7b8] sm:$0xff]
    %v1577 = vld [vmem:[#allocation3 + $0x7d8] sm:$0xff]
    %v1578 = vld [vmem:[#allocation3 + $0x7f8] sm:$0xff]
    %v1579 = vld [vmem:[#allocation3 + $0x818] sm:$0xff]
    %v1580 = vld [vmem:[#allocation3 + $0x838] sm:$0xff]
    %v1581 = vld [vmem:[#allocation3 + $0x858] sm:$0xff]
    %v1582 = vld [vmem:[#allocation3 + $0x878] sm:$0xff]
    %v1583 = vld [vmem:[#allocation3 + $0x898] sm:$0xff]
    %v1584 = vld [vmem:[#allocation3 + $0x8b8] sm:$0xff]
    %v1585 = vld [vmem:[#allocation3 + $0x8d8] sm:$0xff]
    %v1586 = vld [vmem:[#allocation3 + $0x8f8] sm:$0xff]
    %v1587 = vld [vmem:[#allocation3 + $0x918] sm:$0xff]
    %v1588 = vld [vmem:[#allocation3 + $0x938] sm:$0xff]
    %v1589 = vld [vmem:[#allocation3 + $0x958] sm:$0xff]
    %v1590 = vld [vmem:[#allocation3 + $0x978] sm:$0xff]
    %v1591 = vld [vmem:[#allocation3 + $0x998] sm:$0xff]
    %v1592 = vld [vmem:[#allocation3 + $0x9b8] sm:$0xff]
    %v1593 = vld [vmem:[#allocation3 + $0x9d8] sm:$0xff]
    %v1594 = vld [vmem:[#allocation3 + $0x9f8] sm:$0xff]
    %v1595 = vld [vmem:[#allocation3 + $0xa18] sm:$0xff]
    %v1596 = vld [vmem:[#allocation3 + $0xa38] sm:$0xff]
    %v1597 = vld [vmem:[#allocation3 + $0xa58] sm:$0xff]
    %v1598 = vld [vmem:[#allocation3 + $0xa78] sm:$0xff]
    %v1599 = vld [vmem:[#allocation3 + $0xa98] sm:$0xff]
    %v1600 = vld [vmem:[#allocation3 + $0xab8] sm:$0xff]
    %v1601 = vld [vmem:[#allocation3 + $0xad8] sm:$0xff]
    %v1602 = vld [vmem:[#allocation3 + $0xaf8] sm:$0xff]
    %v1603 = vld [vmem:[#allocation3 + $0xb18] sm:$0xff]
    %v1604 = vld [vmem:[#allocation3 + $0xb38] sm:$0xff]
    %v1605 = vld [vmem:[#allocation3 + $0xb58] sm:$0xff]
    %v1606 = vld [vmem:[#allocation3 + $0xb78] sm:$0xff]
    %v1607 = vld [vmem:[#allocation3 + $0xb98] sm:$0xff]
    %v1608 = vld [vmem:[#allocation3 + $0xbb8] sm:$0xff]
    %v1609 = vld [vmem:[#allocation3 + $0xbd8] sm:$0xff]
    %v1610 = vld [vmem:[#allocation3 + $0xbf8] sm:$0xff]
    %v1611 = vld [vmem:[#allocation3 + $0xc18] sm:$0xff]
    %v1612 = vld [vmem:[#allocation3 + $0xc38] sm:$0xff]
    %v1613 = vld [vmem:[#allocation3 + $0xc58] sm:$0xff]
    %v1614 = vld [vmem:[#allocation3 + $0xc78] sm:$0xff]
    %v1615 = vld [vmem:[#allocation3 + $0xc98] sm:$0xff]
    %v1616 = vld [vmem:[#allocation3 + $0xcb8] sm:$0xff]
    %v1617 = vld [vmem:[#allocation3 + $0xcd8] sm:$0xff]
    %v1618 = vld [vmem:[#allocation3 + $0xcf8] sm:$0xff]
    %v1619 = vld [vmem:[#allocation3 + $0xd18] sm:$0xff]
    %v1620 = vld [vmem:[#allocation3 + $0xd38] sm:$0xff]
    %v1621 = vld [vmem:[#allocation3 + $0xd58] sm:$0xff]
    %v1622 = vld [vmem:[#allocation3 + $0xd78] sm:$0xff]
    %v1623 = vld [vmem:[#allocation3 + $0xd98] sm:$0xff]
    %v1624 = vld [vmem:[#allocation3 + $0xdb8] sm:$0xff]
    %v1625 = vld [vmem:[#allocation3 + $0xdd8] sm:$0xff]
    %v1626 = vld [vmem:[#allocation3 + $0xdf8] sm:$0xff]
    %v1627 = vld [vmem:[#allocation3 + $0xe18] sm:$0xff]
    %v1628 = vld [vmem:[#allocation3 + $0xe38] sm:$0xff]
    %v1629 = vld [vmem:[#allocation3 + $0xe58] sm:$0xff]
    %v1630 = vld [vmem:[#allocation3 + $0xe78] sm:$0xff]
    %v1631 = vld [vmem:[#allocation3 + $0xe98] sm:$0xff]
    %v1632 = vld [vmem:[#allocation3 + $0xeb8] sm:$0xff]
    %v1633 = vld [vmem:[#allocation3 + $0xed8] sm:$0xff]
    %v1634 = vld [vmem:[#allocation3 + $0xef8] sm:$0xff]
    %v1635 = vld [vmem:[#allocation3 + $0xf18] sm:$0xff]
    %v1636 = vld [vmem:[#allocation3 + $0xf38] sm:$0xff]
    %v1637 = vld [vmem:[#allocation3 + $0xf58] sm:$0xff]
    %v1638 = vld [vmem:[#allocation3 + $0xf78] sm:$0xff]
    %v1639 = vld [vmem:[#allocation3 + $0xf98] sm:$0xff]
    %v1640 = vld [vmem:[#allocation3 + $0xfb8] sm:$0xff]
    %v1641 = vld [vmem:[#allocation3 + $0xfd8] sm:$0xff]
    %v1642 = vld [vmem:[#allocation3 + $0xff8] sm:$0xff]
    %v1643 = vld [vmem:[#allocation6 + $0x3] sm:$0x1]
    %v1645 = vlaneseq
    %v1646 = vshrl.u32 %v1645, 7
    %v1647 = vsub.s32 0, %v1646
    %v1648 = vrot.slane %v1643, %v1647
    %1650 = vmatprep.subr.mxu0 0.0
    %1651 = vmatpush1.msra.mxu0 %v1530
    %1652 = vmatprep.subr.mxu0 0.0
    %1653 = vmatpush1.msra.mxu0 %v1529
    %1654 = vmatprep.subr.mxu0 0.0
    %1655 = vmatpush1.msra.mxu0 %v1528
    %1656 = vmatprep.subr.mxu0 0.0
    %1657 = vmatpush1.msra.mxu0 %v1527
    %1658 = vmatprep.subr.mxu0 0.0
    %1659 = vmatpush1.msra.mxu0 %v1526
    %1660 = vmatprep.subr.mxu0 0.0
    %1661 = vmatpush1.msra.mxu0 %v1525
    %1662 = vmatprep.subr.mxu0 0.0
    %1663 = vmatpush1.msra.mxu0 %v1524
    %1664 = vmatprep.subr.mxu0 0.0
    %1665 = vmatpush1.msra.mxu0 %v1523
    %1666 = vmatprep.subr.mxu0 0.0
    %1667 = vmatpush1.msra.mxu0 %v1522
    %1668 = vmatprep.subr.mxu0 0.0
    %1669 = vmatpush1.msra.mxu0 %v1521
    %1670 = vmatprep.subr.mxu0 0.0
    %1671 = vmatpush1.msra.mxu0 %v1520
    %1672 = vmatprep.subr.mxu0 0.0
    %1673 = vmatpush1.msra.mxu0 %v1519
    %1674 = vmatprep.subr.mxu0 0.0
    %1675 = vmatpush1.msra.mxu0 %v1518
    %1676 = vmatprep.subr.mxu0 0.0
    %1677 = vmatpush1.msra.mxu0 %v1517
    %1678 = vmatprep.subr.mxu0 0.0
    %1679 = vmatpush1.msra.mxu0 %v1516
    %1680 = vmatprep.subr.mxu0 0.0
    %1681 = vmatpush1.msra.mxu0 %v1515
    %1682 = vmatprep.subr.mxu0 0.0
    %1683 = vmatpush2.msra.mxu0 %v1546
    %1684 = vmatprep.subr.mxu0 0.0
    %1685 = vmatpush2.msra.mxu0 %v1545
    %1686 = vmatprep.subr.mxu0 0.0
    %1687 = vmatpush2.msra.mxu0 %v1544
    %1688 = vmatprep.subr.mxu0 0.0
    %1689 = vmatpush2.msra.mxu0 %v1543
    %1690 = vmatprep.subr.mxu0 0.0
    %1691 = vmatpush2.msra.mxu0 %v1542
    %1692 = vmatprep.subr.mxu0 0.0
    %1693 = vmatpush2.msra.mxu0 %v1541
    %1694 = vmatprep.subr.mxu0 0.0
    %1695 = vmatpush2.msra.mxu0 %v1540
    %1696 = vmatprep.subr.mxu0 0.0
    %1697 = vmatpush2.msra.mxu0 %v1539
    %1698 = vmatprep.subr.mxu0 0.0
    %1699 = vmatpush2.msra.mxu0 %v1538
    %1700 = vmatprep.subr.mxu0 0.0
    %1701 = vmatpush2.msra.mxu0 %v1537
    %1702 = vmatprep.subr.mxu0 0.0
    %1703 = vmatpush2.msra.mxu0 %v1536
    %1704 = vmatprep.subr.mxu0 0.0
    %1705 = vmatpush2.msra.mxu0 %v1535
    %1706 = vmatprep.subr.mxu0 0.0
    %1707 = vmatpush2.msra.mxu0 %v1534
    %1708 = vmatprep.subr.mxu0 0.0
    %1709 = vmatpush2.msra.mxu0 %v1533
    %1710 = vmatprep.subr.mxu0 0.0
    %1711 = vmatpush2.msra.mxu0 %v1532
    %1712 = vmatprep.subr.mxu0 0.0
    %1713 = vmatpush2.msra.mxu0 %v1531
    %1714 = vmatprep.mubr.f32.mxu0 %v375
    %1715 = vmatmul.mubr.f32.gmra.mxu0 %v367
    %v1716 = vpop.f32.mrf.mxu0
    %v1717 = vadd.f32 %v1648, %v1716
    %v1718 = vpop.f32.mrf.mxu0
    %1719 = vdwg.mxu0
    %1720 = vmatprep.subr.mxu0 0.0
    %1721 = vmatpush1.msra.mxu0 %v1562
    %1722 = vmatprep.subr.mxu0 0.0
    %1723 = vmatpush1.msra.mxu0 %v1561
    %1724 = vmatprep.subr.mxu0 0.0
    %1725 = vmatpush1.msra.mxu0 %v1560
    %1726 = vmatprep.subr.mxu0 0.0
    %1727 = vmatpush1.msra.mxu0 %v1559
    %1728 = vmatprep.subr.mxu0 0.0
    %1729 = vmatpush1.msra.mxu0 %v1558
    %1730 = vmatprep.subr.mxu0 0.0
    %1731 = vmatpush1.msra.mxu0 %v1557
    %1732 = vmatprep.subr.mxu0 0.0
    %1733 = vmatpush1.msra.mxu0 %v1556
    %1734 = vmatprep.subr.mxu0 0.0
    %1735 = vmatpush1.msra.mxu0 %v1555
    %1736 = vmatprep.subr.mxu0 0.0
    %1737 = vmatpush1.msra.mxu0 %v1554
    %1738 = vmatprep.subr.mxu0 0.0
    %1739 = vmatpush1.msra.mxu0 %v1553
    %1740 = vmatprep.subr.mxu0 0.0
    %1741 = vmatpush1.msra.mxu0 %v1552
    %1742 = vmatprep.subr.mxu0 0.0
    %1743 = vmatpush1.msra.mxu0 %v1551
    %1744 = vmatprep.subr.mxu0 0.0
    %1745 = vmatpush1.msra.mxu0 %v1550
    %1746 = vmatprep.subr.mxu0 0.0
    %1747 = vmatpush1.msra.mxu0 %v1549
    %1748 = vmatprep.subr.mxu0 0.0
    %1749 = vmatpush1.msra.mxu0 %v1548
    %1750 = vmatprep.subr.mxu0 0.0
    %1751 = vmatpush1.msra.mxu0 %v1547
    %1752 = vmatprep.subr.mxu0 0.0
    %1753 = vmatpush2.msra.mxu0 %v1578
    %1754 = vmatprep.subr.mxu0 0.0
    %1755 = vmatpush2.msra.mxu0 %v1577
    %1756 = vmatprep.subr.mxu0 0.0
    %1757 = vmatpush2.msra.mxu0 %v1576
    %1758 = vmatprep.subr.mxu0 0.0
    %1759 = vmatpush2.msra.mxu0 %v1575
    %1760 = vmatprep.subr.mxu0 0.0
    %1761 = vmatpush2.msra.mxu0 %v1574
    %1762 = vmatprep.subr.mxu0 0.0
    %1763 = vmatpush2.msra.mxu0 %v1573
    %1764 = vmatprep.subr.mxu0 0.0
    %1765 = vmatpush2.msra.mxu0 %v1572
    %1766 = vmatprep.subr.mxu0 0.0
    %1767 = vmatpush2.msra.mxu0 %v1571
    %1768 = vmatprep.subr.mxu0 0.0
    %1769 = vmatpush2.msra.mxu0 %v1570
    %1770 = vmatprep.subr.mxu0 0.0
    %1771 = vmatpush2.msra.mxu0 %v1569
    %1772 = vmatprep.subr.mxu0 0.0
    %1773 = vmatpush2.msra.mxu0 %v1568
    %1774 = vmatprep.subr.mxu0 0.0
    %1775 = vmatpush2.msra.mxu0 %v1567
    %1776 = vmatprep.subr.mxu0 0.0
    %1777 = vmatpush2.msra.mxu0 %v1566
    %1778 = vmatprep.subr.mxu0 0.0
    %1779 = vmatpush2.msra.mxu0 %v1565
    %1780 = vmatprep.subr.mxu0 0.0
    %1781 = vmatpush2.msra.mxu0 %v1564
    %1782 = vmatprep.subr.mxu0 0.0
    %1783 = vmatpush2.msra.mxu0 %v1563
    %1784 = vmatprep.mubr.f32.mxu0 %v376
    %1785 = vmatmul.mubr.f32.gmra.mxu0 %v374
    %v1786 = vpop.f32.mrf.mxu0
    %v1787 = vadd.f32 %v1717, %v1786
    %v1788 = vpop.f32.mrf.mxu0
    %1789 = vdwg.mxu0
    %1790 = vmatprep.subr.mxu0 0.0
    %1791 = vmatpush1.msra.mxu0 %v1594
    %1792 = vmatprep.subr.mxu0 0.0
    %1793 = vmatpush1.msra.mxu0 %v1593
    %1794 = vmatprep.subr.mxu0 0.0
    %1795 = vmatpush1.msra.mxu0 %v1592
    %1796 = vmatprep.subr.mxu0 0.0
    %1797 = vmatpush1.msra.mxu0 %v1591
    %1798 = vmatprep.subr.mxu0 0.0
    %1799 = vmatpush1.msra.mxu0 %v1590
    %1800 = vmatprep.subr.mxu0 0.0
    %1801 = vmatpush1.msra.mxu0 %v1589
    %1802 = vmatprep.subr.mxu0 0.0
    %1803 = vmatpush1.msra.mxu0 %v1588
    %1804 = vmatprep.subr.mxu0 0.0
    %1805 = vmatpush1.msra.mxu0 %v1587
    %1806 = vmatprep.subr.mxu0 0.0
    %1807 = vmatpush1.msra.mxu0 %v1586
    %1808 = vmatprep.subr.mxu0 0.0
    %1809 = vmatpush1.msra.mxu0 %v1585
    %1810 = vmatprep.subr.mxu0 0.0
    %1811 = vmatpush1.msra.mxu0 %v1584
    %1812 = vmatprep.subr.mxu0 0.0
    %1813 = vmatpush1.msra.mxu0 %v1583
    %1814 = vmatprep.subr.mxu0 0.0
    %1815 = vmatpush1.msra.mxu0 %v1582
    %1816 = vmatprep.subr.mxu0 0.0
    %1817 = vmatpush1.msra.mxu0 %v1581
    %1818 = vmatprep.subr.mxu0 0.0
    %1819 = vmatpush1.msra.mxu0 %v1580
    %1820 = vmatprep.subr.mxu0 0.0
    %1821 = vmatpush1.msra.mxu0 %v1579
    %1822 = vmatprep.subr.mxu0 0.0
    %1823 = vmatpush2.msra.mxu0 %v1610
    %1824 = vmatprep.subr.mxu0 0.0
    %1825 = vmatpush2.msra.mxu0 %v1609
    %1826 = vmatprep.subr.mxu0 0.0
    %1827 = vmatpush2.msra.mxu0 %v1608
    %1828 = vmatprep.subr.mxu0 0.0
    %1829 = vmatpush2.msra.mxu0 %v1607
    %1830 = vmatprep.subr.mxu0 0.0
    %1831 = vmatpush2.msra.mxu0 %v1606
    %1832 = vmatprep.subr.mxu0 0.0
    %1833 = vmatpush2.msra.mxu0 %v1605
    %1834 = vmatprep.subr.mxu0 0.0
    %1835 = vmatpush2.msra.mxu0 %v1604
    %1836 = vmatprep.subr.mxu0 0.0
    %1837 = vmatpush2.msra.mxu0 %v1603
    %1838 = vmatprep.subr.mxu0 0.0
    %1839 = vmatpush2.msra.mxu0 %v1602
    %1840 = vmatprep.subr.mxu0 0.0
    %1841 = vmatpush2.msra.mxu0 %v1601
    %1842 = vmatprep.subr.mxu0 0.0
    %1843 = vmatpush2.msra.mxu0 %v1600
    %1844 = vmatprep.subr.mxu0 0.0
    %1845 = vmatpush2.msra.mxu0 %v1599
    %1846 = vmatprep.subr.mxu0 0.0
    %1847 = vmatpush2.msra.mxu0 %v1598
    %1848 = vmatprep.subr.mxu0 0.0
    %1849 = vmatpush2.msra.mxu0 %v1597
    %1850 = vmatprep.subr.mxu0 0.0
    %1851 = vmatpush2.msra.mxu0 %v1596
    %1852 = vmatprep.subr.mxu0 0.0
    %1853 = vmatpush2.msra.mxu0 %v1595
    %1854 = vmatprep.mubr.f32.mxu0 %v392
    %1855 = vmatmul.mubr.f32.gmra.mxu0 %v384
    %v1856 = vpop.f32.mrf.mxu0
    %v1857 = vadd.f32 %v1787, %v1856
    %v1858 = vpop.f32.mrf.mxu0
    %1859 = vdwg.mxu0
    %1860 = vmatprep.subr.mxu0 0.0
    %1861 = vmatpush1.msra.mxu0 %v1626
    %1862 = vmatprep.subr.mxu0 0.0
    %1863 = vmatpush1.msra.mxu0 %v1625
    %1864 = vmatprep.subr.mxu0 0.0
    %1865 = vmatpush1.msra.mxu0 %v1624
    %1866 = vmatprep.subr.mxu0 0.0
    %1867 = vmatpush1.msra.mxu0 %v1623
    %1868 = vmatprep.subr.mxu0 0.0
    %1869 = vmatpush1.msra.mxu0 %v1622
    %1870 = vmatprep.subr.mxu0 0.0
    %1871 = vmatpush1.msra.mxu0 %v1621
    %1872 = vmatprep.subr.mxu0 0.0
    %1873 = vmatpush1.msra.mxu0 %v1620
    %1874 = vmatprep.subr.mxu0 0.0
    %1875 = vmatpush1.msra.mxu0 %v1619
    %1876 = vmatprep.subr.mxu0 0.0
    %1877 = vmatpush1.msra.mxu0 %v1618
    %1878 = vmatprep.subr.mxu0 0.0
    %1879 = vmatpush1.msra.mxu0 %v1617
    %1880 = vmatprep.subr.mxu0 0.0
    %1881 = vmatpush1.msra.mxu0 %v1616
    %1882 = vmatprep.subr.mxu0 0.0
    %1883 = vmatpush1.msra.mxu0 %v1615
    %1884 = vmatprep.subr.mxu0 0.0
    %1885 = vmatpush1.msra.mxu0 %v1614
    %1886 = vmatprep.subr.mxu0 0.0
    %1887 = vmatpush1.msra.mxu0 %v1613
    %1888 = vmatprep.subr.mxu0 0.0
    %1889 = vmatpush1.msra.mxu0 %v1612
    %1890 = vmatprep.subr.mxu0 0.0
    %1891 = vmatpush1.msra.mxu0 %v1611
    %1892 = vmatprep.subr.mxu0 0.0
    %1893 = vmatpush2.msra.mxu0 %v1642
    %1894 = vmatprep.subr.mxu0 0.0
    %1895 = vmatpush2.msra.mxu0 %v1641
    %1896 = vmatprep.subr.mxu0 0.0
    %1897 = vmatpush2.msra.mxu0 %v1640
    %1898 = vmatprep.subr.mxu0 0.0
    %1899 = vmatpush2.msra.mxu0 %v1639
    %1900 = vmatprep.subr.mxu0 0.0
    %1901 = vmatpush2.msra.mxu0 %v1638
    %1902 = vmatprep.subr.mxu0 0.0
    %1903 = vmatpush2.msra.mxu0 %v1637
    %1904 = vmatprep.subr.mxu0 0.0
    %1905 = vmatpush2.msra.mxu0 %v1636
    %1906 = vmatprep.subr.mxu0 0.0
    %1907 = vmatpush2.msra.mxu0 %v1635
    %1908 = vmatprep.subr.mxu0 0.0
    %1909 = vmatpush2.msra.mxu0 %v1634
    %1910 = vmatprep.subr.mxu0 0.0
    %1911 = vmatpush2.msra.mxu0 %v1633
    %1912 = vmatprep.subr.mxu0 0.0
    %1913 = vmatpush2.msra.mxu0 %v1632
    %1914 = vmatprep.subr.mxu0 0.0
    %1915 = vmatpush2.msra.mxu0 %v1631
    %1916 = vmatprep.subr.mxu0 0.0
    %1917 = vmatpush2.msra.mxu0 %v1630
    %1918 = vmatprep.subr.mxu0 0.0
    %1919 = vmatpush2.msra.mxu0 %v1629
    %1920 = vmatprep.subr.mxu0 0.0
    %1921 = vmatpush2.msra.mxu0 %v1628
    %1922 = vmatprep.subr.mxu0 0.0
    %1923 = vmatpush2.msra.mxu0 %v1627
    %1924 = vmatprep.mubr.f32.mxu0 %v393
    %1925 = vmatmul.mubr.f32.gmra.mxu0 %v391
    %v1926 = vpop.f32.mrf.mxu0
    %v1927 = vadd.f32 %v1857, %v1926
    %v1928 = vpop.f32.mrf.mxu0
    %1929 = vdwg.mxu0
    %1930 = vst [vmem:[#allocation2 + $0x6] sm:$0x3] %v1927
    %v1931 = vld [vmem:[#allocation2] sm:$0xff]
    %v1932 = vld [vmem:[#allocation8] sm:$0xff]
    %v1933 = vld [vmem:[#allocation8 + $0x8] sm:$0xff]
    %v1934 = vld [vmem:[#allocation8 + $0x10] sm:$0xff]
    %v1935 = vld [vmem:[#allocation8 + $0x18] sm:$0xff]
    %v1936 = vld [vmem:[#allocation8 + $0x20] sm:$0xff]
    %v1937 = vld [vmem:[#allocation8 + $0x28] sm:$0xff]
    %v1938 = vld [vmem:[#allocation8 + $0x30] sm:$0xff]
    %v1939 = vld [vmem:[#allocation8 + $0x38] sm:$0xff]
    %v1940 = vld [vmem:[#allocation8 + $0x40] sm:$0xff]
    %v1941 = vld [vmem:[#allocation8 + $0x48] sm:$0xff]
    %v1942 = vld [vmem:[#allocation8 + $0x50] sm:$0xff]
    %v1943 = vld [vmem:[#allocation8 + $0x58] sm:$0xff]
    %v1944 = vld [vmem:[#allocation8 + $0x60] sm:$0xff]
    %v1945 = vld [vmem:[#allocation8 + $0x68] sm:$0xff]
    %v1946 = vld [vmem:[#allocation8 + $0x70] sm:$0xff]
    %v1947 = vld [vmem:[#allocation8 + $0x78] sm:$0xff]
    %v1948 = vld [vmem:[#allocation8 + $0x80] sm:$0xff]
    %v1949 = vld [vmem:[#allocation8 + $0x88] sm:$0xff]
    %v1950 = vld [vmem:[#allocation8 + $0x90] sm:$0xff]
    %v1951 = vld [vmem:[#allocation8 + $0x98] sm:$0xff]
    %v1952 = vld [vmem:[#allocation8 + $0xa0] sm:$0xff]
    %v1953 = vld [vmem:[#allocation8 + $0xa8] sm:$0xff]
    %v1954 = vld [vmem:[#allocation8 + $0xb0] sm:$0xff]
    %v1955 = vld [vmem:[#allocation8 + $0xb8] sm:$0xff]
    %v1956 = vld [vmem:[#allocation8 + $0xc0] sm:$0xff]
    %v1957 = vld [vmem:[#allocation8 + $0xc8] sm:$0xff]
    %v1958 = vld [vmem:[#allocation8 + $0xd0] sm:$0xff]
    %v1959 = vld [vmem:[#allocation8 + $0xd8] sm:$0xff]
    %v1960 = vld [vmem:[#allocation8 + $0xe0] sm:$0xff]
    %v1961 = vld [vmem:[#allocation8 + $0xe8] sm:$0xff]
    %v1962 = vld [vmem:[#allocation8 + $0xf0] sm:$0xff]
    %v1963 = vld [vmem:[#allocation8 + $0xf8] sm:$0xff]
    %v1964 = vld [vmem:[#allocation9] sm:$0x3]
    %v1966 = vlaneseq
    %v1967 = vshrl.u32 %v1966, 7
    %v1968 = vsub.s32 0, %v1967
    %v1969 = vrot.slane %v1964, %v1968
    %v1970 = vlaneseq
    %v1971 = vshrl.u32 %v1970, 7
    %v1972 = vsub.s32 1, %v1971
    %v1973 = vrot.slane %v1964, %v1972
    %1976 = vmatprep.subr.mxu0 %v1963
    %1977 = vmatpush1.msra.mxu0 %v1962
    %1978 = vmatprep.subr.mxu0 %v1961
    %1979 = vmatpush1.msra.mxu0 %v1960
    %1980 = vmatprep.subr.mxu0 %v1959
    %1981 = vmatpush1.msra.mxu0 %v1958
    %1982 = vmatprep.subr.mxu0 %v1957
    %1983 = vmatpush1.msra.mxu0 %v1956
    %1984 = vmatprep.subr.mxu0 %v1955
    %1985 = vmatpush1.msra.mxu0 %v1954
    %1986 = vmatprep.subr.mxu0 %v1953
    %1987 = vmatpush1.msra.mxu0 %v1952
    %1988 = vmatprep.subr.mxu0 %v1951
    %1989 = vmatpush1.msra.mxu0 %v1950
    %1990 = vmatprep.subr.mxu0 %v1949
    %1991 = vmatpush1.msra.mxu0 %v1948
    %1992 = vmatprep.subr.mxu0 %v1947
    %1993 = vmatpush1.msra.mxu0 %v1946
    %1994 = vmatprep.subr.mxu0 %v1945
    %1995 = vmatpush1.msra.mxu0 %v1944
    %1996 = vmatprep.subr.mxu0 %v1943
    %1997 = vmatpush1.msra.mxu0 %v1942
    %1998 = vmatprep.subr.mxu0 %v1941
    %1999 = vmatpush1.msra.mxu0 %v1940
    %2000 = vmatprep.subr.mxu0 %v1939
    %2001 = vmatpush1.msra.mxu0 %v1938
    %2002 = vmatprep.subr.mxu0 %v1937
    %2003 = vmatpush1.msra.mxu0 %v1936
    %2004 = vmatprep.subr.mxu0 %v1935
    %2005 = vmatpush1.msra.mxu0 %v1934
    %2006 = vmatprep.subr.mxu0 %v1933
    %2007 = vmatpush1.msra.mxu0 %v1932
    %2008 = vmatprep.subr.mxu0 0.0
    %2009 = vmatpush2.msra.mxu0 0.0
    %2010 = vmatprep.subr.mxu0 0.0
    %2011 = vmatpush2.msra.mxu0 0.0
    %2012 = vmatprep.subr.mxu0 0.0
    %2013 = vmatpush2.msra.mxu0 0.0
    %2014 = vmatprep.subr.mxu0 0.0
    %2015 = vmatpush2.msra.mxu0 0.0
    %2016 = vmatprep.subr.mxu0 0.0
    %2017 = vmatpush2.msra.mxu0 0.0
    %2018 = vmatprep.subr.mxu0 0.0
    %2019 = vmatpush2.msra.mxu0 0.0
    %2020 = vmatprep.subr.mxu0 0.0
    %2021 = vmatpush2.msra.mxu0 0.0
    %2022 = vmatprep.subr.mxu0 0.0
    %2023 = vmatpush2.msra.mxu0 0.0
    %2024 = vmatprep.subr.mxu0 0.0
    %2025 = vmatpush2.msra.mxu0 0.0
    %2026 = vmatprep.subr.mxu0 0.0
    %2027 = vmatpush2.msra.mxu0 0.0
    %2028 = vmatprep.subr.mxu0 0.0
    %2029 = vmatpush2.msra.mxu0 0.0
    %2030 = vmatprep.subr.mxu0 0.0
    %2031 = vmatpush2.msra.mxu0 0.0
    %2032 = vmatprep.subr.mxu0 0.0
    %2033 = vmatpush2.msra.mxu0 0.0
    %2034 = vmatprep.subr.mxu0 0.0
    %2035 = vmatpush2.msra.mxu0 0.0
    %2036 = vmatprep.subr.mxu0 0.0
    %2037 = vmatpush2.msra.mxu0 0.0
    %2038 = vmatprep.subr.mxu0 0.0
    %2039 = vmatpush2.msra.mxu0 0.0
    %2040 = vmatprep.mubr.f32.mxu0 0.0
    %2041 = vmatmul.mubr.f32.gmra.mxu0 %v1931
    %v2042 = vpop.f32.mrf.mxu0
    %v2043 = vadd.f32 %v1969, %v2042
    %v2044 = vpop.f32.mrf.mxu0
    %v2045 = vadd.f32 %v1973, %v2044
    %2046 = vdwg.mxu0
    %v2047 = vrot.slane %v2043, 4
    %v2048 = vadd.f32 %v2043, %v2047
    %v2049 = vrot.slane %v2048, 2
    %v2050 = vadd.f32 %v2048, %v2049
    %v2051 = vrot.slane %v2050, 1
    %v2052 = vadd.f32 %v2050, %v2051
    %v2053 = vrot.slane %v2045, 4
    %v2054 = vadd.f32 %v2045, %v2053
    %v2055 = vrot.slane %v2054, 2
    %v2056 = vadd.f32 %v2054, %v2055
    %v2057 = vrot.slane %v2056, 1
    %v2058 = vadd.f32 %v2056, %v2057
    %v2059 = vrcp.pop 8.0
    %v2060 = vmul.f32 %v2052, %v2059
    %v2061 = vmul.f32 %v2058, %v2059
    %v2062 = vsub.f32 %v2043, %v2060
    %v2063 = vsub.f32 %v2045, %v2061
    %v2064 = vmul.f32 %v2062, %v2062
    %v2065 = vmul.f32 %v2063, %v2063
    %v2066 = vrot.slane %v2064, 4
    %v2067 = vadd.f32 %v2064, %v2066
    %v2068 = vrot.slane %v2067, 2
    %v2069 = vadd.f32 %v2067, %v2068
    %v2070 = vrot.slane %v2069, 1
    %v2071 = vadd.f32 %v2069, %v2070
    %v2072 = vrot.slane %v2065, 4
    %v2073 = vadd.f32 %v2065, %v2072
    %v2074 = vrot.slane %v2073, 2
    %v2075 = vadd.f32 %v2073, %v2074
    %v2076 = vrot.slane %v2075, 1
    %v2077 = vadd.f32 %v2075, %v2076
    %v2078 = vmul.f32 %v2071, %v2059
    %v2079 = vmul.f32 %v2077, %v2059
    %v2080 = vadd.f32 %v2078, 1e-05
    %v2081 = vadd.f32 %v2079, 1e-05
    %v2082 = vrsqrt.pop %v2080
    %v2083 = vrsqrt.pop %v2081
    %v2084 = vmul.f32 %v2062, %v2082
    %v2085 = vmul.f32 %v2063, %v2083
    %v2086 = vld [vmem:[#allocation11] sm:$0x3]
    %v2088 = vlaneseq
    %v2089 = vshrl.u32 %v2088, 7
    %v2090 = vsub.s32 0, %v2089
    %v2091 = vrot.slane %v2086, %v2090
    %v2092 = vlaneseq
    %v2093 = vshrl.u32 %v2092, 7
    %v2094 = vsub.s32 1, %v2093
    %v2095 = vrot.slane %v2086, %v2094
    %v2098 = vmul.f32 %v2084, %v2091
    %v2099 = vmul.f32 %v2085, %v2095
    %v2100 = vld [vmem:[#allocation12] sm:$0x3]
    %v2102 = vlaneseq
    %v2103 = vshrl.u32 %v2102, 7
    %v2104 = vsub.s32 0, %v2103
    %v2105 = vrot.slane %v2100, %v2104
    %v2106 = vlaneseq
    %v2107 = vshrl.u32 %v2106, 7
    %v2108 = vsub.s32 1, %v2107
    %v2109 = vrot.slane %v2100, %v2108
    %v2112 = vadd.f32 %v2098, %v2105
    %v2113 = vadd.f32 %v2099, %v2109
    %v2114 = vmax.f32 %v2112, 0.0
    %v2115 = vmax.f32 %v2113, 0.0
    %v2116 = vld [vmem:[#allocation14] sm:$0xff]
    %v2117 = vld [vmem:[#allocation14 + $0x8] sm:$0xff]
    %v2118 = vld [vmem:[#allocation14 + $0x10] sm:$0xff]
    %v2119 = vld [vmem:[#allocation14 + $0x18] sm:$0xff]
    %v2120 = vld [vmem:[#allocation14 + $0x20] sm:$0xff]
    %v2121 = vld [vmem:[#allocation14 + $0x28] sm:$0xff]
    %v2122 = vld [vmem:[#allocation14 + $0x30] sm:$0xff]
    %v2123 = vld [vmem:[#allocation14 + $0x38] sm:$0xff]
    %v2124 = vld [vmem:[#allocation14 + $0x40] sm:$0xff]
    %v2125 = vld [vmem:[#allocation14 + $0x48] sm:$0xff]
    %v2126 = vld [vmem:[#allocation14 + $0x50] sm:$0xff]
    %v2127 = vld [vmem:[#allocation14 + $0x58] sm:$0xff]
    %v2128 = vld [vmem:[#allocation14 + $0x60] sm:$0xff]
    %v2129 = vld [vmem:[#allocation14 + $0x68] sm:$0xff]
    %v2130 = vld [vmem:[#allocation14 + $0x70] sm:$0xff]
    %v2131 = vld [vmem:[#allocation14 + $0x78] sm:$0xff]
    %v2132 = vld [vmem:[#allocation14 + $0x80] sm:$0xff]
    %v2133 = vld [vmem:[#allocation14 + $0x88] sm:$0xff]
    %v2134 = vld [vmem:[#allocation14 + $0x90] sm:$0xff]
    %v2135 = vld [vmem:[#allocation14 + $0x98] sm:$0xff]
    %v2136 = vld [vmem:[#allocation14 + $0xa0] sm:$0xff]
    %v2137 = vld [vmem:[#allocation14 + $0xa8] sm:$0xff]
    %v2138 = vld [vmem:[#allocation14 + $0xb0] sm:$0xff]
    %v2139 = vld [vmem:[#allocation14 + $0xb8] sm:$0xff]
    %v2140 = vld [vmem:[#allocation14 + $0xc0] sm:$0xff]
    %v2141 = vld [vmem:[#allocation14 + $0xc8] sm:$0xff]
    %v2142 = vld [vmem:[#allocation14 + $0xd0] sm:$0xff]
    %v2143 = vld [vmem:[#allocation14 + $0xd8] sm:$0xff]
    %v2144 = vld [vmem:[#allocation14 + $0xe0] sm:$0xff]
    %v2145 = vld [vmem:[#allocation14 + $0xe8] sm:$0xff]
    %v2146 = vld [vmem:[#allocation14 + $0xf0] sm:$0xff]
    %v2147 = vld [vmem:[#allocation14 + $0xf8] sm:$0xff]
    %v2148 = vld [vmem:[#allocation14 + $0x100] sm:$0xff]
    %v2149 = vld [vmem:[#allocation14 + $0x108] sm:$0xff]
    %v2150 = vld [vmem:[#allocation14 + $0x110] sm:$0xff]
    %v2151 = vld [vmem:[#allocation14 + $0x118] sm:$0xff]
    %v2152 = vld [vmem:[#allocation14 + $0x120] sm:$0xff]
    %v2153 = vld [vmem:[#allocation14 + $0x128] sm:$0xff]
    %v2154 = vld [vmem:[#allocation14 + $0x130] sm:$0xff]
    %v2155 = vld [vmem:[#allocation14 + $0x138] sm:$0xff]
    %v2156 = vld [vmem:[#allocation14 + $0x140] sm:$0xff]
    %v2157 = vld [vmem:[#allocation14 + $0x148] sm:$0xff]
    %v2158 = vld [vmem:[#allocation14 + $0x150] sm:$0xff]
    %v2159 = vld [vmem:[#allocation14 + $0x158] sm:$0xff]
    %v2160 = vld [vmem:[#allocation14 + $0x160] sm:$0xff]
    %v2161 = vld [vmem:[#allocation14 + $0x168] sm:$0xff]
    %v2162 = vld [vmem:[#allocation14 + $0x170] sm:$0xff]
    %v2163 = vld [vmem:[#allocation14 + $0x178] sm:$0xff]
    %v2164 = vld [vmem:[#allocation14 + $0x180] sm:$0xff]
    %v2165 = vld [vmem:[#allocation14 + $0x188] sm:$0xff]
    %v2166 = vld [vmem:[#allocation14 + $0x190] sm:$0xff]
    %v2167 = vld [vmem:[#allocation14 + $0x198] sm:$0xff]
    %v2168 = vld [vmem:[#allocation14 + $0x1a0] sm:$0xff]
    %v2169 = vld [vmem:[#allocation14 + $0x1a8] sm:$0xff]
    %v2170 = vld [vmem:[#allocation14 + $0x1b0] sm:$0xff]
    %v2171 = vld [vmem:[#allocation14 + $0x1b8] sm:$0xff]
    %v2172 = vld [vmem:[#allocation14 + $0x1c0] sm:$0xff]
    %v2173 = vld [vmem:[#allocation14 + $0x1c8] sm:$0xff]
    %v2174 = vld [vmem:[#allocation14 + $0x1d0] sm:$0xff]
    %v2175 = vld [vmem:[#allocation14 + $0x1d8] sm:$0xff]
    %v2176 = vld [vmem:[#allocation14 + $0x1e0] sm:$0xff]
    %v2177 = vld [vmem:[#allocation14 + $0x1e8] sm:$0xff]
    %v2178 = vld [vmem:[#allocation14 + $0x1f0] sm:$0xff]
    %v2179 = vld [vmem:[#allocation14 + $0x1f8] sm:$0xff]
    %v2180 = vld [vmem:[#allocation15] sm:$0x3]
    %v2182 = vlaneseq
    %v2183 = vshrl.u32 %v2182, 7
    %v2184 = vsub.s32 0, %v2183
    %v2185 = vrot.slane %v2180, %v2184
    %v2186 = vlaneseq
    %v2187 = vshrl.u32 %v2186, 7
    %v2188 = vsub.s32 1, %v2187
    %v2189 = vrot.slane %v2180, %v2188
    %2192 = vmatprep.subr.mxu0 %v2147
    %2193 = vmatpush1.msra.mxu0 %v2146
    %2194 = vmatprep.subr.mxu0 %v2145
    %2195 = vmatpush1.msra.mxu0 %v2144
    %2196 = vmatprep.subr.mxu0 %v2143
    %2197 = vmatpush1.msra.mxu0 %v2142
    %2198 = vmatprep.subr.mxu0 %v2141
    %2199 = vmatpush1.msra.mxu0 %v2140
    %2200 = vmatprep.subr.mxu0 %v2139
    %2201 = vmatpush1.msra.mxu0 %v2138
    %2202 = vmatprep.subr.mxu0 %v2137
    %2203 = vmatpush1.msra.mxu0 %v2136
    %2204 = vmatprep.subr.mxu0 %v2135
    %2205 = vmatpush1.msra.mxu0 %v2134
    %2206 = vmatprep.subr.mxu0 %v2133
    %2207 = vmatpush1.msra.mxu0 %v2132
    %2208 = vmatprep.subr.mxu0 %v2131
    %2209 = vmatpush1.msra.mxu0 %v2130
    %2210 = vmatprep.subr.mxu0 %v2129
    %2211 = vmatpush1.msra.mxu0 %v2128
    %2212 = vmatprep.subr.mxu0 %v2127
    %2213 = vmatpush1.msra.mxu0 %v2126
    %2214 = vmatprep.subr.mxu0 %v2125
    %2215 = vmatpush1.msra.mxu0 %v2124
    %2216 = vmatprep.subr.mxu0 %v2123
    %2217 = vmatpush1.msra.mxu0 %v2122
    %2218 = vmatprep.subr.mxu0 %v2121
    %2219 = vmatpush1.msra.mxu0 %v2120
    %2220 = vmatprep.subr.mxu0 %v2119
    %2221 = vmatpush1.msra.mxu0 %v2118
    %2222 = vmatprep.subr.mxu0 %v2117
    %2223 = vmatpush1.msra.mxu0 %v2116
    %2224 = vmatprep.subr.mxu0 %v2179
    %2225 = vmatpush2.msra.mxu0 %v2178
    %2226 = vmatprep.subr.mxu0 %v2177
    %2227 = vmatpush2.msra.mxu0 %v2176
    %2228 = vmatprep.subr.mxu0 %v2175
    %2229 = vmatpush2.msra.mxu0 %v2174
    %2230 = vmatprep.subr.mxu0 %v2173
    %2231 = vmatpush2.msra.mxu0 %v2172
    %2232 = vmatprep.subr.mxu0 %v2171
    %2233 = vmatpush2.msra.mxu0 %v2170
    %2234 = vmatprep.subr.mxu0 %v2169
    %2235 = vmatpush2.msra.mxu0 %v2168
    %2236 = vmatprep.subr.mxu0 %v2167
    %2237 = vmatpush2.msra.mxu0 %v2166
    %2238 = vmatprep.subr.mxu0 %v2165
    %2239 = vmatpush2.msra.mxu0 %v2164
    %2240 = vmatprep.subr.mxu0 %v2163
    %2241 = vmatpush2.msra.mxu0 %v2162
    %2242 = vmatprep.subr.mxu0 %v2161
    %2243 = vmatpush2.msra.mxu0 %v2160
    %2244 = vmatprep.subr.mxu0 %v2159
    %2245 = vmatpush2.msra.mxu0 %v2158
    %2246 = vmatprep.subr.mxu0 %v2157
    %2247 = vmatpush2.msra.mxu0 %v2156
    %2248 = vmatprep.subr.mxu0 %v2155
    %2249 = vmatpush2.msra.mxu0 %v2154
    %2250 = vmatprep.subr.mxu0 %v2153
    %2251 = vmatpush2.msra.mxu0 %v2152
    %2252 = vmatprep.subr.mxu0 %v2151
    %2253 = vmatpush2.msra.mxu0 %v2150
    %2254 = vmatprep.subr.mxu0 %v2149
    %2255 = vmatpush2.msra.mxu0 %v2148
    %2256 = vmatprep.mubr.f32.mxu0 %v2115
    %2257 = vmatmul.mubr.f32.gmra.mxu0 %v2114
    %v2258 = vpop.f32.mrf.mxu0
    %v2259 = vadd.f32 %v2185, %v2258
    %v2260 = vpop.f32.mrf.mxu0
    %v2261 = vadd.f32 %v2189, %v2260
    %2262 = vdwg.mxu0
    %v2263 = vrot.slane %v2259, 4
    %v2264 = vadd.f32 %v2259, %v2263
    %v2265 = vrot.slane %v2264, 2
    %v2266 = vadd.f32 %v2264, %v2265
    %v2267 = vrot.slane %v2266, 1
    %v2268 = vadd.f32 %v2266, %v2267
    %v2269 = vrot.slane %v2261, 4
    %v2270 = vadd.f32 %v2261, %v2269
    %v2271 = vrot.slane %v2270, 2
    %v2272 = vadd.f32 %v2270, %v2271
    %v2273 = vrot.slane %v2272, 1
    %v2274 = vadd.f32 %v2272, %v2273
    %v2275 = vmul.f32 %v2268, %v2059
    %v2276 = vmul.f32 %v2274, %v2059
    %v2277 = vsub.f32 %v2259, %v2275
    %v2278 = vsub.f32 %v2261, %v2276
    %v2279 = vmul.f32 %v2277, %v2277
    %v2280 = vmul.f32 %v2278, %v2278
    %v2281 = vrot.slane %v2279, 4
    %v2282 = vadd.f32 %v2279, %v2281
    %v2283 = vrot.slane %v2282, 2
    %v2284 = vadd.f32 %v2282, %v2283
    %v2285 = vrot.slane %v2284, 1
    %v2286 = vadd.f32 %v2284, %v2285
    %v2287 = vrot.slane %v2280, 4
    %v2288 = vadd.f32 %v2280, %v2287
    %v2289 = vrot.slane %v2288, 2
    %v2290 = vadd.f32 %v2288, %v2289
    %v2291 = vrot.slane %v2290, 1
    %v2292 = vadd.f32 %v2290, %v2291
    %v2293 = vmul.f32 %v2286, %v2059
    %v2294 = vmul.f32 %v2292, %v2059
    %v2295 = vadd.f32 %v2293, 1e-05
    %v2296 = vadd.f32 %v2294, 1e-05
    %v2297 = vrsqrt.pop %v2295
    %v2298 = vrsqrt.pop %v2296
    %v2299 = vmul.f32 %v2277, %v2297
    %v2300 = vmul.f32 %v2278, %v2298
    %v2301 = vld [vmem:[#allocation17] sm:$0x3]
    %v2303 = vlaneseq
    %v2304 = vshrl.u32 %v2303, 7
    %v2305 = vsub.s32 0, %v2304
    %v2306 = vrot.slane %v2301, %v2305
    %v2307 = vlaneseq
    %v2308 = vshrl.u32 %v2307, 7
    %v2309 = vsub.s32 1, %v2308
    %v2310 = vrot.slane %v2301, %v2309
    %v2313 = vmul.f32 %v2299, %v2306
    %v2314 = vmul.f32 %v2300, %v2310
    %v2315 = vld [vmem:[#allocation18] sm:$0x3]
    %v2317 = vlaneseq
    %v2318 = vshrl.u32 %v2317, 7
    %v2319 = vsub.s32 0, %v2318
    %v2320 = vrot.slane %v2315, %v2319
    %v2321 = vlaneseq
    %v2322 = vshrl.u32 %v2321, 7
    %v2323 = vsub.s32 1, %v2322
    %v2324 = vrot.slane %v2315, %v2323
    %v2327 = vadd.f32 %v2313, %v2320
    %v2328 = vadd.f32 %v2314, %v2324
    %v2329 = vmax.f32 %v2327, 0.0
    %v2330 = vmax.f32 %v2328, 0.0
    %v2331 = vld [vmem:[#allocation20] sm:$0xff]
    %v2332 = vld [vmem:[#allocation20 + $0x8] sm:$0xff]
    %v2333 = vld [vmem:[#allocation20 + $0x10] sm:$0xff]
    %v2334 = vld [vmem:[#allocation20 + $0x18] sm:$0xff]
    %v2335 = vld [vmem:[#allocation20 + $0x20] sm:$0xff]
    %v2336 = vld [vmem:[#allocation20 + $0x28] sm:$0xff]
    %v2337 = vld [vmem:[#allocation20 + $0x30] sm:$0xff]
    %v2338 = vld [vmem:[#allocation20 + $0x38] sm:$0xff]
    %v2339 = vld [vmem:[#allocation20 + $0x40] sm:$0xff]
    %v2340 = vld [vmem:[#allocation20 + $0x48] sm:$0xff]
    %v2341 = vld [vmem:[#allocation20 + $0x50] sm:$0xff]
    %v2342 = vld [vmem:[#allocation20 + $0x58] sm:$0xff]
    %v2343 = vld [vmem:[#allocation20 + $0x60] sm:$0xff]
    %v2344 = vld [vmem:[#allocation20 + $0x68] sm:$0xff]
    %v2345 = vld [vmem:[#allocation20 + $0x70] sm:$0xff]
    %v2346 = vld [vmem:[#allocation20 + $0x78] sm:$0xff]
    %v2347 = vld [vmem:[#allocation20 + $0x80] sm:$0xff]
    %v2348 = vld [vmem:[#allocation20 + $0x88] sm:$0xff]
    %v2349 = vld [vmem:[#allocation20 + $0x90] sm:$0xff]
    %v2350 = vld [vmem:[#allocation20 + $0x98] sm:$0xff]
    %v2351 = vld [vmem:[#allocation20 + $0xa0] sm:$0xff]
    %v2352 = vld [vmem:[#allocation20 + $0xa8] sm:$0xff]
    %v2353 = vld [vmem:[#allocation20 + $0xb0] sm:$0xff]
    %v2354 = vld [vmem:[#allocation20 + $0xb8] sm:$0xff]
    %v2355 = vld [vmem:[#allocation20 + $0xc0] sm:$0xff]
    %v2356 = vld [vmem:[#allocation20 + $0xc8] sm:$0xff]
    %v2357 = vld [vmem:[#allocation20 + $0xd0] sm:$0xff]
    %v2358 = vld [vmem:[#allocation20 + $0xd8] sm:$0xff]
    %v2359 = vld [vmem:[#allocation20 + $0xe0] sm:$0xff]
    %v2360 = vld [vmem:[#allocation20 + $0xe8] sm:$0xff]
    %v2361 = vld [vmem:[#allocation20 + $0xf0] sm:$0xff]
    %v2362 = vld [vmem:[#allocation20 + $0xf8] sm:$0xff]
    %v2363 = vld [vmem:[#allocation20 + $0x100] sm:$0xff]
    %v2364 = vld [vmem:[#allocation20 + $0x108] sm:$0xff]
    %v2365 = vld [vmem:[#allocation20 + $0x110] sm:$0xff]
    %v2366 = vld [vmem:[#allocation20 + $0x118] sm:$0xff]
    %v2367 = vld [vmem:[#allocation20 + $0x120] sm:$0xff]
    %v2368 = vld [vmem:[#allocation20 + $0x128] sm:$0xff]
    %v2369 = vld [vmem:[#allocation20 + $0x130] sm:$0xff]
    %v2370 = vld [vmem:[#allocation20 + $0x138] sm:$0xff]
    %v2371 = vld [vmem:[#allocation20 + $0x140] sm:$0xff]
    %v2372 = vld [vmem:[#allocation20 + $0x148] sm:$0xff]
    %v2373 = vld [vmem:[#allocation20 + $0x150] sm:$0xff]
    %v2374 = vld [vmem:[#allocation20 + $0x158] sm:$0xff]
    %v2375 = vld [vmem:[#allocation20 + $0x160] sm:$0xff]
    %v2376 = vld [vmem:[#allocation20 + $0x168] sm:$0xff]
    %v2377 = vld [vmem:[#allocation20 + $0x170] sm:$0xff]
    %v2378 = vld [vmem:[#allocation20 + $0x178] sm:$0xff]
    %v2379 = vld [vmem:[#allocation20 + $0x180] sm:$0xff]
    %v2380 = vld [vmem:[#allocation20 + $0x188] sm:$0xff]
    %v2381 = vld [vmem:[#allocation20 + $0x190] sm:$0xff]
    %v2382 = vld [vmem:[#allocation20 + $0x198] sm:$0xff]
    %v2383 = vld [vmem:[#allocation20 + $0x1a0] sm:$0xff]
    %v2384 = vld [vmem:[#allocation20 + $0x1a8] sm:$0xff]
    %v2385 = vld [vmem:[#allocation20 + $0x1b0] sm:$0xff]
    %v2386 = vld [vmem:[#allocation20 + $0x1b8] sm:$0xff]
    %v2387 = vld [vmem:[#allocation20 + $0x1c0] sm:$0xff]
    %v2388 = vld [vmem:[#allocation20 + $0x1c8] sm:$0xff]
    %v2389 = vld [vmem:[#allocation20 + $0x1d0] sm:$0xff]
    %v2390 = vld [vmem:[#allocation20 + $0x1d8] sm:$0xff]
    %v2391 = vld [vmem:[#allocation20 + $0x1e0] sm:$0xff]
    %v2392 = vld [vmem:[#allocation20 + $0x1e8] sm:$0xff]
    %v2393 = vld [vmem:[#allocation20 + $0x1f0] sm:$0xff]
    %v2394 = vld [vmem:[#allocation20 + $0x1f8] sm:$0xff]
    %v2395 = vld [vmem:[#allocation21] sm:$0x3]
    %v2397 = vlaneseq
    %v2398 = vshrl.u32 %v2397, 7
    %v2399 = vsub.s32 0, %v2398
    %v2400 = vrot.slane %v2395, %v2399
    %v2401 = vlaneseq
    %v2402 = vshrl.u32 %v2401, 7
    %v2403 = vsub.s32 1, %v2402
    %v2404 = vrot.slane %v2395, %v2403
    %2407 = vmatprep.subr.mxu0 %v2362
    %2408 = vmatpush1.msra.mxu0 %v2361
    %2409 = vmatprep.subr.mxu0 %v2360
    %2410 = vmatpush1.msra.mxu0 %v2359
    %2411 = vmatprep.subr.mxu0 %v2358
    %2412 = vmatpush1.msra.mxu0 %v2357
    %2413 = vmatprep.subr.mxu0 %v2356
    %2414 = vmatpush1.msra.mxu0 %v2355
    %2415 = vmatprep.subr.mxu0 %v2354
    %2416 = vmatpush1.msra.mxu0 %v2353
    %2417 = vmatprep.subr.mxu0 %v2352
    %2418 = vmatpush1.msra.mxu0 %v2351
    %2419 = vmatprep.subr.mxu0 %v2350
    %2420 = vmatpush1.msra.mxu0 %v2349
    %2421 = vmatprep.subr.mxu0 %v2348
    %2422 = vmatpush1.msra.mxu0 %v2347
    %2423 = vmatprep.subr.mxu0 %v2346
    %2424 = vmatpush1.msra.mxu0 %v2345
    %2425 = vmatprep.subr.mxu0 %v2344
    %2426 = vmatpush1.msra.mxu0 %v2343
    %2427 = vmatprep.subr.mxu0 %v2342
    %2428 = vmatpush1.msra.mxu0 %v2341
    %2429 = vmatprep.subr.mxu0 %v2340
    %2430 = vmatpush1.msra.mxu0 %v2339
    %2431 = vmatprep.subr.mxu0 %v2338
    %2432 = vmatpush1.msra.mxu0 %v2337
    %2433 = vmatprep.subr.mxu0 %v2336
    %2434 = vmatpush1.msra.mxu0 %v2335
    %2435 = vmatprep.subr.mxu0 %v2334
    %2436 = vmatpush1.msra.mxu0 %v2333
    %2437 = vmatprep.subr.mxu0 %v2332
    %2438 = vmatpush1.msra.mxu0 %v2331
    %2439 = vmatprep.subr.mxu0 %v2394
    %2440 = vmatpush2.msra.mxu0 %v2393
    %2441 = vmatprep.subr.mxu0 %v2392
    %2442 = vmatpush2.msra.mxu0 %v2391
    %2443 = vmatprep.subr.mxu0 %v2390
    %2444 = vmatpush2.msra.mxu0 %v2389
    %2445 = vmatprep.subr.mxu0 %v2388
    %2446 = vmatpush2.msra.mxu0 %v2387
    %2447 = vmatprep.subr.mxu0 %v2386
    %2448 = vmatpush2.msra.mxu0 %v2385
    %2449 = vmatprep.subr.mxu0 %v2384
    %2450 = vmatpush2.msra.mxu0 %v2383
    %2451 = vmatprep.subr.mxu0 %v2382
    %2452 = vmatpush2.msra.mxu0 %v2381
    %2453 = vmatprep.subr.mxu0 %v2380
    %2454 = vmatpush2.msra.mxu0 %v2379
    %2455 = vmatprep.subr.mxu0 %v2378
    %2456 = vmatpush2.msra.mxu0 %v2377
    %2457 = vmatprep.subr.mxu0 %v2376
    %2458 = vmatpush2.msra.mxu0 %v2375
    %2459 = vmatprep.subr.mxu0 %v2374
    %2460 = vmatpush2.msra.mxu0 %v2373
    %2461 = vmatprep.subr.mxu0 %v2372
    %2462 = vmatpush2.msra.mxu0 %v2371
    %2463 = vmatprep.subr.mxu0 %v2370
    %2464 = vmatpush2.msra.mxu0 %v2369
    %2465 = vmatprep.subr.mxu0 %v2368
    %2466 = vmatpush2.msra.mxu0 %v2367
    %2467 = vmatprep.subr.mxu0 %v2366
    %2468 = vmatpush2.msra.mxu0 %v2365
    %2469 = vmatprep.subr.mxu0 %v2364
    %2470 = vmatpush2.msra.mxu0 %v2363
    %2471 = vmatprep.mubr.f32.mxu0 %v2330
    %2472 = vmatmul.mubr.f32.gmra.mxu0 %v2329
    %v2473 = vpop.f32.mrf.mxu0
    %v2474 = vadd.f32 %v2400, %v2473
    %v2475 = vpop.f32.mrf.mxu0
    %v2476 = vadd.f32 %v2404, %v2475
    %2477 = vdwg.mxu0
    %v2478 = vrot.slane %v2474, 4
    %v2479 = vadd.f32 %v2474, %v2478
    %v2480 = vrot.slane %v2479, 2
    %v2481 = vadd.f32 %v2479, %v2480
    %v2482 = vrot.slane %v2481, 1
    %v2483 = vadd.f32 %v2481, %v2482
    %v2484 = vrot.slane %v2476, 4
    %v2485 = vadd.f32 %v2476, %v2484
    %v2486 = vrot.slane %v2485, 2
    %v2487 = vadd.f32 %v2485, %v2486
    %v2488 = vrot.slane %v2487, 1
    %v2489 = vadd.f32 %v2487, %v2488
    %v2490 = vmul.f32 %v2483, %v2059
    %v2491 = vmul.f32 %v2489, %v2059
    %v2492 = vsub.f32 %v2474, %v2490
    %v2493 = vsub.f32 %v2476, %v2491
    %v2494 = vmul.f32 %v2492, %v2492
    %v2495 = vmul.f32 %v2493, %v2493
    %v2496 = vrot.slane %v2494, 4
    %v2497 = vadd.f32 %v2494, %v2496
    %v2498 = vrot.slane %v2497, 2
    %v2499 = vadd.f32 %v2497, %v2498
    %v2500 = vrot.slane %v2499, 1
    %v2501 = vadd.f32 %v2499, %v2500
    %v2502 = vrot.slane %v2495, 4
    %v2503 = vadd.f32 %v2495, %v2502
    %v2504 = vrot.slane %v2503, 2
    %v2505 = vadd.f32 %v2503, %v2504
    %v2506 = vrot.slane %v2505, 1
    %v2507 = vadd.f32 %v2505, %v2506
    %v2508 = vmul.f32 %v2501, %v2059
    %v2509 = vmul.f32 %v2507, %v2059
    %v2510 = vadd.f32 %v2508, 1e-05
    %v2511 = vadd.f32 %v2509, 1e-05
    %v2512 = vrsqrt.pop %v2510
    %v2513 = vrsqrt.pop %v2511
    %v2514 = vmul.f32 %v2492, %v2512
    %v2515 = vmul.f32 %v2493, %v2513
    %v2516 = vld [vmem:[#allocation23] sm:$0x3]
    %v2518 = vlaneseq
    %v2519 = vshrl.u32 %v2518, 7
    %v2520 = vsub.s32 0, %v2519
    %v2521 = vrot.slane %v2516, %v2520
    %v2522 = vlaneseq
    %v2523 = vshrl.u32 %v2522, 7
    %v2524 = vsub.s32 1, %v2523
    %v2525 = vrot.slane %v2516, %v2524
    %v2528 = vmul.f32 %v2514, %v2521
    %v2529 = vmul.f32 %v2515, %v2525
    %v2530 = vld [vmem:[#allocation24] sm:$0x3]
    %v2532 = vlaneseq
    %v2533 = vshrl.u32 %v2532, 7
    %v2534 = vsub.s32 0, %v2533
    %v2535 = vrot.slane %v2530, %v2534
    %v2536 = vlaneseq
    %v2537 = vshrl.u32 %v2536, 7
    %v2538 = vsub.s32 1, %v2537
    %v2539 = vrot.slane %v2530, %v2538
    %v2542 = vadd.f32 %v2528, %v2535
    %v2543 = vadd.f32 %v2529, %v2539
    %v2546 = vrot.slane %v2542, 2
    %v2547 = vrot.slane %v2543, 2
    %v2550 = vadd.f32 %v2542, %v2546
    %v2551 = vadd.f32 %v2543, %v2547
    %v2552 = vrot.slane %v2542, 4
    %v2553 = vrot.slane %v2543, 4
    %v2556 = vadd.f32 %v2550, %v2552
    %v2557 = vadd.f32 %v2551, %v2553
    %v2558 = vrot.slane %v2542, 6
    %v2559 = vrot.slane %v2543, 6
    %v2562 = vadd.f32 %v2556, %v2558
    %v2563 = vadd.f32 %v2557, %v2559
    %v2564 = vmul.f32 %v2562, 0.25
    %v2565 = vmul.f32 %v2563, 0.25
    %v2568 = vcombine.low %v2564, %v2565
    %v2570 = vunpack.c.l.s4 1983009808
    %v2571 = vunpack.c.0.s8 %v2570
    %v2572 = vlaneseq
    %v2573 = vshrl.u32 %v2572, 7
    %v2574 = vsub.s32 %v2571, %v2573
    %v2575 = vrot.slane %v2568, %v2574
    %2577 = vst [vmem:[#allocation26] sm:$0xf] %v2575
    // Predicated region
    $region118: #{aurl_forward.1} parent=1 // pred_check
      _
    $region119: #{aurl_forward.1} parent=1 // pred_check_branch
      %2579 = sbr.rel (0) target = $region121
    $region120: #{aurl_forward.1} parent=1 // pred_region
      %s2581 = ssub.s32 64, 64
      %2582 = vsyncadd [#allocation5], %s2581
      %s2584 = sshll.u32 [#allocation26], 4
      %s2585 = int_to_ptr.vmem [resolvable:$true] %s2584
      %2587 = dma.vmem_to_hbm [thread:$0]  %s2585, 64, %s15, [#allocation5]
    $region121: #{aurl_forward.1} parent=1 // pred_fallthru
      _
    // Predicated region
    $region122: #{aurl_forward.1} parent=1 // pred_check
      _
    $region123: #{aurl_forward.1} parent=1 // pred_check_branch
      %2589 = sbr.rel (0) target = $region125
    $region124: #{aurl_forward.1} parent=1 // pred_region
      %2590 = dma.done [#allocation5], 64
    $region125: #{aurl_forward.1} parent=1 // pred_fallthru
      _
    %2591 = vsyncpa [#allocation4], 1
    %2592 = vsyncpa [#allocation7], 1
    %2593 = vsyncpa [#allocation10], 1
    %2594 = vsyncpa [#allocation13], 1
    %2595 = vsyncpa [#allocation16], 1
    %2596 = vsyncpa [#allocation19], 1
    %2597 = vsyncpa [#allocation22], 1
    %2598 = vsyncpa [#allocation25], 1
    %2599 = vsyncpa [#allocation5], 1

</llo_original>
